<compile_context>
chip_gen: v5e
topology: v5e:2x2
jax: 0.10.0
libtpu: 0.0.40
codegen_flags: <defaults>
</compile_context>

<pallas_src>
import functools

import jax
import jax.numpy as jnp
from jax.experimental import pallas as pl
from jax.experimental.pallas import tpu as pltpu

# Real module uses embedding_size = 2048; use a smaller but structurally
# identical size so the demo runs quickly. Tiling logic below is written for
# (and sized to) the real 2048 case.
EMBEDDING_SIZE = 256

# Per-block weight-slab budget (bytes). 8 MiB bf16, double-buffered = 16 MiB,
# which leaves plenty of headroom inside v7x's 64 MiB VMEM and is well past the
# "big streaming DMA" knee on v5e/v6e.
_WEIGHT_SLAB_BUDGET = 8 * 1024 * 1024


# ----------------------------------------------------------------------------
# Fused Linear kernel (full-K, no reduction grid axis):
#   y = [relu](x @ W + b)        optionally followed by L2 row-normalization
# ----------------------------------------------------------------------------
def _linear_kernel(x_ref, w_ref, b_ref, o_ref, *, apply_relu, l2_norm):
    x = x_ref[...].astype(w_ref.dtype)                     # bf16 on the MXU
    y = jnp.dot(x, w_ref[...], preferred_element_type=jnp.float32)
    y = y + b_ref[...]                                     # bias broadcast over rows
    if apply_relu:
        y = jnp.maximum(y, 0.0)
    if l2_norm:
        # torch F.normalize(p=2, eps=1e-12):  x / max(||x||, 1e-12)
        ssq = jnp.sum(y * y, axis=-1, keepdims=True)
        y = y * jax.lax.rsqrt(jnp.maximum(ssq, 1e-24))     # EUP rsqrt
    o_ref[...] = y.astype(o_ref.dtype)


def _pick_tn(K, N, itemsize, budget=_WEIGHT_SLAB_BUDGET):
    """Largest N tile (multiple of 128, dividing N) whose K x tn slab fits budget."""
    fallback = N
    for cand in (2048, 1024, 512, 256, 128):
        if N % cand == 0:
            fallback = cand
            if K * cand * itemsize <= budget:
                return cand
    return fallback   # small / non-128-multiple N: use the full dimension


def linear(x, w, b, *, apply_relu, l2_norm=False, tm=8):
    M, K = x.shape
    K2, N = w.shape
    assert K == K2 and b.shape == (N,)
    assert M % tm == 0, "pad the batch to a multiple of 8 before calling linear()"

    # Full row must be in one block to fuse the L2 norm.
    tn = N if l2_norm else _pick_tn(K, N, jnp.dtype(w.dtype).itemsize)
    assert N % tn == 0

    b2 = b.reshape(1, N).astype(jnp.float32)
    grid = (pl.cdiv(N, tn), pl.cdiv(M, tm))   # N first: megacore splits the long axis

    kernel = functools.partial(_linear_kernel, apply_relu=apply_relu, l2_norm=l2_norm)
    return pl.pallas_call(
        kernel,
        out_shape=jax.ShapeDtypeStruct((M, N), jnp.float32),
        grid_spec=pltpu.PrefetchScalarGridSpec(
            num_scalar_prefetch=0,
            grid=grid,
            in_specs=[
                pl.BlockSpec((tm, K), lambda j, i: (i, 0)),   # activations (full K)
                pl.BlockSpec((K, tn), lambda j, i: (0, j)),   # weight slab (full K)
                pl.BlockSpec((1, tn), lambda j, i: (0, j)),   # bias slice
            ],
            out_specs=pl.BlockSpec((tm, tn), lambda j, i: (i, j)),
        ),
        compiler_params=pltpu.CompilerParams(
            dimension_semantics=("parallel", "parallel"),
            vmem_limit_bytes=64 * 1024 * 1024,
        ),
    )(x, w, b2)


# ----------------------------------------------------------------------------
# Model: deterministic parameter init (PyTorch-style uniform(-1/sqrt(fan_in))),
# weights stored transposed (in, out) and cast to bf16 for streaming.
# ----------------------------------------------------------------------------
def init_params(key, embedding_size):
    e = embedding_size
    dims = [(2 * e, 4 * e), (4 * e, 4 * e), (4 * e, e), (e, e)]
    params = []
    for fan_in, fan_out in dims:
        key, kw, kb = jax.random.split(key, 3)
        bound = 1.0 / (fan_in ** 0.5)
        w = jax.random.uniform(kw, (fan_in, fan_out), jnp.float32, -bound, bound)
        b = jax.random.uniform(kb, (fan_out,), jnp.float32, -bound, bound)
        params.append((w.astype(jnp.bfloat16), b))
    return params


@jax.jit
def neural_network_forward(x, params):
    (w0, b0), (w1, b1), (w2, b2), (w3, b3) = params
    m = x.shape[0]
    mp = ((m + 7) // 8) * 8
    if mp != m:                               # pad rows so the (8,128) layout is legal
        x = jnp.pad(x, ((0, mp - m), (0, 0)))
    h = linear(x, w0, b0, apply_relu=True)
    h = linear(h, w1, b1, apply_relu=True)
    h = linear(h, w2, b2, apply_relu=True)
    # Final layer: no ReLU; L2 normalization fused into the kernel epilogue.
    h = linear(h, w3, b3, apply_relu=False, l2_norm=True)
    return h[:m]
    # TODO(synk): optional further fusion of all 4 layers into a single
    # pallas_call with activations resident in VMEM (emit_pipeline over weight
    # slabs) would remove 3 more launches; kept as separate calls for clarity.


def reference_forward(x, params):
    """Pure-JAX reference with the same bf16-weight / f32-accumulate numerics."""
    h = x
    for i, (w, b) in enumerate(params):
        h = jnp.dot(h.astype(jnp.bfloat16), w,
                    preferred_element_type=jnp.float32) + b
        if i < 3:
            h = jnp.maximum(h, 0.0)
    norm = jnp.sqrt(jnp.sum(h * h, axis=-1, keepdims=True))
    return h / jnp.maximum(norm, 1e-12)


if __name__ == "__main__":
    key = jax.random.PRNGKey(0)
    kx, kp = jax.random.split(key)

    batch = 6   # deliberately not a multiple of 8 to exercise the row-padding path
    x = jax.random.normal(kx, (batch, 2 * EMBEDDING_SIZE), jnp.float32)
    params = init_params(kp, EMBEDDING_SIZE)

    out = neural_network_forward(x, params)
    jax.block_until_ready(out)

    ref = reference_forward(x, params)
    assert out.shape == (batch, EMBEDDING_SIZE)
    max_err = float(jnp.max(jnp.abs(out - ref)))
    assert max_err < 5e-3, f"mismatch vs reference: max abs err {max_err}"

    print("KERNEL_OK")
</pallas_src>

<mosaic_0001>
module attributes {stable_mosaic.version = 11 : i64} {
  func.func @_linear_kernel(%arg0: i32, %arg1: i32, %arg2: memref<8x1024xf32, #tpu.memory_space<vmem>>, %arg3: memref<1024x256xbf16, #tpu.memory_space<vmem>>, %arg4: memref<1x256xf32, #tpu.memory_space<vmem>>, %arg5: memref<8x256xf32, #tpu.memory_space<vmem>>) attributes {dimension_semantics = [#tpu.dimension_semantics<parallel>, #tpu.dimension_semantics<parallel>], iteration_bounds = array<i64: 1, 1>, scalar_prefetch = 0 : i64, scratch_operands = 0 : i64, tpu.core_type = #tpu.core_type<tc>, window_params = [{transform_indices = @transform_0, window_bounds = array<i64: 8, 1024>}, {transform_indices = @transform_1, window_bounds = array<i64: 1024, 256>}, {transform_indices = @transform_2, window_bounds = array<i64: 1, 256>}, {transform_indices = @transform_3, window_bounds = array<i64: 8, 256>}]} {
    %c0 = arith.constant 0 : index
    %c0_0 = arith.constant 0 : index
    %0 = vector.load %arg2[%c0, %c0_0] : memref<8x1024xf32, #tpu.memory_space<vmem>>, vector<8x1024xf32>
    %1 = arith.truncf %0 : vector<8x1024xf32> to vector<8x1024xbf16>
    %c0_1 = arith.constant 0 : index
    %c0_2 = arith.constant 0 : index
    %2 = vector.load %arg3[%c0_1, %c0_2] : memref<1024x256xbf16, #tpu.memory_space<vmem>>, vector<1024x256xbf16>
    %cst = arith.constant dense<0.000000e+00> : vector<8x256xf32>
    %3 = tpu.matmul %1, %2, %cst {dimension_numbers = #tpu.dot_dimension_numbers<[1], [0], [0], [1], [0, 0, 1, 1], [], []>} : vector<8x1024xbf16>, vector<1024x256xbf16>, vector<8x256xf32> -> vector<8x256xf32>
    %c0_3 = arith.constant 0 : index
    %c0_4 = arith.constant 0 : index
    %4 = vector.load %arg4[%c0_3, %c0_4] : memref<1x256xf32, #tpu.memory_space<vmem>>, vector<1x256xf32>
    %5 = vector.broadcast %4 : vector<1x256xf32> to vector<8x256xf32>
    %6 = arith.addf %3, %5 : vector<8x256xf32>
    %cst_5 = arith.constant 0.000000e+00 : f32
    %7 = vector.broadcast %cst_5 : f32 to vector<8x256xf32>
    %8 = arith.maximumf %6, %7 : vector<8x256xf32>
    %c0_6 = arith.constant 0 : index
    %c0_7 = arith.constant 0 : index
    %9 = vector.load %arg5[%c0_6, %c0_7] : memref<8x256xf32, #tpu.memory_space<vmem>>, vector<8x256xf32>
    tpu.vector_store %arg5[%c0_6, %c0_7], %8 {strides = array<i32>} : memref<8x256xf32, #tpu.memory_space<vmem>>, vector<8x256xf32>,
    return
  }
  func.func @transform_0(%arg0: i32, %arg1: i32) -> (i32, i32) {
    %c0_i32 = arith.constant 0 : i32
    %c0_i32_0 = arith.constant 0 : i32
    return %arg1, %c0_i32 : i32, i32
  }
  func.func @transform_1(%arg0: i32, %arg1: i32) -> (i32, i32) {
    %c0_i32 = arith.constant 0 : i32
    %c0_i32_0 = arith.constant 0 : i32
    return %c0_i32, %arg0 : i32, i32
  }
  func.func @transform_2(%arg0: i32, %arg1: i32) -> (i32, i32) {
    %c0_i32 = arith.constant 0 : i32
    %c0_i32_0 = arith.constant 0 : i32
    return %c0_i32, %arg0 : i32, i32
  }
  func.func @transform_3(%arg0: i32, %arg1: i32) -> (i32, i32) {
    %c0_i32 = arith.constant 0 : i32
    return %arg1, %arg0 : i32, i32
  }
}

module attributes {stable_mosaic.version = 11 : i64} {
  func.func @_linear_kernel(%arg0: i32, %arg1: i32, %arg2: memref<8x512xf32, #tpu.memory_space<vmem>>, %arg3: memref<512x1024xbf16, #tpu.memory_space<vmem>>, %arg4: memref<1x1024xf32, #tpu.memory_space<vmem>>, %arg5: memref<8x1024xf32, #tpu.memory_space<vmem>>) attributes {dimension_semantics = [#tpu.dimension_semantics<parallel>, #tpu.dimension_semantics<parallel>], iteration_bounds = array<i64: 1, 1>, scalar_prefetch = 0 : i64, scratch_operands = 0 : i64, tpu.core_type = #tpu.core_type<tc>, window_params = [{transform_indices = @transform_0, window_bounds = array<i64: 8, 512>}, {transform_indices = @transform_1, window_bounds = array<i64: 512, 1024>}, {transform_indices = @transform_2, window_bounds = array<i64: 1, 1024>}, {transform_indices = @transform_3, window_bounds = array<i64: 8, 1024>}]} {
    %c0 = arith.constant 0 : index
    %c0_0 = arith.constant 0 : index
    %0 = vector.load %arg2[%c0, %c0_0] : memref<8x512xf32, #tpu.memory_space<vmem>>, vector<8x512xf32>
    %1 = arith.truncf %0 : vector<8x512xf32> to vector<8x512xbf16>
    %c0_1 = arith.constant 0 : index
    %c0_2 = arith.constant 0 : index
    %2 = vector.load %arg3[%c0_1, %c0_2] : memref<512x1024xbf16, #tpu.memory_space<vmem>>, vector<512x1024xbf16>
    %cst = arith.constant dense<0.000000e+00> : vector<8x1024xf32>
    %3 = tpu.matmul %1, %2, %cst {dimension_numbers = #tpu.dot_dimension_numbers<[1], [0], [0], [1], [0, 0, 1, 1], [], []>} : vector<8x512xbf16>, vector<512x1024xbf16>, vector<8x1024xf32> -> vector<8x1024xf32>
    %c0_3 = arith.constant 0 : index
    %c0_4 = arith.constant 0 : index
    %4 = vector.load %arg4[%c0_3, %c0_4] : memref<1x1024xf32, #tpu.memory_space<vmem>>, vector<1x1024xf32>
    %5 = vector.broadcast %4 : vector<1x1024xf32> to vector<8x1024xf32>
    %6 = arith.addf %3, %5 : vector<8x1024xf32>
    %cst_5 = arith.constant 0.000000e+00 : f32
    %7 = vector.broadcast %cst_5 : f32 to vector<8x1024xf32>
    %8 = arith.maximumf %6, %7 : vector<8x1024xf32>
    %c0_6 = arith.constant 0 : index
    %c0_7 = arith.constant 0 : index
    %9 = vector.load %arg5[%c0_6, %c0_7] : memref<8x1024xf32, #tpu.memory_space<vmem>>, vector<8x1024xf32>
    tpu.vector_store %arg5[%c0_6, %c0_7], %8 {strides = array<i32>} : memref<8x1024xf32, #tpu.memory_space<vmem>>, vector<8x1024xf32>,
    return
  }
  func.func @transform_0(%arg0: i32, %arg1: i32) -> (i32, i32) {
    %c0_i32 = arith.constant 0 : i32
    %c0_i32_0 = arith.constant 0 : i32
    return %arg1, %c0_i32 : i32, i32
  }
  func.func @transform_1(%arg0: i32, %arg1: i32) -> (i32, i32) {
    %c0_i32 = arith.constant 0 : i32
    %c0_i32_0 = arith.constant 0 : i32
    return %c0_i32, %arg0 : i32, i32
  }
  func.func @transform_2(%arg0: i32, %arg1: i32) -> (i32, i32) {
    %c0_i32 = arith.constant 0 : i32
    %c0_i32_0 = arith.constant 0 : i32
    return %c0_i32, %arg0 : i32, i32
  }
  func.func @transform_3(%arg0: i32, %arg1: i32) -> (i32, i32) {
    %c0_i32 = arith.constant 0 : i32
    return %arg1, %arg0 : i32, i32
  }
}

module attributes {stable_mosaic.version = 11 : i64} {
  func.func @_linear_kernel(%arg0: i32, %arg1: i32, %arg2: memref<8x1024xf32, #tpu.memory_space<vmem>>, %arg3: memref<1024x1024xbf16, #tpu.memory_space<vmem>>, %arg4: memref<1x1024xf32, #tpu.memory_space<vmem>>, %arg5: memref<8x1024xf32, #tpu.memory_space<vmem>>) attributes {dimension_semantics = [#tpu.dimension_semantics<parallel>, #tpu.dimension_semantics<parallel>], iteration_bounds = array<i64: 1, 1>, scalar_prefetch = 0 : i64, scratch_operands = 0 : i64, tpu.core_type = #tpu.core_type<tc>, window_params = [{transform_indices = @transform_0, window_bounds = array<i64: 8, 1024>}, {transform_indices = @transform_1, window_bounds = array<i64: 1024, 1024>}, {transform_indices = @transform_2, window_bounds = array<i64: 1, 1024>}, {transform_indices = @transform_3, window_bounds = array<i64: 8, 1024>}]} {
    %c0 = arith.constant 0 : index
    %c0_0 = arith.constant 0 : index
    %0 = vector.load %arg2[%c0, %c0_0] : memref<8x1024xf32, #tpu.memory_space<vmem>>, vector<8x1024xf32>
    %1 = arith.truncf %0 : vector<8x1024xf32> to vector<8x1024xbf16>
    %c0_1 = arith.constant 0 : index
    %c0_2 = arith.constant 0 : index
    %2 = vector.load %arg3[%c0_1, %c0_2] : memref<1024x1024xbf16, #tpu.memory_space<vmem>>, vector<1024x1024xbf16>
    %cst = arith.constant dense<0.000000e+00> : vector<8x1024xf32>
    %3 = tpu.matmul %1, %2, %cst {dimension_numbers = #tpu.dot_dimension_numbers<[1], [0], [0], [1], [0, 0, 1, 1], [], []>} : vector<8x1024xbf16>, vector<1024x1024xbf16>, vector<8x1024xf32> -> vector<8x1024xf32>
    %c0_3 = arith.constant 0 : index
    %c0_4 = arith.constant 0 : index
    %4 = vector.load %arg4[%c0_3, %c0_4] : memref<1x1024xf32, #tpu.memory_space<vmem>>, vector<1x1024xf32>
    %5 = vector.broadcast %4 : vector<1x1024xf32> to vector<8x1024xf32>
    %6 = arith.addf %3, %5 : vector<8x1024xf32>
    %cst_5 = arith.constant 0.000000e+00 : f32
    %7 = vector.broadcast %cst_5 : f32 to vector<8x1024xf32>
    %8 = arith.maximumf %6, %7 : vector<8x1024xf32>
    %c0_6 = arith.constant 0 : index
    %c0_7 = arith.constant 0 : index
    %9 = vector.load %arg5[%c0_6, %c0_7] : memref<8x1024xf32, #tpu.memory_space<vmem>>, vector<8x1024xf32>
    tpu.vector_store %arg5[%c0_6, %c0_7], %8 {strides = array<i32>} : memref<8x1024xf32, #tpu.memory_space<vmem>>, vector<8x1024xf32>,
    return
  }
  func.func @transform_0(%arg0: i32, %arg1: i32) -> (i32, i32) {
    %c0_i32 = arith.constant 0 : i32
    %c0_i32_0 = arith.constant 0 : i32
    return %arg1, %c0_i32 : i32, i32
  }
  func.func @transform_1(%arg0: i32, %arg1: i32) -> (i32, i32) {
    %c0_i32 = arith.constant 0 : i32
    %c0_i32_0 = arith.constant 0 : i32
    return %c0_i32, %arg0 : i32, i32
  }
  func.func @transform_2(%arg0: i32, %arg1: i32) -> (i32, i32) {
    %c0_i32 = arith.constant 0 : i32
    %c0_i32_0 = arith.constant 0 : i32
    return %c0_i32, %arg0 : i32, i32
  }
  func.func @transform_3(%arg0: i32, %arg1: i32) -> (i32, i32) {
    %c0_i32 = arith.constant 0 : i32
    return %arg1, %arg0 : i32, i32
  }
}

module attributes {stable_mosaic.version = 11 : i64} {
  func.func @_linear_kernel(%arg0: i32, %arg1: i32, %arg2: memref<8x256xf32, #tpu.memory_space<vmem>>, %arg3: memref<256x256xbf16, #tpu.memory_space<vmem>>, %arg4: memref<1x256xf32, #tpu.memory_space<vmem>>, %arg5: memref<8x256xf32, #tpu.memory_space<vmem>>) attributes {dimension_semantics = [#tpu.dimension_semantics<parallel>, #tpu.dimension_semantics<parallel>], iteration_bounds = array<i64: 1, 1>, scalar_prefetch = 0 : i64, scratch_operands = 0 : i64, tpu.core_type = #tpu.core_type<tc>, window_params = [{transform_indices = @transform_0, window_bounds = array<i64: 8, 256>}, {transform_indices = @transform_1, window_bounds = array<i64: 256, 256>}, {transform_indices = @transform_2, window_bounds = array<i64: 1, 256>}, {transform_indices = @transform_3, window_bounds = array<i64: 8, 256>}]} {
    %c0 = arith.constant 0 : index
    %c0_0 = arith.constant 0 : index
    %0 = vector.load %arg2[%c0, %c0_0] : memref<8x256xf32, #tpu.memory_space<vmem>>, vector<8x256xf32>
    %1 = arith.truncf %0 : vector<8x256xf32> to vector<8x256xbf16>
    %c0_1 = arith.constant 0 : index
    %c0_2 = arith.constant 0 : index
    %2 = vector.load %arg3[%c0_1, %c0_2] : memref<256x256xbf16, #tpu.memory_space<vmem>>, vector<256x256xbf16>
    %cst = arith.constant dense<0.000000e+00> : vector<8x256xf32>
    %3 = tpu.matmul %1, %2, %cst {dimension_numbers = #tpu.dot_dimension_numbers<[1], [0], [0], [1], [0, 0, 1, 1], [], []>} : vector<8x256xbf16>, vector<256x256xbf16>, vector<8x256xf32> -> vector<8x256xf32>
    %c0_3 = arith.constant 0 : index
    %c0_4 = arith.constant 0 : index
    %4 = vector.load %arg4[%c0_3, %c0_4] : memref<1x256xf32, #tpu.memory_space<vmem>>, vector<1x256xf32>
    %5 = vector.broadcast %4 : vector<1x256xf32> to vector<8x256xf32>
    %6 = arith.addf %3, %5 : vector<8x256xf32>
    %7 = arith.mulf %6, %6 : vector<8x256xf32>
    %cst_5 = arith.constant dense<0.000000e+00> : vector<8xf32>
    %8 = vector.multi_reduction <add>, %7, %cst_5 [1] : vector<8x256xf32> to vector<8xf32>
    %9 = vector.shape_cast %8 : vector<8xf32> to vector<8x1xf32>
    %cst_6 = arith.constant 1.000000e-24 : f32
    %10 = vector.broadcast %cst_6 : f32 to vector<8x1xf32>
    %11 = arith.maximumf %9, %10 : vector<8x1xf32>
    %12 = math.rsqrt %11 : vector<8x1xf32>
    %13 = vector.broadcast %12 : vector<8x1xf32> to vector<8x256xf32>
    %14 = arith.mulf %6, %13 : vector<8x256xf32>
    %c0_7 = arith.constant 0 : index
    %c0_8 = arith.constant 0 : index
    %15 = vector.load %arg5[%c0_7, %c0_8] : memref<8x256xf32, #tpu.memory_space<vmem>>, vector<8x256xf32>
    tpu.vector_store %arg5[%c0_7, %c0_8], %14 {strides = array<i32>} : memref<8x256xf32, #tpu.memory_space<vmem>>, vector<8x256xf32>,
    return
  }
  func.func @transform_0(%arg0: i32, %arg1: i32) -> (i32, i32) {
    %c0_i32 = arith.constant 0 : i32
    %c0_i32_0 = arith.constant 0 : i32
    return %arg1, %c0_i32 : i32, i32
  }
  func.func @transform_1(%arg0: i32, %arg1: i32) -> (i32, i32) {
    %c0_i32 = arith.constant 0 : i32
    %c0_i32_0 = arith.constant 0 : i32
    return %c0_i32, %arg0 : i32, i32
  }
  func.func @transform_2(%arg0: i32, %arg1: i32) -> (i32, i32) {
    %c0_i32 = arith.constant 0 : i32
    %c0_i32_0 = arith.constant 0 : i32
    return %c0_i32, %arg0 : i32, i32
  }
  func.func @transform_3(%arg0: i32, %arg1: i32) -> (i32, i32) {
    %c0_i32 = arith.constant 0 : i32
    return %arg1, %arg0 : i32, i32
  }
}

</mosaic_0001>

<llo_original>
// kernel: neural_network_forward.6
$region0: #{neural_network_forward.6}
  #allocation0 [shape = 'u32[]', space=smem, size = 0x4, offset = 0x4, fixed_abs, tag = 'smem constant byte address 0x4 - core index']
  #allocation1 [shape = 'u32[72,128]{1,0:T(1,128)}', space=vmem, size = 0x9000, scoped, tag = 'internal scratch']
  %s0 = inlined_call_operand.vmem [shape: f32[8,1024], index: 0, kind: input, shape index: {}]
  %s1 = inlined_call_operand.hbm [shape: bf16[1024,256], index: 1, kind: input, shape index: {}]
  %s2 = inlined_call_operand.hbm [shape: f32[1,256], index: 2, kind: input, shape index: {}]
  %s3 = inlined_call_operand.vmem [shape: f32[8,256], index: 3, kind: output, shape index: {}]
  %s4 = sld [smem:[#allocation0]]
  $region30: #{neural_network_forward.6} parent=0
    _
  %s6 = ssub.s32 1, %s4
  %s7 = scalar_select 0, %s6, %s4
  $region1: #{neural_network_forward.6} parent=0
    #allocation2 [shape = 'u8[524288]{0}', space=vmem, size = 0x80000, scoped, tag = 'input window, operand 1, single buffered']
    #allocation3 [shape = 's32[1]{0}', space=sflag, size = 0x4, scoped, tag = 'scoped memory for neural_network_forward.6']
    #allocation4 [shape = 'u8[1024]{0}', space=vmem, size = 0x400, scoped, tag = 'input window, operand 2, single buffered']
    #allocation5 [shape = 's32[1]{0}', space=sflag, size = 0x4, scoped, tag = 'scoped memory for neural_network_forward.6']
    %8 = vsyncpa [#allocation3], 0
    %9 = vsyncpa [#allocation5], 0
    // Predicated region
    $region2: #{neural_network_forward.6} parent=1 // pred_check
      _
    $region3: #{neural_network_forward.6} parent=1 // pred_check_branch
      %11 = sbr.rel (0) target = $region5
    $region4: #{neural_network_forward.6} parent=1 // pred_region
      _
    $region5: #{neural_network_forward.6} parent=1 // pred_fallthru
      _
    // Predicated region
    $region6: #{neural_network_forward.6} parent=1 // pred_check
      _
    $region7: #{neural_network_forward.6} parent=1 // pred_check_branch
      %13 = sbr.rel (0) target = $region9
    $region8: #{neural_network_forward.6} parent=1 // pred_region
      %15 = vsyncadd [#allocation3], 0
      %s16 = sshll.u32 %s1, 4
      %s17 = int_to_ptr.hbm [resolvable:$true] %s16
      %s18 = sshll.u32 [#allocation2], 4
      %s19 = int_to_ptr.vmem [resolvable:$true] %s18
      %24 = dma.hbm_to_vmem [thread:$0]  %s17, 16384, %s19, [#allocation3], 128, 128, 8
    $region9: #{neural_network_forward.6} parent=1 // pred_fallthru
      _
    // Predicated region
    $region10: #{neural_network_forward.6} parent=1 // pred_check
      _
    $region11: #{neural_network_forward.6} parent=1 // pred_check_branch
      %26 = sbr.rel (0) target = $region13
    $region12: #{neural_network_forward.6} parent=1 // pred_region
      %28 = vsyncadd [#allocation5], 0
      %s30 = sshll.u32 %s2, 4
      %s31 = int_to_ptr.hbm [resolvable:$true] %s30
      %s32 = sshll.u32 [#allocation4], 4
      %s33 = int_to_ptr.vmem [resolvable:$true] %s32
      %35 = dma.hbm_to_vmem [thread:$0]  %s31, 32, %s33, [#allocation5]
    $region13: #{neural_network_forward.6} parent=1 // pred_fallthru
      _
    // Predicated region
    $region14: #{neural_network_forward.6} parent=1 // pred_check
      _
    $region15: #{neural_network_forward.6} parent=1 // pred_check_branch
      %37 = sbr.rel (0) target = $region17
    $region16: #{neural_network_forward.6} parent=1 // pred_region
      %39 = dma.done [#allocation3], 16384
    $region17: #{neural_network_forward.6} parent=1 // pred_fallthru
      _
    // Predicated region
    $region18: #{neural_network_forward.6} parent=1 // pred_check
      _
    $region19: #{neural_network_forward.6} parent=1 // pred_check_branch
      %41 = sbr.rel (0) target = $region21
    $region20: #{neural_network_forward.6} parent=1 // pred_region
      %43 = dma.done [#allocation5], 32
    $region21: #{neural_network_forward.6} parent=1 // pred_fallthru
      _
    %v44 = vld [vmem:[%s0] sm:$0xff]
    %v45 = vld [vmem:[%s0 + $0x8] sm:$0xff]
    %v46 = vld [vmem:[%s0 + $0x10] sm:$0xff]
    %v47 = vld [vmem:[%s0 + $0x18] sm:$0xff]
    %v48 = vld [vmem:[%s0 + $0x20] sm:$0xff]
    %v49 = vld [vmem:[%s0 + $0x28] sm:$0xff]
    %v50 = vld [vmem:[%s0 + $0x30] sm:$0xff]
    %v51 = vld [vmem:[%s0 + $0x38] sm:$0xff]
    %v52 = vpack.c.bf16 %v44, %v44
    %v53 = vpack.c.bf16 %v45, %v45
    %v54 = vpack.c.bf16 %v46, %v46
    %v55 = vpack.c.bf16 %v47, %v47
    %v56 = vpack.c.bf16 %v48, %v48
    %v57 = vpack.c.bf16 %v49, %v49
    %v58 = vpack.c.bf16 %v50, %v50
    %v59 = vpack.c.bf16 %v51, %v51
    %v60 = vld [vmem:[#allocation2] sm:$0xff]
    %v61 = vld [vmem:[#allocation2 + $0x8] sm:$0xff]
    %v62 = vld [vmem:[#allocation2 + $0x10] sm:$0xff]
    %v63 = vld [vmem:[#allocation2 + $0x18] sm:$0xff]
    %v64 = vld [vmem:[#allocation2 + $0x20] sm:$0xff]
    %v65 = vld [vmem:[#allocation2 + $0x28] sm:$0xff]
    %v66 = vld [vmem:[#allocation2 + $0x30] sm:$0xff]
    %v67 = vld [vmem:[#allocation2 + $0x38] sm:$0xff]
    %v68 = vld [vmem:[#allocation2 + $0x40] sm:$0xff]
    %v69 = vld [vmem:[#allocation2 + $0x48] sm:$0xff]
    %v70 = vld [vmem:[#allocation2 + $0x50] sm:$0xff]
    %v71 = vld [vmem:[#allocation2 + $0x58] sm:$0xff]
    %v72 = vld [vmem:[#allocation2 + $0x60] sm:$0xff]
    %v73 = vld [vmem:[#allocation2 + $0x68] sm:$0xff]
    %v74 = vld [vmem:[#allocation2 + $0x70] sm:$0xff]
    %v75 = vld [vmem:[#allocation2 + $0x78] sm:$0xff]
    %v76 = vld [vmem:[#allocation2 + $0x80] sm:$0xff]
    %v77 = vld [vmem:[#allocation2 + $0x88] sm:$0xff]
    %v78 = vld [vmem:[#allocation2 + $0x90] sm:$0xff]
    %v79 = vld [vmem:[#allocation2 + $0x98] sm:$0xff]
    %v80 = vld [vmem:[#allocation2 + $0xa0] sm:$0xff]
    %v81 = vld [vmem:[#allocation2 + $0xa8] sm:$0xff]
    %v82 = vld [vmem:[#allocation2 + $0xb0] sm:$0xff]
    %v83 = vld [vmem:[#allocation2 + $0xb8] sm:$0xff]
    %v84 = vld [vmem:[#allocation2 + $0xc0] sm:$0xff]
    %v85 = vld [vmem:[#allocation2 + $0xc8] sm:$0xff]
    %v86 = vld [vmem:[#allocation2 + $0xd0] sm:$0xff]
    %v87 = vld [vmem:[#allocation2 + $0xd8] sm:$0xff]
    %v88 = vld [vmem:[#allocation2 + $0xe0] sm:$0xff]
    %v89 = vld [vmem:[#allocation2 + $0xe8] sm:$0xff]
    %v90 = vld [vmem:[#allocation2 + $0xf0] sm:$0xff]
    %v91 = vld [vmem:[#allocation2 + $0xf8] sm:$0xff]
    %v92 = vld [vmem:[#allocation2 + $0x100] sm:$0xff]
    %v93 = vld [vmem:[#allocation2 + $0x108] sm:$0xff]
    %v94 = vld [vmem:[#allocation2 + $0x110] sm:$0xff]
    %v95 = vld [vmem:[#allocation2 + $0x118] sm:$0xff]
    %v96 = vld [vmem:[#allocation2 + $0x120] sm:$0xff]
    %v97 = vld [vmem:[#allocation2 + $0x128] sm:$0xff]
    %v98 = vld [vmem:[#allocation2 + $0x130] sm:$0xff]
    %v99 = vld [vmem:[#allocation2 + $0x138] sm:$0xff]
    %v100 = vld [vmem:[#allocation2 + $0x140] sm:$0xff]
    %v101 = vld [vmem:[#allocation2 + $0x148] sm:$0xff]
    %v102 = vld [vmem:[#allocation2 + $0x150] sm:$0xff]
    %v103 = vld [vmem:[#allocation2 + $0x158] sm:$0xff]
    %v104 = vld [vmem:[#allocation2 + $0x160] sm:$0xff]
    %v105 = vld [vmem:[#allocation2 + $0x168] sm:$0xff]
    %v106 = vld [vmem:[#allocation2 + $0x170] sm:$0xff]
    %v107 = vld [vmem:[#allocation2 + $0x178] sm:$0xff]
    %v108 = vld [vmem:[#allocation2 + $0x180] sm:$0xff]
    %v109 = vld [vmem:[#allocation2 + $0x188] sm:$0xff]
    %v110 = vld [vmem:[#allocation2 + $0x190] sm:$0xff]
    %v111 = vld [vmem:[#allocation2 + $0x198] sm:$0xff]
    %v112 = vld [vmem:[#allocation2 + $0x1a0] sm:$0xff]
    %v113 = vld [vmem:[#allocation2 + $0x1a8] sm:$0xff]
    %v114 = vld [vmem:[#allocation2 + $0x1b0] sm:$0xff]
    %v115 = vld [vmem:[#allocation2 + $0x1b8] sm:$0xff]
    %v116 = vld [vmem:[#allocation2 + $0x1c0] sm:$0xff]
    %v117 = vld [vmem:[#allocation2 + $0x1c8] sm:$0xff]
    %v118 = vld [vmem:[#allocation2 + $0x1d0] sm:$0xff]
    %v119 = vld [vmem:[#allocation2 + $0x1d8] sm:$0xff]
    %v120 = vld [vmem:[#allocation2 + $0x1e0] sm:$0xff]
    %v121 = vld [vmem:[#allocation2 + $0x1e8] sm:$0xff]
    %v122 = vld [vmem:[#allocation2 + $0x1f0] sm:$0xff]
    %v123 = vld [vmem:[#allocation2 + $0x1f8] sm:$0xff]
    %v124 = vld [vmem:[#allocation2 + $0x200] sm:$0xff]
    %v125 = vld [vmem:[#allocation2 + $0x208] sm:$0xff]
    %v126 = vld [vmem:[#allocation2 + $0x210] sm:$0xff]
    %v127 = vld [vmem:[#allocation2 + $0x218] sm:$0xff]
    %v128 = vld [vmem:[#allocation2 + $0x220] sm:$0xff]
    %v129 = vld [vmem:[#allocation2 + $0x228] sm:$0xff]
    %v130 = vld [vmem:[#allocation2 + $0x230] sm:$0xff]
    %v131 = vld [vmem:[#allocation2 + $0x238] sm:$0xff]
    %v132 = vld [vmem:[#allocation2 + $0x240] sm:$0xff]
    %v133 = vld [vmem:[#allocation2 + $0x248] sm:$0xff]
    %v134 = vld [vmem:[#allocation2 + $0x250] sm:$0xff]
    %v135 = vld [vmem:[#allocation2 + $0x258] sm:$0xff]
    %v136 = vld [vmem:[#allocation2 + $0x260] sm:$0xff]
    %v137 = vld [vmem:[#allocation2 + $0x268] sm:$0xff]
    %v138 = vld [vmem:[#allocation2 + $0x270] sm:$0xff]
    %v139 = vld [vmem:[#allocation2 + $0x278] sm:$0xff]
    %v140 = vld [vmem:[#allocation2 + $0x280] sm:$0xff]
    %v141 = vld [vmem:[#allocation2 + $0x288] sm:$0xff]
    %v142 = vld [vmem:[#allocation2 + $0x290] sm:$0xff]
    %v143 = vld [vmem:[#allocation2 + $0x298] sm:$0xff]
    %v144 = vld [vmem:[#allocation2 + $0x2a0] sm:$0xff]
    %v145 = vld [vmem:[#allocation2 + $0x2a8] sm:$0xff]
    %v146 = vld [vmem:[#allocation2 + $0x2b0] sm:$0xff]
    %v147 = vld [vmem:[#allocation2 + $0x2b8] sm:$0xff]
    %v148 = vld [vmem:[#allocation2 + $0x2c0] sm:$0xff]
    %v149 = vld [vmem:[#allocation2 + $0x2c8] sm:$0xff]
    %v150 = vld [vmem:[#allocation2 + $0x2d0] sm:$0xff]
    %v151 = vld [vmem:[#allocation2 + $0x2d8] sm:$0xff]
    %v152 = vld [vmem:[#allocation2 + $0x2e0] sm:$0xff]
    %v153 = vld [vmem:[#allocation2 + $0x2e8] sm:$0xff]
    %v154 = vld [vmem:[#allocation2 + $0x2f0] sm:$0xff]
    %v155 = vld [vmem:[#allocation2 + $0x2f8] sm:$0xff]
    %v156 = vld [vmem:[#allocation2 + $0x300] sm:$0xff]
    %v157 = vld [vmem:[#allocation2 + $0x308] sm:$0xff]
    %v158 = vld [vmem:[#allocation2 + $0x310] sm:$0xff]
    %v159 = vld [vmem:[#allocation2 + $0x318] sm:$0xff]
    %v160 = vld [vmem:[#allocation2 + $0x320] sm:$0xff]
    %v161 = vld [vmem:[#allocation2 + $0x328] sm:$0xff]
    %v162 = vld [vmem:[#allocation2 + $0x330] sm:$0xff]
    %v163 = vld [vmem:[#allocation2 + $0x338] sm:$0xff]
    %v164 = vld [vmem:[#allocation2 + $0x340] sm:$0xff]
    %v165 = vld [vmem:[#allocation2 + $0x348] sm:$0xff]
    %v166 = vld [vmem:[#allocation2 + $0x350] sm:$0xff]
    %v167 = vld [vmem:[#allocation2 + $0x358] sm:$0xff]
    %v168 = vld [vmem:[#allocation2 + $0x360] sm:$0xff]
    %v169 = vld [vmem:[#allocation2 + $0x368] sm:$0xff]
    %v170 = vld [vmem:[#allocation2 + $0x370] sm:$0xff]
    %v171 = vld [vmem:[#allocation2 + $0x378] sm:$0xff]
    %v172 = vld [vmem:[#allocation2 + $0x380] sm:$0xff]
    %v173 = vld [vmem:[#allocation2 + $0x388] sm:$0xff]
    %v174 = vld [vmem:[#allocation2 + $0x390] sm:$0xff]
    %v175 = vld [vmem:[#allocation2 + $0x398] sm:$0xff]
    %v176 = vld [vmem:[#allocation2 + $0x3a0] sm:$0xff]
    %v177 = vld [vmem:[#allocation2 + $0x3a8] sm:$0xff]
    %v178 = vld [vmem:[#allocation2 + $0x3b0] sm:$0xff]
    %v179 = vld [vmem:[#allocation2 + $0x3b8] sm:$0xff]
    %v180 = vld [vmem:[#allocation2 + $0x3c0] sm:$0xff]
    %v181 = vld [vmem:[#allocation2 + $0x3c8] sm:$0xff]
    %v182 = vld [vmem:[#allocation2 + $0x3d0] sm:$0xff]
    %v183 = vld [vmem:[#allocation2 + $0x3d8] sm:$0xff]
    %v184 = vld [vmem:[#allocation2 + $0x3e0] sm:$0xff]
    %v185 = vld [vmem:[#allocation2 + $0x3e8] sm:$0xff]
    %v186 = vld [vmem:[#allocation2 + $0x3f0] sm:$0xff]
    %v187 = vld [vmem:[#allocation2 + $0x3f8] sm:$0xff]
    %v188 = vld [vmem:[#allocation4] sm:$0x3]
    %v190 = vperm.slane %v188, 0
    %v191 = vperm.slane %v188, 1
    %v322 = vunpack.c.l.b16 %v60
    %v323 = vunpack.c.h.b16 %v60
    %v324 = vunpack.c.l.b16 %v61
    %v325 = vunpack.c.h.b16 %v61
    %v326 = vunpack.c.l.b16 %v62
    %v327 = vunpack.c.h.b16 %v62
    %v328 = vunpack.c.l.b16 %v63
    %v329 = vunpack.c.h.b16 %v63
    %v330 = vunpack.c.l.b16 %v64
    %v331 = vunpack.c.h.b16 %v64
    %v332 = vunpack.c.l.b16 %v65
    %v333 = vunpack.c.h.b16 %v65
    %v334 = vunpack.c.l.b16 %v66
    %v335 = vunpack.c.h.b16 %v66
    %v336 = vunpack.c.l.b16 %v67
    %v337 = vunpack.c.h.b16 %v67
    %v338 = vunpack.c.l.b16 %v68
    %v339 = vunpack.c.h.b16 %v68
    %v340 = vunpack.c.l.b16 %v69
    %v341 = vunpack.c.h.b16 %v69
    %v342 = vunpack.c.l.b16 %v70
    %v343 = vunpack.c.h.b16 %v70
    %v344 = vunpack.c.l.b16 %v71
    %v345 = vunpack.c.h.b16 %v71
    %v346 = vunpack.c.l.b16 %v72
    %v347 = vunpack.c.h.b16 %v72
    %v348 = vunpack.c.l.b16 %v73
    %v349 = vunpack.c.h.b16 %v73
    %v350 = vunpack.c.l.b16 %v74
    %v351 = vunpack.c.h.b16 %v74
    %v352 = vunpack.c.l.b16 %v75
    %v353 = vunpack.c.h.b16 %v75
    %v354 = vunpack.c.l.b16 %v76
    %v355 = vunpack.c.h.b16 %v76
    %v356 = vunpack.c.l.b16 %v77
    %v357 = vunpack.c.h.b16 %v77
    %v358 = vunpack.c.l.b16 %v78
    %v359 = vunpack.c.h.b16 %v78
    %v360 = vunpack.c.l.b16 %v79
    %v361 = vunpack.c.h.b16 %v79
    %v362 = vunpack.c.l.b16 %v80
    %v363 = vunpack.c.h.b16 %v80
    %v364 = vunpack.c.l.b16 %v81
    %v365 = vunpack.c.h.b16 %v81
    %v366 = vunpack.c.l.b16 %v82
    %v367 = vunpack.c.h.b16 %v82
    %v368 = vunpack.c.l.b16 %v83
    %v369 = vunpack.c.h.b16 %v83
    %v370 = vunpack.c.l.b16 %v84
    %v371 = vunpack.c.h.b16 %v84
    %v372 = vunpack.c.l.b16 %v85
    %v373 = vunpack.c.h.b16 %v85
    %v374 = vunpack.c.l.b16 %v86
    %v375 = vunpack.c.h.b16 %v86
    %v376 = vunpack.c.l.b16 %v87
    %v377 = vunpack.c.h.b16 %v87
    %v378 = vunpack.c.l.b16 %v88
    %v379 = vunpack.c.h.b16 %v88
    %v380 = vunpack.c.l.b16 %v89
    %v381 = vunpack.c.h.b16 %v89
    %v382 = vunpack.c.l.b16 %v90
    %v383 = vunpack.c.h.b16 %v90
    %v384 = vunpack.c.l.b16 %v91
    %v385 = vunpack.c.h.b16 %v91
    %v386 = vunpack.c.l.b16 %v92
    %v387 = vunpack.c.h.b16 %v92
    %v388 = vunpack.c.l.b16 %v93
    %v389 = vunpack.c.h.b16 %v93
    %v390 = vunpack.c.l.b16 %v94
    %v391 = vunpack.c.h.b16 %v94
    %v392 = vunpack.c.l.b16 %v95
    %v393 = vunpack.c.h.b16 %v95
    %v394 = vunpack.c.l.b16 %v96
    %v395 = vunpack.c.h.b16 %v96
    %v396 = vunpack.c.l.b16 %v97
    %v397 = vunpack.c.h.b16 %v97
    %v398 = vunpack.c.l.b16 %v98
    %v399 = vunpack.c.h.b16 %v98
    %v400 = vunpack.c.l.b16 %v99
    %v401 = vunpack.c.h.b16 %v99
    %v402 = vunpack.c.l.b16 %v100
    %v403 = vunpack.c.h.b16 %v100
    %v404 = vunpack.c.l.b16 %v101
    %v405 = vunpack.c.h.b16 %v101
    %v406 = vunpack.c.l.b16 %v102
    %v407 = vunpack.c.h.b16 %v102
    %v408 = vunpack.c.l.b16 %v103
    %v409 = vunpack.c.h.b16 %v103
    %v410 = vunpack.c.l.b16 %v104
    %v411 = vunpack.c.h.b16 %v104
    %v412 = vunpack.c.l.b16 %v105
    %v413 = vunpack.c.h.b16 %v105
    %v414 = vunpack.c.l.b16 %v106
    %v415 = vunpack.c.h.b16 %v106
    %v416 = vunpack.c.l.b16 %v107
    %v417 = vunpack.c.h.b16 %v107
    %v418 = vunpack.c.l.b16 %v108
    %v419 = vunpack.c.h.b16 %v108
    %v420 = vunpack.c.l.b16 %v109
    %v421 = vunpack.c.h.b16 %v109
    %v422 = vunpack.c.l.b16 %v110
    %v423 = vunpack.c.h.b16 %v110
    %v424 = vunpack.c.l.b16 %v111
    %v425 = vunpack.c.h.b16 %v111
    %v426 = vunpack.c.l.b16 %v112
    %v427 = vunpack.c.h.b16 %v112
    %v428 = vunpack.c.l.b16 %v113
    %v429 = vunpack.c.h.b16 %v113
    %v430 = vunpack.c.l.b16 %v114
    %v431 = vunpack.c.h.b16 %v114
    %v432 = vunpack.c.l.b16 %v115
    %v433 = vunpack.c.h.b16 %v115
    %v434 = vunpack.c.l.b16 %v116
    %v435 = vunpack.c.h.b16 %v116
    %v436 = vunpack.c.l.b16 %v117
    %v437 = vunpack.c.h.b16 %v117
    %v438 = vunpack.c.l.b16 %v118
    %v439 = vunpack.c.h.b16 %v118
    %v440 = vunpack.c.l.b16 %v119
    %v441 = vunpack.c.h.b16 %v119
    %v442 = vunpack.c.l.b16 %v120
    %v443 = vunpack.c.h.b16 %v120
    %v444 = vunpack.c.l.b16 %v121
    %v445 = vunpack.c.h.b16 %v121
    %v446 = vunpack.c.l.b16 %v122
    %v447 = vunpack.c.h.b16 %v122
    %v448 = vunpack.c.l.b16 %v123
    %v449 = vunpack.c.h.b16 %v123
    %v450 = vunpack.c.l.b16 %v124
    %v451 = vunpack.c.h.b16 %v124
    %v452 = vunpack.c.l.b16 %v125
    %v453 = vunpack.c.h.b16 %v125
    %v454 = vunpack.c.l.b16 %v126
    %v455 = vunpack.c.h.b16 %v126
    %v456 = vunpack.c.l.b16 %v127
    %v457 = vunpack.c.h.b16 %v127
    %v458 = vunpack.c.l.b16 %v128
    %v459 = vunpack.c.h.b16 %v128
    %v460 = vunpack.c.l.b16 %v129
    %v461 = vunpack.c.h.b16 %v129
    %v462 = vunpack.c.l.b16 %v130
    %v463 = vunpack.c.h.b16 %v130
    %v464 = vunpack.c.l.b16 %v131
    %v465 = vunpack.c.h.b16 %v131
    %v466 = vunpack.c.l.b16 %v132
    %v467 = vunpack.c.h.b16 %v132
    %v468 = vunpack.c.l.b16 %v133
    %v469 = vunpack.c.h.b16 %v133
    %v470 = vunpack.c.l.b16 %v134
    %v471 = vunpack.c.h.b16 %v134
    %v472 = vunpack.c.l.b16 %v135
    %v473 = vunpack.c.h.b16 %v135
    %v474 = vunpack.c.l.b16 %v136
    %v475 = vunpack.c.h.b16 %v136
    %v476 = vunpack.c.l.b16 %v137
    %v477 = vunpack.c.h.b16 %v137
    %v478 = vunpack.c.l.b16 %v138
    %v479 = vunpack.c.h.b16 %v138
    %v480 = vunpack.c.l.b16 %v139
    %v481 = vunpack.c.h.b16 %v139
    %v482 = vunpack.c.l.b16 %v140
    %v483 = vunpack.c.h.b16 %v140
    %v484 = vunpack.c.l.b16 %v141
    %v485 = vunpack.c.h.b16 %v141
    %v486 = vunpack.c.l.b16 %v142
    %v487 = vunpack.c.h.b16 %v142
    %v488 = vunpack.c.l.b16 %v143
    %v489 = vunpack.c.h.b16 %v143
    %v490 = vunpack.c.l.b16 %v144
    %v491 = vunpack.c.h.b16 %v144
    %v492 = vunpack.c.l.b16 %v145
    %v493 = vunpack.c.h.b16 %v145
    %v494 = vunpack.c.l.b16 %v146
    %v495 = vunpack.c.h.b16 %v146
    %v496 = vunpack.c.l.b16 %v147
    %v497 = vunpack.c.h.b16 %v147
    %v498 = vunpack.c.l.b16 %v148
    %v499 = vunpack.c.h.b16 %v148
    %v500 = vunpack.c.l.b16 %v149
    %v501 = vunpack.c.h.b16 %v149
    %v502 = vunpack.c.l.b16 %v150
    %v503 = vunpack.c.h.b16 %v150
    %v504 = vunpack.c.l.b16 %v151
    %v505 = vunpack.c.h.b16 %v151
    %v506 = vunpack.c.l.b16 %v152
    %v507 = vunpack.c.h.b16 %v152
    %v508 = vunpack.c.l.b16 %v153
    %v509 = vunpack.c.h.b16 %v153
    %v510 = vunpack.c.l.b16 %v154
    %v511 = vunpack.c.h.b16 %v154
    %v512 = vunpack.c.l.b16 %v155
    %v513 = vunpack.c.h.b16 %v155
    %v514 = vunpack.c.l.b16 %v156
    %v515 = vunpack.c.h.b16 %v156
    %v516 = vunpack.c.l.b16 %v157
    %v517 = vunpack.c.h.b16 %v157
    %v518 = vunpack.c.l.b16 %v158
    %v519 = vunpack.c.h.b16 %v158
    %v520 = vunpack.c.l.b16 %v159
    %v521 = vunpack.c.h.b16 %v159
    %v522 = vunpack.c.l.b16 %v160
    %v523 = vunpack.c.h.b16 %v160
    %v524 = vunpack.c.l.b16 %v161
    %v525 = vunpack.c.h.b16 %v161
    %v526 = vunpack.c.l.b16 %v162
    %v527 = vunpack.c.h.b16 %v162
    %v528 = vunpack.c.l.b16 %v163
    %v529 = vunpack.c.h.b16 %v163
    %v530 = vunpack.c.l.b16 %v164
    %v531 = vunpack.c.h.b16 %v164
    %v532 = vunpack.c.l.b16 %v165
    %v533 = vunpack.c.h.b16 %v165
    %v534 = vunpack.c.l.b16 %v166
    %v535 = vunpack.c.h.b16 %v166
    %v536 = vunpack.c.l.b16 %v167
    %v537 = vunpack.c.h.b16 %v167
    %v538 = vunpack.c.l.b16 %v168
    %v539 = vunpack.c.h.b16 %v168
    %v540 = vunpack.c.l.b16 %v169
    %v541 = vunpack.c.h.b16 %v169
    %v542 = vunpack.c.l.b16 %v170
    %v543 = vunpack.c.h.b16 %v170
    %v544 = vunpack.c.l.b16 %v171
    %v545 = vunpack.c.h.b16 %v171
    %v546 = vunpack.c.l.b16 %v172
    %v547 = vunpack.c.h.b16 %v172
    %v548 = vunpack.c.l.b16 %v173
    %v549 = vunpack.c.h.b16 %v173
    %v550 = vunpack.c.l.b16 %v174
    %v551 = vunpack.c.h.b16 %v174
    %v552 = vunpack.c.l.b16 %v175
    %v553 = vunpack.c.h.b16 %v175
    %v554 = vunpack.c.l.b16 %v176
    %v555 = vunpack.c.h.b16 %v176
    %v556 = vunpack.c.l.b16 %v177
    %v557 = vunpack.c.h.b16 %v177
    %v558 = vunpack.c.l.b16 %v178
    %v559 = vunpack.c.h.b16 %v178
    %v560 = vunpack.c.l.b16 %v179
    %v561 = vunpack.c.h.b16 %v179
    %v562 = vunpack.c.l.b16 %v180
    %v563 = vunpack.c.h.b16 %v180
    %v564 = vunpack.c.l.b16 %v181
    %v565 = vunpack.c.h.b16 %v181
    %v566 = vunpack.c.l.b16 %v182
    %v567 = vunpack.c.h.b16 %v182
    %v568 = vunpack.c.l.b16 %v183
    %v569 = vunpack.c.h.b16 %v183
    %v570 = vunpack.c.l.b16 %v184
    %v571 = vunpack.c.h.b16 %v184
    %v572 = vunpack.c.l.b16 %v185
    %v573 = vunpack.c.h.b16 %v185
    %v574 = vunpack.c.l.b16 %v186
    %v575 = vunpack.c.h.b16 %v186
    %v576 = vunpack.c.l.b16 %v187
    %v577 = vunpack.c.h.b16 %v187
    %v578 = vpack.c.b16 %v324, %v322
    %v579 = vpack.c.b16 %v325, %v323
    %v580 = vpack.c.b16 %v328, %v326
    %v581 = vpack.c.b16 %v329, %v327
    %v582 = vpack.c.b16 %v332, %v330
    %v583 = vpack.c.b16 %v333, %v331
    %v584 = vpack.c.b16 %v336, %v334
    %v585 = vpack.c.b16 %v337, %v335
    %v586 = vpack.c.b16 %v340, %v338
    %v587 = vpack.c.b16 %v341, %v339
    %v588 = vpack.c.b16 %v344, %v342
    %v589 = vpack.c.b16 %v345, %v343
    %v590 = vpack.c.b16 %v348, %v346
    %v591 = vpack.c.b16 %v349, %v347
    %v592 = vpack.c.b16 %v352, %v350
    %v593 = vpack.c.b16 %v353, %v351
    %v594 = vpack.c.b16 %v356, %v354
    %v595 = vpack.c.b16 %v357, %v355
    %v596 = vpack.c.b16 %v360, %v358
    %v597 = vpack.c.b16 %v361, %v359
    %v598 = vpack.c.b16 %v364, %v362
    %v599 = vpack.c.b16 %v365, %v363
    %v600 = vpack.c.b16 %v368, %v366
    %v601 = vpack.c.b16 %v369, %v367
    %v602 = vpack.c.b16 %v372, %v370
    %v603 = vpack.c.b16 %v373, %v371
    %v604 = vpack.c.b16 %v376, %v374
    %v605 = vpack.c.b16 %v377, %v375
    %v606 = vpack.c.b16 %v380, %v378
    %v607 = vpack.c.b16 %v381, %v379
    %v608 = vpack.c.b16 %v384, %v382
    %v609 = vpack.c.b16 %v385, %v383
    %v610 = vpack.c.b16 %v388, %v386
    %v611 = vpack.c.b16 %v389, %v387
    %v612 = vpack.c.b16 %v392, %v390
    %v613 = vpack.c.b16 %v393, %v391
    %v614 = vpack.c.b16 %v396, %v394
    %v615 = vpack.c.b16 %v397, %v395
    %v616 = vpack.c.b16 %v400, %v398
    %v617 = vpack.c.b16 %v401, %v399
    %v618 = vpack.c.b16 %v404, %v402
    %v619 = vpack.c.b16 %v405, %v403
    %v620 = vpack.c.b16 %v408, %v406
    %v621 = vpack.c.b16 %v409, %v407
    %v622 = vpack.c.b16 %v412, %v410
    %v623 = vpack.c.b16 %v413, %v411
    %v624 = vpack.c.b16 %v416, %v414
    %v625 = vpack.c.b16 %v417, %v415
    %v626 = vpack.c.b16 %v420, %v418
    %v627 = vpack.c.b16 %v421, %v419
    %v628 = vpack.c.b16 %v424, %v422
    %v629 = vpack.c.b16 %v425, %v423
    %v630 = vpack.c.b16 %v428, %v426
    %v631 = vpack.c.b16 %v429, %v427
    %v632 = vpack.c.b16 %v432, %v430
    %v633 = vpack.c.b16 %v433, %v431
    %v634 = vpack.c.b16 %v436, %v434
    %v635 = vpack.c.b16 %v437, %v435
    %v636 = vpack.c.b16 %v440, %v438
    %v637 = vpack.c.b16 %v441, %v439
    %v638 = vpack.c.b16 %v444, %v442
    %v639 = vpack.c.b16 %v445, %v443
    %v640 = vpack.c.b16 %v448, %v446
    %v641 = vpack.c.b16 %v449, %v447
    %v642 = vpack.c.b16 %v452, %v450
    %v643 = vpack.c.b16 %v453, %v451
    %v644 = vpack.c.b16 %v456, %v454
    %v645 = vpack.c.b16 %v457, %v455
    %v646 = vpack.c.b16 %v460, %v458
    %v647 = vpack.c.b16 %v461, %v459
    %v648 = vpack.c.b16 %v464, %v462
    %v649 = vpack.c.b16 %v465, %v463
    %v650 = vpack.c.b16 %v468, %v466
    %v651 = vpack.c.b16 %v469, %v467
    %v652 = vpack.c.b16 %v472, %v470
    %v653 = vpack.c.b16 %v473, %v471
    %v654 = vpack.c.b16 %v476, %v474
    %v655 = vpack.c.b16 %v477, %v475
    %v656 = vpack.c.b16 %v480, %v478
    %v657 = vpack.c.b16 %v481, %v479
    %v658 = vpack.c.b16 %v484, %v482
    %v659 = vpack.c.b16 %v485, %v483
    %v660 = vpack.c.b16 %v488, %v486
    %v661 = vpack.c.b16 %v489, %v487
    %v662 = vpack.c.b16 %v492, %v490
    %v663 = vpack.c.b16 %v493, %v491
    %v664 = vpack.c.b16 %v496, %v494
    %v665 = vpack.c.b16 %v497, %v495
    %v666 = vpack.c.b16 %v500, %v498
    %v667 = vpack.c.b16 %v501, %v499
    %v668 = vpack.c.b16 %v504, %v502
    %v669 = vpack.c.b16 %v505, %v503
    %v670 = vpack.c.b16 %v508, %v506
    %v671 = vpack.c.b16 %v509, %v507
    %v672 = vpack.c.b16 %v512, %v510
    %v673 = vpack.c.b16 %v513, %v511
    %v674 = vpack.c.b16 %v516, %v514
    %v675 = vpack.c.b16 %v517, %v515
    %v676 = vpack.c.b16 %v520, %v518
    %v677 = vpack.c.b16 %v521, %v519
    %v678 = vpack.c.b16 %v524, %v522
    %v679 = vpack.c.b16 %v525, %v523
    %v680 = vpack.c.b16 %v528, %v526
    %v681 = vpack.c.b16 %v529, %v527
    %v682 = vpack.c.b16 %v532, %v530
    %v683 = vpack.c.b16 %v533, %v531
    %v684 = vpack.c.b16 %v536, %v534
    %v685 = vpack.c.b16 %v537, %v535
    %v686 = vpack.c.b16 %v540, %v538
    %v687 = vpack.c.b16 %v541, %v539
    %v688 = vpack.c.b16 %v544, %v542
    %v689 = vpack.c.b16 %v545, %v543
    %v690 = vpack.c.b16 %v548, %v546
    %v691 = vpack.c.b16 %v549, %v547
    %v692 = vpack.c.b16 %v552, %v550
    %v693 = vpack.c.b16 %v553, %v551
    %v694 = vpack.c.b16 %v556, %v554
    %v695 = vpack.c.b16 %v557, %v555
    %v696 = vpack.c.b16 %v560, %v558
    %v697 = vpack.c.b16 %v561, %v559
    %v698 = vpack.c.b16 %v564, %v562
    %v699 = vpack.c.b16 %v565, %v563
    %v700 = vpack.c.b16 %v568, %v566
    %v701 = vpack.c.b16 %v569, %v567
    %v702 = vpack.c.b16 %v572, %v570
    %v703 = vpack.c.b16 %v573, %v571
    %v704 = vpack.c.b16 %v576, %v574
    %v705 = vpack.c.b16 %v577, %v575
    %834 = vmatpush.bf16.msra.mxu0 %v592
    %835 = vmatpush.bf16.msra.mxu0 %v590
    %836 = vmatpush.bf16.msra.mxu0 %v588
    %837 = vmatpush.bf16.msra.mxu0 %v586
    %838 = vmatpush.bf16.msra.mxu0 %v584
    %839 = vmatpush.bf16.msra.mxu0 %v582
    %840 = vmatpush.bf16.msra.mxu0 %v580
    %841 = vmatpush.bf16.msra.mxu0 %v578
    %842 = vmatmul.bf16.gmra.mxu0 %v52
    %v843 = vpop.f32.mrf.mxu0
    %v844 = vadd.f32 %v190, %v843
    %v845 = vpop.f32.mrf.mxu0
    %846 = vdwg.mxu0
    %847 = vmatpush.bf16.msra.mxu0 %v608
    %848 = vmatpush.bf16.msra.mxu0 %v606
    %849 = vmatpush.bf16.msra.mxu0 %v604
    %850 = vmatpush.bf16.msra.mxu0 %v602
    %851 = vmatpush.bf16.msra.mxu0 %v600
    %852 = vmatpush.bf16.msra.mxu0 %v598
    %853 = vmatpush.bf16.msra.mxu0 %v596
    %854 = vmatpush.bf16.msra.mxu0 %v594
    %855 = vmatmul.bf16.gmra.mxu0 %v53
    %v856 = vpop.f32.mrf.mxu0
    %v857 = vadd.f32 %v844, %v856
    %v858 = vpop.f32.mrf.mxu0
    %859 = vdwg.mxu0
    %860 = vmatpush.bf16.msra.mxu0 %v624
    %861 = vmatpush.bf16.msra.mxu0 %v622
    %862 = vmatpush.bf16.msra.mxu0 %v620
    %863 = vmatpush.bf16.msra.mxu0 %v618
    %864 = vmatpush.bf16.msra.mxu0 %v616
    %865 = vmatpush.bf16.msra.mxu0 %v614
    %866 = vmatpush.bf16.msra.mxu0 %v612
    %867 = vmatpush.bf16.msra.mxu0 %v610
    %868 = vmatmul.bf16.gmra.mxu0 %v54
    %v869 = vpop.f32.mrf.mxu0
    %v870 = vadd.f32 %v857, %v869
    %v871 = vpop.f32.mrf.mxu0
    %872 = vdwg.mxu0
    %873 = vmatpush.bf16.msra.mxu0 %v640
    %874 = vmatpush.bf16.msra.mxu0 %v638
    %875 = vmatpush.bf16.msra.mxu0 %v636
    %876 = vmatpush.bf16.msra.mxu0 %v634
    %877 = vmatpush.bf16.msra.mxu0 %v632
    %878 = vmatpush.bf16.msra.mxu0 %v630
    %879 = vmatpush.bf16.msra.mxu0 %v628
    %880 = vmatpush.bf16.msra.mxu0 %v626
    %881 = vmatmul.bf16.gmra.mxu0 %v55
    %v882 = vpop.f32.mrf.mxu0
    %v883 = vadd.f32 %v870, %v882
    %v884 = vpop.f32.mrf.mxu0
    %885 = vdwg.mxu0
    %886 = vmatpush.bf16.msra.mxu0 %v656
    %887 = vmatpush.bf16.msra.mxu0 %v654
    %888 = vmatpush.bf16.msra.mxu0 %v652
    %889 = vmatpush.bf16.msra.mxu0 %v650
    %890 = vmatpush.bf16.msra.mxu0 %v648
    %891 = vmatpush.bf16.msra.mxu0 %v646
    %892 = vmatpush.bf16.msra.mxu0 %v644
    %893 = vmatpush.bf16.msra.mxu0 %v642
    %894 = vmatmul.bf16.gmra.mxu0 %v56
    %v895 = vpop.f32.mrf.mxu0
    %v896 = vadd.f32 %v883, %v895
    %v897 = vpop.f32.mrf.mxu0
    %898 = vdwg.mxu0
    %899 = vmatpush.bf16.msra.mxu0 %v672
    %900 = vmatpush.bf16.msra.mxu0 %v670
    %901 = vmatpush.bf16.msra.mxu0 %v668
    %902 = vmatpush.bf16.msra.mxu0 %v666
    %903 = vmatpush.bf16.msra.mxu0 %v664
    %904 = vmatpush.bf16.msra.mxu0 %v662
    %905 = vmatpush.bf16.msra.mxu0 %v660
    %906 = vmatpush.bf16.msra.mxu0 %v658
    %907 = vmatmul.bf16.gmra.mxu0 %v57
    %v908 = vpop.f32.mrf.mxu0
    %v909 = vadd.f32 %v896, %v908
    %v910 = vpop.f32.mrf.mxu0
    %911 = vdwg.mxu0
    %912 = vmatpush.bf16.msra.mxu0 %v688
    %913 = vmatpush.bf16.msra.mxu0 %v686
    %914 = vmatpush.bf16.msra.mxu0 %v684
    %915 = vmatpush.bf16.msra.mxu0 %v682
    %916 = vmatpush.bf16.msra.mxu0 %v680
    %917 = vmatpush.bf16.msra.mxu0 %v678
    %918 = vmatpush.bf16.msra.mxu0 %v676
    %919 = vmatpush.bf16.msra.mxu0 %v674
    %920 = vmatmul.bf16.gmra.mxu0 %v58
    %v921 = vpop.f32.mrf.mxu0
    %v922 = vadd.f32 %v909, %v921
    %v923 = vpop.f32.mrf.mxu0
    %924 = vdwg.mxu0
    %925 = vmatpush.bf16.msra.mxu0 %v704
    %926 = vmatpush.bf16.msra.mxu0 %v702
    %927 = vmatpush.bf16.msra.mxu0 %v700
    %928 = vmatpush.bf16.msra.mxu0 %v698
    %929 = vmatpush.bf16.msra.mxu0 %v696
    %930 = vmatpush.bf16.msra.mxu0 %v694
    %931 = vmatpush.bf16.msra.mxu0 %v692
    %932 = vmatpush.bf16.msra.mxu0 %v690
    %933 = vmatmul.bf16.gmra.mxu0 %v59
    %v934 = vpop.f32.mrf.mxu0
    %v935 = vadd.f32 %v922, %v934
    %v936 = vpop.f32.mrf.mxu0
    %937 = vdwg.mxu0
    %938 = vmatpush.bf16.msra.mxu0 %v593
    %939 = vmatpush.bf16.msra.mxu0 %v591
    %940 = vmatpush.bf16.msra.mxu0 %v589
    %941 = vmatpush.bf16.msra.mxu0 %v587
    %942 = vmatpush.bf16.msra.mxu0 %v585
    %943 = vmatpush.bf16.msra.mxu0 %v583
    %944 = vmatpush.bf16.msra.mxu0 %v581
    %945 = vmatpush.bf16.msra.mxu0 %v579
    %946 = vmatmul.bf16.gmra.mxu0 %v52
    %v947 = vpop.f32.mrf.mxu0
    %v948 = vadd.f32 %v191, %v947
    %v949 = vpop.f32.mrf.mxu0
    %950 = vdwg.mxu0
    %951 = vmatpush.bf16.msra.mxu0 %v609
    %952 = vmatpush.bf16.msra.mxu0 %v607
    %953 = vmatpush.bf16.msra.mxu0 %v605
    %954 = vmatpush.bf16.msra.mxu0 %v603
    %955 = vmatpush.bf16.msra.mxu0 %v601
    %956 = vmatpush.bf16.msra.mxu0 %v599
    %957 = vmatpush.bf16.msra.mxu0 %v597
    %958 = vmatpush.bf16.msra.mxu0 %v595
    %959 = vmatmul.bf16.gmra.mxu0 %v53
    %v960 = vpop.f32.mrf.mxu0
    %v961 = vadd.f32 %v948, %v960
    %v962 = vpop.f32.mrf.mxu0
    %963 = vdwg.mxu0
    %964 = vmatpush.bf16.msra.mxu0 %v625
    %965 = vmatpush.bf16.msra.mxu0 %v623
    %966 = vmatpush.bf16.msra.mxu0 %v621
    %967 = vmatpush.bf16.msra.mxu0 %v619
    %968 = vmatpush.bf16.msra.mxu0 %v617
    %969 = vmatpush.bf16.msra.mxu0 %v615
    %970 = vmatpush.bf16.msra.mxu0 %v613
    %971 = vmatpush.bf16.msra.mxu0 %v611
    %972 = vmatmul.bf16.gmra.mxu0 %v54
    %v973 = vpop.f32.mrf.mxu0
    %v974 = vadd.f32 %v961, %v973
    %v975 = vpop.f32.mrf.mxu0
    %976 = vdwg.mxu0
    %977 = vmatpush.bf16.msra.mxu0 %v641
    %978 = vmatpush.bf16.msra.mxu0 %v639
    %979 = vmatpush.bf16.msra.mxu0 %v637
    %980 = vmatpush.bf16.msra.mxu0 %v635
    %981 = vmatpush.bf16.msra.mxu0 %v633
    %982 = vmatpush.bf16.msra.mxu0 %v631
    %983 = vmatpush.bf16.msra.mxu0 %v629
    %984 = vmatpush.bf16.msra.mxu0 %v627
    %985 = vmatmul.bf16.gmra.mxu0 %v55
    %v986 = vpop.f32.mrf.mxu0
    %v987 = vadd.f32 %v974, %v986
    %v988 = vpop.f32.mrf.mxu0
    %989 = vdwg.mxu0
    %990 = vmatpush.bf16.msra.mxu0 %v657
    %991 = vmatpush.bf16.msra.mxu0 %v655
    %992 = vmatpush.bf16.msra.mxu0 %v653
    %993 = vmatpush.bf16.msra.mxu0 %v651
    %994 = vmatpush.bf16.msra.mxu0 %v649
    %995 = vmatpush.bf16.msra.mxu0 %v647
    %996 = vmatpush.bf16.msra.mxu0 %v645
    %997 = vmatpush.bf16.msra.mxu0 %v643
    %998 = vmatmul.bf16.gmra.mxu0 %v56
    %v999 = vpop.f32.mrf.mxu0
    %v1000 = vadd.f32 %v987, %v999
    %v1001 = vpop.f32.mrf.mxu0
    %1002 = vdwg.mxu0
    %1003 = vmatpush.bf16.msra.mxu0 %v673
    %1004 = vmatpush.bf16.msra.mxu0 %v671
    %1005 = vmatpush.bf16.msra.mxu0 %v669
    %1006 = vmatpush.bf16.msra.mxu0 %v667
    %1007 = vmatpush.bf16.msra.mxu0 %v665
    %1008 = vmatpush.bf16.msra.mxu0 %v663
    %1009 = vmatpush.bf16.msra.mxu0 %v661
    %1010 = vmatpush.bf16.msra.mxu0 %v659
    %1011 = vmatmul.bf16.gmra.mxu0 %v57
    %v1012 = vpop.f32.mrf.mxu0
    %v1013 = vadd.f32 %v1000, %v1012
    %v1014 = vpop.f32.mrf.mxu0
    %1015 = vdwg.mxu0
    %1016 = vmatpush.bf16.msra.mxu0 %v689
    %1017 = vmatpush.bf16.msra.mxu0 %v687
    %1018 = vmatpush.bf16.msra.mxu0 %v685
    %1019 = vmatpush.bf16.msra.mxu0 %v683
    %1020 = vmatpush.bf16.msra.mxu0 %v681
    %1021 = vmatpush.bf16.msra.mxu0 %v679
    %1022 = vmatpush.bf16.msra.mxu0 %v677
    %1023 = vmatpush.bf16.msra.mxu0 %v675
    %1024 = vmatmul.bf16.gmra.mxu0 %v58
    %v1025 = vpop.f32.mrf.mxu0
    %v1026 = vadd.f32 %v1013, %v1025
    %v1027 = vpop.f32.mrf.mxu0
    %1028 = vdwg.mxu0
    %1029 = vmatpush.bf16.msra.mxu0 %v705
    %1030 = vmatpush.bf16.msra.mxu0 %v703
    %1031 = vmatpush.bf16.msra.mxu0 %v701
    %1032 = vmatpush.bf16.msra.mxu0 %v699
    %1033 = vmatpush.bf16.msra.mxu0 %v697
    %1034 = vmatpush.bf16.msra.mxu0 %v695
    %1035 = vmatpush.bf16.msra.mxu0 %v693
    %1036 = vmatpush.bf16.msra.mxu0 %v691
    %1037 = vmatmul.bf16.gmra.mxu0 %v59
    %v1038 = vpop.f32.mrf.mxu0
    %v1039 = vadd.f32 %v1026, %v1038
    %v1040 = vpop.f32.mrf.mxu0
    %1041 = vdwg.mxu0
    %v1042 = vmax.f32 %v935, 0.0
    %v1043 = vmax.f32 %v1039, 0.0
    %1044 = vst [vmem:[%s3] sm:$0xff] %v1042
    %1045 = vst [vmem:[%s3 + $0x8] sm:$0xff] %v1043
    // Predicated region
    $region22: #{neural_network_forward.6} parent=1 // pred_check
      _
    $region23: #{neural_network_forward.6} parent=1 // pred_check_branch
      %1047 = sbr.rel (0) target = $region25
    $region24: #{neural_network_forward.6} parent=1 // pred_region
      _
    $region25: #{neural_network_forward.6} parent=1 // pred_fallthru
      _
    // Predicated region
    $region26: #{neural_network_forward.6} parent=1 // pred_check
      _
    $region27: #{neural_network_forward.6} parent=1 // pred_check_branch
      %1049 = sbr.rel (0) target = $region29
    $region28: #{neural_network_forward.6} parent=1 // pred_region
      _
    $region29: #{neural_network_forward.6} parent=1 // pred_fallthru
      _
    %1050 = vsyncpa [#allocation3], 1
    %1051 = vsyncpa [#allocation5], 1

// kernel: neural_network_forward.4
$region0: #{neural_network_forward.4}
  #allocation0 [shape = 'u32[]', space=smem, size = 0x4, offset = 0x4, fixed_abs, tag = 'smem constant byte address 0x4 - core index']
  #allocation1 [shape = 'u32[72,128]{1,0:T(1,128)}', space=vmem, size = 0x9000, scoped, tag = 'internal scratch']
  %s0 = inlined_call_operand.vmem [shape: f32[8,512], index: 0, kind: input, shape index: {}]
  %s1 = inlined_call_operand.hbm [shape: bf16[512,1024], index: 1, kind: input, shape index: {}]
  %s2 = inlined_call_operand.hbm [shape: f32[1,1024], index: 2, kind: input, shape index: {}]
  %s3 = inlined_call_operand.vmem [shape: f32[8,1024], index: 3, kind: output, shape index: {}]
  %s4 = sld [smem:[#allocation0]]
  $region30: #{neural_network_forward.4} parent=0
    _
  %s6 = ssub.s32 1, %s4
  %s7 = scalar_select 0, %s6, %s4
  $region1: #{neural_network_forward.4} parent=0
    #allocation2 [shape = 'u8[1048576]{0}', space=vmem, size = 0x100000, scoped, tag = 'input window, operand 1, single buffered']
    #allocation3 [shape = 's32[1]{0}', space=sflag, size = 0x4, scoped, tag = 'scoped memory for neural_network_forward.4']
    #allocation4 [shape = 'u8[4096]{0}', space=vmem, size = 0x1000, scoped, tag = 'input window, operand 2, single buffered']
    #allocation5 [shape = 's32[1]{0}', space=sflag, size = 0x4, scoped, tag = 'scoped memory for neural_network_forward.4']
    %8 = vsyncpa [#allocation3], 0
    %9 = vsyncpa [#allocation5], 0
    // Predicated region
    $region2: #{neural_network_forward.4} parent=1 // pred_check
      _
    $region3: #{neural_network_forward.4} parent=1 // pred_check_branch
      %11 = sbr.rel (0) target = $region5
    $region4: #{neural_network_forward.4} parent=1 // pred_region
      _
    $region5: #{neural_network_forward.4} parent=1 // pred_fallthru
      _
    // Predicated region
    $region6: #{neural_network_forward.4} parent=1 // pred_check
      _
    $region7: #{neural_network_forward.4} parent=1 // pred_check_branch
      %13 = sbr.rel (0) target = $region9
    $region8: #{neural_network_forward.4} parent=1 // pred_region
      %15 = vsyncadd [#allocation3], 0
      %s16 = sshll.u32 %s1, 4
      %s17 = int_to_ptr.hbm [resolvable:$true] %s16
      %s18 = sshll.u32 [#allocation2], 4
      %s19 = int_to_ptr.vmem [resolvable:$true] %s18
      %24 = dma.hbm_to_vmem [thread:$0]  %s17, 32768, %s19, [#allocation3], 512, 512, 32
    $region9: #{neural_network_forward.4} parent=1 // pred_fallthru
      _
    // Predicated region
    $region10: #{neural_network_forward.4} parent=1 // pred_check
      _
    $region11: #{neural_network_forward.4} parent=1 // pred_check_branch
      %26 = sbr.rel (0) target = $region13
    $region12: #{neural_network_forward.4} parent=1 // pred_region
      %28 = vsyncadd [#allocation5], 0
      %s30 = sshll.u32 %s2, 4
      %s31 = int_to_ptr.hbm [resolvable:$true] %s30
      %s32 = sshll.u32 [#allocation4], 4
      %s33 = int_to_ptr.vmem [resolvable:$true] %s32
      %35 = dma.hbm_to_vmem [thread:$0]  %s31, 128, %s33, [#allocation5]
    $region13: #{neural_network_forward.4} parent=1 // pred_fallthru
      _
    // Predicated region
    $region14: #{neural_network_forward.4} parent=1 // pred_check
      _
    $region15: #{neural_network_forward.4} parent=1 // pred_check_branch
      %37 = sbr.rel (0) target = $region17
    $region16: #{neural_network_forward.4} parent=1 // pred_region
      %39 = dma.done [#allocation3], 32768
    $region17: #{neural_network_forward.4} parent=1 // pred_fallthru
      _
    // Predicated region
    $region18: #{neural_network_forward.4} parent=1 // pred_check
      _
    $region19: #{neural_network_forward.4} parent=1 // pred_check_branch
      %41 = sbr.rel (0) target = $region21
    $region20: #{neural_network_forward.4} parent=1 // pred_region
      %43 = dma.done [#allocation5], 128
    $region21: #{neural_network_forward.4} parent=1 // pred_fallthru
      _
    %v44 = vld [vmem:[%s0] sm:$0xff]
    %v45 = vld [vmem:[%s0 + $0x8] sm:$0xff]
    %v46 = vld [vmem:[%s0 + $0x10] sm:$0xff]
    %v47 = vld [vmem:[%s0 + $0x18] sm:$0xff]
    %v48 = vpack.c.bf16 %v44, %v44
    %v49 = vpack.c.bf16 %v45, %v45
    %v50 = vpack.c.bf16 %v46, %v46
    %v51 = vpack.c.bf16 %v47, %v47
    %v52 = vld [vmem:[#allocation2] sm:$0xff]
    %v53 = vld [vmem:[#allocation2 + $0x8] sm:$0xff]
    %v54 = vld [vmem:[#allocation2 + $0x10] sm:$0xff]
    %v55 = vld [vmem:[#allocation2 + $0x18] sm:$0xff]
    %v56 = vld [vmem:[#allocation2 + $0x20] sm:$0xff]
    %v57 = vld [vmem:[#allocation2 + $0x28] sm:$0xff]
    %v58 = vld [vmem:[#allocation2 + $0x30] sm:$0xff]
    %v59 = vld [vmem:[#allocation2 + $0x38] sm:$0xff]
    %v60 = vld [vmem:[#allocation2 + $0x40] sm:$0xff]
    %v61 = vld [vmem:[#allocation2 + $0x48] sm:$0xff]
    %v62 = vld [vmem:[#allocation2 + $0x50] sm:$0xff]
    %v63 = vld [vmem:[#allocation2 + $0x58] sm:$0xff]
    %v64 = vld [vmem:[#allocation2 + $0x60] sm:$0xff]
    %v65 = vld [vmem:[#allocation2 + $0x68] sm:$0xff]
    %v66 = vld [vmem:[#allocation2 + $0x70] sm:$0xff]
    %v67 = vld [vmem:[#allocation2 + $0x78] sm:$0xff]
    %v68 = vld [vmem:[#allocation2 + $0x80] sm:$0xff]
    %v69 = vld [vmem:[#allocation2 + $0x88] sm:$0xff]
    %v70 = vld [vmem:[#allocation2 + $0x90] sm:$0xff]
    %v71 = vld [vmem:[#allocation2 + $0x98] sm:$0xff]
    %v72 = vld [vmem:[#allocation2 + $0xa0] sm:$0xff]
    %v73 = vld [vmem:[#allocation2 + $0xa8] sm:$0xff]
    %v74 = vld [vmem:[#allocation2 + $0xb0] sm:$0xff]
    %v75 = vld [vmem:[#allocation2 + $0xb8] sm:$0xff]
    %v76 = vld [vmem:[#allocation2 + $0xc0] sm:$0xff]
    %v77 = vld [vmem:[#allocation2 + $0xc8] sm:$0xff]
    %v78 = vld [vmem:[#allocation2 + $0xd0] sm:$0xff]
    %v79 = vld [vmem:[#allocation2 + $0xd8] sm:$0xff]
    %v80 = vld [vmem:[#allocation2 + $0xe0] sm:$0xff]
    %v81 = vld [vmem:[#allocation2 + $0xe8] sm:$0xff]
    %v82 = vld [vmem:[#allocation2 + $0xf0] sm:$0xff]
    %v83 = vld [vmem:[#allocation2 + $0xf8] sm:$0xff]
    %v84 = vld [vmem:[#allocation2 + $0x100] sm:$0xff]
    %v85 = vld [vmem:[#allocation2 + $0x108] sm:$0xff]
    %v86 = vld [vmem:[#allocation2 + $0x110] sm:$0xff]
    %v87 = vld [vmem:[#allocation2 + $0x118] sm:$0xff]
    %v88 = vld [vmem:[#allocation2 + $0x120] sm:$0xff]
    %v89 = vld [vmem:[#allocation2 + $0x128] sm:$0xff]
    %v90 = vld [vmem:[#allocation2 + $0x130] sm:$0xff]
    %v91 = vld [vmem:[#allocation2 + $0x138] sm:$0xff]
    %v92 = vld [vmem:[#allocation2 + $0x140] sm:$0xff]
    %v93 = vld [vmem:[#allocation2 + $0x148] sm:$0xff]
    %v94 = vld [vmem:[#allocation2 + $0x150] sm:$0xff]
    %v95 = vld [vmem:[#allocation2 + $0x158] sm:$0xff]
    %v96 = vld [vmem:[#allocation2 + $0x160] sm:$0xff]
    %v97 = vld [vmem:[#allocation2 + $0x168] sm:$0xff]
    %v98 = vld [vmem:[#allocation2 + $0x170] sm:$0xff]
    %v99 = vld [vmem:[#allocation2 + $0x178] sm:$0xff]
    %v100 = vld [vmem:[#allocation2 + $0x180] sm:$0xff]
    %v101 = vld [vmem:[#allocation2 + $0x188] sm:$0xff]
    %v102 = vld [vmem:[#allocation2 + $0x190] sm:$0xff]
    %v103 = vld [vmem:[#allocation2 + $0x198] sm:$0xff]
    %v104 = vld [vmem:[#allocation2 + $0x1a0] sm:$0xff]
    %v105 = vld [vmem:[#allocation2 + $0x1a8] sm:$0xff]
    %v106 = vld [vmem:[#allocation2 + $0x1b0] sm:$0xff]
    %v107 = vld [vmem:[#allocation2 + $0x1b8] sm:$0xff]
    %v108 = vld [vmem:[#allocation2 + $0x1c0] sm:$0xff]
    %v109 = vld [vmem:[#allocation2 + $0x1c8] sm:$0xff]
    %v110 = vld [vmem:[#allocation2 + $0x1d0] sm:$0xff]
    %v111 = vld [vmem:[#allocation2 + $0x1d8] sm:$0xff]
    %v112 = vld [vmem:[#allocation2 + $0x1e0] sm:$0xff]
    %v113 = vld [vmem:[#allocation2 + $0x1e8] sm:$0xff]
    %v114 = vld [vmem:[#allocation2 + $0x1f0] sm:$0xff]
    %v115 = vld [vmem:[#allocation2 + $0x1f8] sm:$0xff]
    %v116 = vld [vmem:[#allocation2 + $0x200] sm:$0xff]
    %v117 = vld [vmem:[#allocation2 + $0x208] sm:$0xff]
    %v118 = vld [vmem:[#allocation2 + $0x210] sm:$0xff]
    %v119 = vld [vmem:[#allocation2 + $0x218] sm:$0xff]
    %v120 = vld [vmem:[#allocation2 + $0x220] sm:$0xff]
    %v121 = vld [vmem:[#allocation2 + $0x228] sm:$0xff]
    %v122 = vld [vmem:[#allocation2 + $0x230] sm:$0xff]
    %v123 = vld [vmem:[#allocation2 + $0x238] sm:$0xff]
    %v124 = vld [vmem:[#allocation2 + $0x240] sm:$0xff]
    %v125 = vld [vmem:[#allocation2 + $0x248] sm:$0xff]
    %v126 = vld [vmem:[#allocation2 + $0x250] sm:$0xff]
    %v127 = vld [vmem:[#allocation2 + $0x258] sm:$0xff]
    %v128 = vld [vmem:[#allocation2 + $0x260] sm:$0xff]
    %v129 = vld [vmem:[#allocation2 + $0x268] sm:$0xff]
    %v130 = vld [vmem:[#allocation2 + $0x270] sm:$0xff]
    %v131 = vld [vmem:[#allocation2 + $0x278] sm:$0xff]
    %v132 = vld [vmem:[#allocation2 + $0x280] sm:$0xff]
    %v133 = vld [vmem:[#allocation2 + $0x288] sm:$0xff]
    %v134 = vld [vmem:[#allocation2 + $0x290] sm:$0xff]
    %v135 = vld [vmem:[#allocation2 + $0x298] sm:$0xff]
    %v136 = vld [vmem:[#allocation2 + $0x2a0] sm:$0xff]
    %v137 = vld [vmem:[#allocation2 + $0x2a8] sm:$0xff]
    %v138 = vld [vmem:[#allocation2 + $0x2b0] sm:$0xff]
    %v139 = vld [vmem:[#allocation2 + $0x2b8] sm:$0xff]
    %v140 = vld [vmem:[#allocation2 + $0x2c0] sm:$0xff]
    %v141 = vld [vmem:[#allocation2 + $0x2c8] sm:$0xff]
    %v142 = vld [vmem:[#allocation2 + $0x2d0] sm:$0xff]
    %v143 = vld [vmem:[#allocation2 + $0x2d8] sm:$0xff]
    %v144 = vld [vmem:[#allocation2 + $0x2e0] sm:$0xff]
    %v145 = vld [vmem:[#allocation2 + $0x2e8] sm:$0xff]
    %v146 = vld [vmem:[#allocation2 + $0x2f0] sm:$0xff]
    %v147 = vld [vmem:[#allocation2 + $0x2f8] sm:$0xff]
    %v148 = vld [vmem:[#allocation2 + $0x300] sm:$0xff]
    %v149 = vld [vmem:[#allocation2 + $0x308] sm:$0xff]
    %v150 = vld [vmem:[#allocation2 + $0x310] sm:$0xff]
    %v151 = vld [vmem:[#allocation2 + $0x318] sm:$0xff]
    %v152 = vld [vmem:[#allocation2 + $0x320] sm:$0xff]
    %v153 = vld [vmem:[#allocation2 + $0x328] sm:$0xff]
    %v154 = vld [vmem:[#allocation2 + $0x330] sm:$0xff]
    %v155 = vld [vmem:[#allocation2 + $0x338] sm:$0xff]
    %v156 = vld [vmem:[#allocation2 + $0x340] sm:$0xff]
    %v157 = vld [vmem:[#allocation2 + $0x348] sm:$0xff]
    %v158 = vld [vmem:[#allocation2 + $0x350] sm:$0xff]
    %v159 = vld [vmem:[#allocation2 + $0x358] sm:$0xff]
    %v160 = vld [vmem:[#allocation2 + $0x360] sm:$0xff]
    %v161 = vld [vmem:[#allocation2 + $0x368] sm:$0xff]
    %v162 = vld [vmem:[#allocation2 + $0x370] sm:$0xff]
    %v163 = vld [vmem:[#allocation2 + $0x378] sm:$0xff]
    %v164 = vld [vmem:[#allocation2 + $0x380] sm:$0xff]
    %v165 = vld [vmem:[#allocation2 + $0x388] sm:$0xff]
    %v166 = vld [vmem:[#allocation2 + $0x390] sm:$0xff]
    %v167 = vld [vmem:[#allocation2 + $0x398] sm:$0xff]
    %v168 = vld [vmem:[#allocation2 + $0x3a0] sm:$0xff]
    %v169 = vld [vmem:[#allocation2 + $0x3a8] sm:$0xff]
    %v170 = vld [vmem:[#allocation2 + $0x3b0] sm:$0xff]
    %v171 = vld [vmem:[#allocation2 + $0x3b8] sm:$0xff]
    %v172 = vld [vmem:[#allocation2 + $0x3c0] sm:$0xff]
    %v173 = vld [vmem:[#allocation2 + $0x3c8] sm:$0xff]
    %v174 = vld [vmem:[#allocation2 + $0x3d0] sm:$0xff]
    %v175 = vld [vmem:[#allocation2 + $0x3d8] sm:$0xff]
    %v176 = vld [vmem:[#allocation2 + $0x3e0] sm:$0xff]
    %v177 = vld [vmem:[#allocation2 + $0x3e8] sm:$0xff]
    %v178 = vld [vmem:[#allocation2 + $0x3f0] sm:$0xff]
    %v179 = vld [vmem:[#allocation2 + $0x3f8] sm:$0xff]
    %v180 = vld [vmem:[#allocation2 + $0x400] sm:$0xff]
    %v181 = vld [vmem:[#allocation2 + $0x408] sm:$0xff]
    %v182 = vld [vmem:[#allocation2 + $0x410] sm:$0xff]
    %v183 = vld [vmem:[#allocation2 + $0x418] sm:$0xff]
    %v184 = vld [vmem:[#allocation2 + $0x420] sm:$0xff]
    %v185 = vld [vmem:[#allocation2 + $0x428] sm:$0xff]
    %v186 = vld [vmem:[#allocation2 + $0x430] sm:$0xff]
    %v187 = vld [vmem:[#allocation2 + $0x438] sm:$0xff]
    %v188 = vld [vmem:[#allocation2 + $0x440] sm:$0xff]
    %v189 = vld [vmem:[#allocation2 + $0x448] sm:$0xff]
    %v190 = vld [vmem:[#allocation2 + $0x450] sm:$0xff]
    %v191 = vld [vmem:[#allocation2 + $0x458] sm:$0xff]
    %v192 = vld [vmem:[#allocation2 + $0x460] sm:$0xff]
    %v193 = vld [vmem:[#allocation2 + $0x468] sm:$0xff]
    %v194 = vld [vmem:[#allocation2 + $0x470] sm:$0xff]
    %v195 = vld [vmem:[#allocation2 + $0x478] sm:$0xff]
    %v196 = vld [vmem:[#allocation2 + $0x480] sm:$0xff]
    %v197 = vld [vmem:[#allocation2 + $0x488] sm:$0xff]
    %v198 = vld [vmem:[#allocation2 + $0x490] sm:$0xff]
    %v199 = vld [vmem:[#allocation2 + $0x498] sm:$0xff]
    %v200 = vld [vmem:[#allocation2 + $0x4a0] sm:$0xff]
    %v201 = vld [vmem:[#allocation2 + $0x4a8] sm:$0xff]
    %v202 = vld [vmem:[#allocation2 + $0x4b0] sm:$0xff]
    %v203 = vld [vmem:[#allocation2 + $0x4b8] sm:$0xff]
    %v204 = vld [vmem:[#allocation2 + $0x4c0] sm:$0xff]
    %v205 = vld [vmem:[#allocation2 + $0x4c8] sm:$0xff]
    %v206 = vld [vmem:[#allocation2 + $0x4d0] sm:$0xff]
    %v207 = vld [vmem:[#allocation2 + $0x4d8] sm:$0xff]
    %v208 = vld [vmem:[#allocation2 + $0x4e0] sm:$0xff]
    %v209 = vld [vmem:[#allocation2 + $0x4e8] sm:$0xff]
    %v210 = vld [vmem:[#allocation2 + $0x4f0] sm:$0xff]
    %v211 = vld [vmem:[#allocation2 + $0x4f8] sm:$0xff]
    %v212 = vld [vmem:[#allocation2 + $0x500] sm:$0xff]
    %v213 = vld [vmem:[#allocation2 + $0x508] sm:$0xff]
    %v214 = vld [vmem:[#allocation2 + $0x510] sm:$0xff]
    %v215 = vld [vmem:[#allocation2 + $0x518] sm:$0xff]
    %v216 = vld [vmem:[#allocation2 + $0x520] sm:$0xff]
    %v217 = vld [vmem:[#allocation2 + $0x528] sm:$0xff]
    %v218 = vld [vmem:[#allocation2 + $0x530] sm:$0xff]
    %v219 = vld [vmem:[#allocation2 + $0x538] sm:$0xff]
    %v220 = vld [vmem:[#allocation2 + $0x540] sm:$0xff]
    %v221 = vld [vmem:[#allocation2 + $0x548] sm:$0xff]
    %v222 = vld [vmem:[#allocation2 + $0x550] sm:$0xff]
    %v223 = vld [vmem:[#allocation2 + $0x558] sm:$0xff]
    %v224 = vld [vmem:[#allocation2 + $0x560] sm:$0xff]
    %v225 = vld [vmem:[#allocation2 + $0x568] sm:$0xff]
    %v226 = vld [vmem:[#allocation2 + $0x570] sm:$0xff]
    %v227 = vld [vmem:[#allocation2 + $0x578] sm:$0xff]
    %v228 = vld [vmem:[#allocation2 + $0x580] sm:$0xff]
    %v229 = vld [vmem:[#allocation2 + $0x588] sm:$0xff]
    %v230 = vld [vmem:[#allocation2 + $0x590] sm:$0xff]
    %v231 = vld [vmem:[#allocation2 + $0x598] sm:$0xff]
    %v232 = vld [vmem:[#allocation2 + $0x5a0] sm:$0xff]
    %v233 = vld [vmem:[#allocation2 + $0x5a8] sm:$0xff]
    %v234 = vld [vmem:[#allocation2 + $0x5b0] sm:$0xff]
    %v235 = vld [vmem:[#allocation2 + $0x5b8] sm:$0xff]
    %v236 = vld [vmem:[#allocation2 + $0x5c0] sm:$0xff]
    %v237 = vld [vmem:[#allocation2 + $0x5c8] sm:$0xff]
    %v238 = vld [vmem:[#allocation2 + $0x5d0] sm:$0xff]
    %v239 = vld [vmem:[#allocation2 + $0x5d8] sm:$0xff]
    %v240 = vld [vmem:[#allocation2 + $0x5e0] sm:$0xff]
    %v241 = vld [vmem:[#allocation2 + $0x5e8] sm:$0xff]
    %v242 = vld [vmem:[#allocation2 + $0x5f0] sm:$0xff]
    %v243 = vld [vmem:[#allocation2 + $0x5f8] sm:$0xff]
    %v244 = vld [vmem:[#allocation2 + $0x600] sm:$0xff]
    %v245 = vld [vmem:[#allocation2 + $0x608] sm:$0xff]
    %v246 = vld [vmem:[#allocation2 + $0x610] sm:$0xff]
    %v247 = vld [vmem:[#allocation2 + $0x618] sm:$0xff]
    %v248 = vld [vmem:[#allocation2 + $0x620] sm:$0xff]
    %v249 = vld [vmem:[#allocation2 + $0x628] sm:$0xff]
    %v250 = vld [vmem:[#allocation2 + $0x630] sm:$0xff]
    %v251 = vld [vmem:[#allocation2 + $0x638] sm:$0xff]
    %v252 = vld [vmem:[#allocation2 + $0x640] sm:$0xff]
    %v253 = vld [vmem:[#allocation2 + $0x648] sm:$0xff]
    %v254 = vld [vmem:[#allocation2 + $0x650] sm:$0xff]
    %v255 = vld [vmem:[#allocation2 + $0x658] sm:$0xff]
    %v256 = vld [vmem:[#allocation2 + $0x660] sm:$0xff]
    %v257 = vld [vmem:[#allocation2 + $0x668] sm:$0xff]
    %v258 = vld [vmem:[#allocation2 + $0x670] sm:$0xff]
    %v259 = vld [vmem:[#allocation2 + $0x678] sm:$0xff]
    %v260 = vld [vmem:[#allocation2 + $0x680] sm:$0xff]
    %v261 = vld [vmem:[#allocation2 + $0x688] sm:$0xff]
    %v262 = vld [vmem:[#allocation2 + $0x690] sm:$0xff]
    %v263 = vld [vmem:[#allocation2 + $0x698] sm:$0xff]
    %v264 = vld [vmem:[#allocation2 + $0x6a0] sm:$0xff]
    %v265 = vld [vmem:[#allocation2 + $0x6a8] sm:$0xff]
    %v266 = vld [vmem:[#allocation2 + $0x6b0] sm:$0xff]
    %v267 = vld [vmem:[#allocation2 + $0x6b8] sm:$0xff]
    %v268 = vld [vmem:[#allocation2 + $0x6c0] sm:$0xff]
    %v269 = vld [vmem:[#allocation2 + $0x6c8] sm:$0xff]
    %v270 = vld [vmem:[#allocation2 + $0x6d0] sm:$0xff]
    %v271 = vld [vmem:[#allocation2 + $0x6d8] sm:$0xff]
    %v272 = vld [vmem:[#allocation2 + $0x6e0] sm:$0xff]
    %v273 = vld [vmem:[#allocation2 + $0x6e8] sm:$0xff]
    %v274 = vld [vmem:[#allocation2 + $0x6f0] sm:$0xff]
    %v275 = vld [vmem:[#allocation2 + $0x6f8] sm:$0xff]
    %v276 = vld [vmem:[#allocation2 + $0x700] sm:$0xff]
    %v277 = vld [vmem:[#allocation2 + $0x708] sm:$0xff]
    %v278 = vld [vmem:[#allocation2 + $0x710] sm:$0xff]
    %v279 = vld [vmem:[#allocation2 + $0x718] sm:$0xff]
    %v280 = vld [vmem:[#allocation2 + $0x720] sm:$0xff]
    %v281 = vld [vmem:[#allocation2 + $0x728] sm:$0xff]
    %v282 = vld [vmem:[#allocation2 + $0x730] sm:$0xff]
    %v283 = vld [vmem:[#allocation2 + $0x738] sm:$0xff]
    %v284 = vld [vmem:[#allocation2 + $0x740] sm:$0xff]
    %v285 = vld [vmem:[#allocation2 + $0x748] sm:$0xff]
    %v286 = vld [vmem:[#allocation2 + $0x750] sm:$0xff]
    %v287 = vld [vmem:[#allocation2 + $0x758] sm:$0xff]
    %v288 = vld [vmem:[#allocation2 + $0x760] sm:$0xff]
    %v289 = vld [vmem:[#allocation2 + $0x768] sm:$0xff]
    %v290 = vld [vmem:[#allocation2 + $0x770] sm:$0xff]
    %v291 = vld [vmem:[#allocation2 + $0x778] sm:$0xff]
    %v292 = vld [vmem:[#allocation2 + $0x780] sm:$0xff]
    %v293 = vld [vmem:[#allocation2 + $0x788] sm:$0xff]
    %v294 = vld [vmem:[#allocation2 + $0x790] sm:$0xff]
    %v295 = vld [vmem:[#allocation2 + $0x798] sm:$0xff]
    %v296 = vld [vmem:[#allocation2 + $0x7a0] sm:$0xff]
    %v297 = vld [vmem:[#allocation2 + $0x7a8] sm:$0xff]
    %v298 = vld [vmem:[#allocation2 + $0x7b0] sm:$0xff]
    %v299 = vld [vmem:[#allocation2 + $0x7b8] sm:$0xff]
    %v300 = vld [vmem:[#allocation2 + $0x7c0] sm:$0xff]
    %v301 = vld [vmem:[#allocation2 + $0x7c8] sm:$0xff]
    %v302 = vld [vmem:[#allocation2 + $0x7d0] sm:$0xff]
    %v303 = vld [vmem:[#allocation2 + $0x7d8] sm:$0xff]
    %v304 = vld [vmem:[#allocation2 + $0x7e0] sm:$0xff]
    %v305 = vld [vmem:[#allocation2 + $0x7e8] sm:$0xff]
    %v306 = vld [vmem:[#allocation2 + $0x7f0] sm:$0xff]
    %v307 = vld [vmem:[#allocation2 + $0x7f8] sm:$0xff]
    %v308 = vld [vmem:[#allocation4] sm:$0xff]
    %v310 = vperm.slane %v308, 0
    %v311 = vperm.slane %v308, 1
    %v312 = vperm.slane %v308, 2
    %v313 = vperm.slane %v308, 3
    %v314 = vperm.slane %v308, 4
    %v315 = vperm.slane %v308, 5
    %v316 = vperm.slane %v308, 6
    %v317 = vperm.slane %v308, 7
    %v582 = vunpack.c.l.b16 %v52
    %v583 = vunpack.c.h.b16 %v52
    %v584 = vunpack.c.l.b16 %v53
    %v585 = vunpack.c.h.b16 %v53
    %v586 = vunpack.c.l.b16 %v54
    %v587 = vunpack.c.h.b16 %v54
    %v588 = vunpack.c.l.b16 %v55
    %v589 = vunpack.c.h.b16 %v55
    %v590 = vunpack.c.l.b16 %v56
    %v591 = vunpack.c.h.b16 %v56
    %v592 = vunpack.c.l.b16 %v57
    %v593 = vunpack.c.h.b16 %v57
    %v594 = vunpack.c.l.b16 %v58
    %v595 = vunpack.c.h.b16 %v58
    %v596 = vunpack.c.l.b16 %v59
    %v597 = vunpack.c.h.b16 %v59
    %v598 = vunpack.c.l.b16 %v60
    %v599 = vunpack.c.h.b16 %v60
    %v600 = vunpack.c.l.b16 %v61
    %v601 = vunpack.c.h.b16 %v61
    %v602 = vunpack.c.l.b16 %v62
    %v603 = vunpack.c.h.b16 %v62
    %v604 = vunpack.c.l.b16 %v63
    %v605 = vunpack.c.h.b16 %v63
    %v606 = vunpack.c.l.b16 %v64
    %v607 = vunpack.c.h.b16 %v64
    %v608 = vunpack.c.l.b16 %v65
    %v609 = vunpack.c.h.b16 %v65
    %v610 = vunpack.c.l.b16 %v66
    %v611 = vunpack.c.h.b16 %v66
    %v612 = vunpack.c.l.b16 %v67
    %v613 = vunpack.c.h.b16 %v67
    %v614 = vunpack.c.l.b16 %v68
    %v615 = vunpack.c.h.b16 %v68
    %v616 = vunpack.c.l.b16 %v69
    %v617 = vunpack.c.h.b16 %v69
    %v618 = vunpack.c.l.b16 %v70
    %v619 = vunpack.c.h.b16 %v70
    %v620 = vunpack.c.l.b16 %v71
    %v621 = vunpack.c.h.b16 %v71
    %v622 = vunpack.c.l.b16 %v72
    %v623 = vunpack.c.h.b16 %v72
    %v624 = vunpack.c.l.b16 %v73
    %v625 = vunpack.c.h.b16 %v73
    %v626 = vunpack.c.l.b16 %v74
    %v627 = vunpack.c.h.b16 %v74
    %v628 = vunpack.c.l.b16 %v75
    %v629 = vunpack.c.h.b16 %v75
    %v630 = vunpack.c.l.b16 %v76
    %v631 = vunpack.c.h.b16 %v76
    %v632 = vunpack.c.l.b16 %v77
    %v633 = vunpack.c.h.b16 %v77
    %v634 = vunpack.c.l.b16 %v78
    %v635 = vunpack.c.h.b16 %v78
    %v636 = vunpack.c.l.b16 %v79
    %v637 = vunpack.c.h.b16 %v79
    %v638 = vunpack.c.l.b16 %v80
    %v639 = vunpack.c.h.b16 %v80
    %v640 = vunpack.c.l.b16 %v81
    %v641 = vunpack.c.h.b16 %v81
    %v642 = vunpack.c.l.b16 %v82
    %v643 = vunpack.c.h.b16 %v82
    %v644 = vunpack.c.l.b16 %v83
    %v645 = vunpack.c.h.b16 %v83
    %v646 = vunpack.c.l.b16 %v84
    %v647 = vunpack.c.h.b16 %v84
    %v648 = vunpack.c.l.b16 %v85
    %v649 = vunpack.c.h.b16 %v85
    %v650 = vunpack.c.l.b16 %v86
    %v651 = vunpack.c.h.b16 %v86
    %v652 = vunpack.c.l.b16 %v87
    %v653 = vunpack.c.h.b16 %v87
    %v654 = vunpack.c.l.b16 %v88
    %v655 = vunpack.c.h.b16 %v88
    %v656 = vunpack.c.l.b16 %v89
    %v657 = vunpack.c.h.b16 %v89
    %v658 = vunpack.c.l.b16 %v90
    %v659 = vunpack.c.h.b16 %v90
    %v660 = vunpack.c.l.b16 %v91
    %v661 = vunpack.c.h.b16 %v91
    %v662 = vunpack.c.l.b16 %v92
    %v663 = vunpack.c.h.b16 %v92
    %v664 = vunpack.c.l.b16 %v93
    %v665 = vunpack.c.h.b16 %v93
    %v666 = vunpack.c.l.b16 %v94
    %v667 = vunpack.c.h.b16 %v94
    %v668 = vunpack.c.l.b16 %v95
    %v669 = vunpack.c.h.b16 %v95
    %v670 = vunpack.c.l.b16 %v96
    %v671 = vunpack.c.h.b16 %v96
    %v672 = vunpack.c.l.b16 %v97
    %v673 = vunpack.c.h.b16 %v97
    %v674 = vunpack.c.l.b16 %v98
    %v675 = vunpack.c.h.b16 %v98
    %v676 = vunpack.c.l.b16 %v99
    %v677 = vunpack.c.h.b16 %v99
    %v678 = vunpack.c.l.b16 %v100
    %v679 = vunpack.c.h.b16 %v100
    %v680 = vunpack.c.l.b16 %v101
    %v681 = vunpack.c.h.b16 %v101
    %v682 = vunpack.c.l.b16 %v102
    %v683 = vunpack.c.h.b16 %v102
    %v684 = vunpack.c.l.b16 %v103
    %v685 = vunpack.c.h.b16 %v103
    %v686 = vunpack.c.l.b16 %v104
    %v687 = vunpack.c.h.b16 %v104
    %v688 = vunpack.c.l.b16 %v105
    %v689 = vunpack.c.h.b16 %v105
    %v690 = vunpack.c.l.b16 %v106
    %v691 = vunpack.c.h.b16 %v106
    %v692 = vunpack.c.l.b16 %v107
    %v693 = vunpack.c.h.b16 %v107
    %v694 = vunpack.c.l.b16 %v108
    %v695 = vunpack.c.h.b16 %v108
    %v696 = vunpack.c.l.b16 %v109
    %v697 = vunpack.c.h.b16 %v109
    %v698 = vunpack.c.l.b16 %v110
    %v699 = vunpack.c.h.b16 %v110
    %v700 = vunpack.c.l.b16 %v111
    %v701 = vunpack.c.h.b16 %v111
    %v702 = vunpack.c.l.b16 %v112
    %v703 = vunpack.c.h.b16 %v112
    %v704 = vunpack.c.l.b16 %v113
    %v705 = vunpack.c.h.b16 %v113
    %v706 = vunpack.c.l.b16 %v114
    %v707 = vunpack.c.h.b16 %v114
    %v708 = vunpack.c.l.b16 %v115
    %v709 = vunpack.c.h.b16 %v115
    %v710 = vunpack.c.l.b16 %v116
    %v711 = vunpack.c.h.b16 %v116
    %v712 = vunpack.c.l.b16 %v117
    %v713 = vunpack.c.h.b16 %v117
    %v714 = vunpack.c.l.b16 %v118
    %v715 = vunpack.c.h.b16 %v118
    %v716 = vunpack.c.l.b16 %v119
    %v717 = vunpack.c.h.b16 %v119
    %v718 = vunpack.c.l.b16 %v120
    %v719 = vunpack.c.h.b16 %v120
    %v720 = vunpack.c.l.b16 %v121
    %v721 = vunpack.c.h.b16 %v121
    %v722 = vunpack.c.l.b16 %v122
    %v723 = vunpack.c.h.b16 %v122
    %v724 = vunpack.c.l.b16 %v123
    %v725 = vunpack.c.h.b16 %v123
    %v726 = vunpack.c.l.b16 %v124
    %v727 = vunpack.c.h.b16 %v124
    %v728 = vunpack.c.l.b16 %v125
    %v729 = vunpack.c.h.b16 %v125
    %v730 = vunpack.c.l.b16 %v126
    %v731 = vunpack.c.h.b16 %v126
    %v732 = vunpack.c.l.b16 %v127
    %v733 = vunpack.c.h.b16 %v127
    %v734 = vunpack.c.l.b16 %v128
    %v735 = vunpack.c.h.b16 %v128
    %v736 = vunpack.c.l.b16 %v129
    %v737 = vunpack.c.h.b16 %v129
    %v738 = vunpack.c.l.b16 %v130
    %v739 = vunpack.c.h.b16 %v130
    %v740 = vunpack.c.l.b16 %v131
    %v741 = vunpack.c.h.b16 %v131
    %v742 = vunpack.c.l.b16 %v132
    %v743 = vunpack.c.h.b16 %v132
    %v744 = vunpack.c.l.b16 %v133
    %v745 = vunpack.c.h.b16 %v133
    %v746 = vunpack.c.l.b16 %v134
    %v747 = vunpack.c.h.b16 %v134
    %v748 = vunpack.c.l.b16 %v135
    %v749 = vunpack.c.h.b16 %v135
    %v750 = vunpack.c.l.b16 %v136
    %v751 = vunpack.c.h.b16 %v136
    %v752 = vunpack.c.l.b16 %v137
    %v753 = vunpack.c.h.b16 %v137
    %v754 = vunpack.c.l.b16 %v138
    %v755 = vunpack.c.h.b16 %v138
    %v756 = vunpack.c.l.b16 %v139
    %v757 = vunpack.c.h.b16 %v139
    %v758 = vunpack.c.l.b16 %v140
    %v759 = vunpack.c.h.b16 %v140
    %v760 = vunpack.c.l.b16 %v141
    %v761 = vunpack.c.h.b16 %v141
    %v762 = vunpack.c.l.b16 %v142
    %v763 = vunpack.c.h.b16 %v142
    %v764 = vunpack.c.l.b16 %v143
    %v765 = vunpack.c.h.b16 %v143
    %v766 = vunpack.c.l.b16 %v144
    %v767 = vunpack.c.h.b16 %v144
    %v768 = vunpack.c.l.b16 %v145
    %v769 = vunpack.c.h.b16 %v145
    %v770 = vunpack.c.l.b16 %v146
    %v771 = vunpack.c.h.b16 %v146
    %v772 = vunpack.c.l.b16 %v147
    %v773 = vunpack.c.h.b16 %v147
    %v774 = vunpack.c.l.b16 %v148
    %v775 = vunpack.c.h.b16 %v148
    %v776 = vunpack.c.l.b16 %v149
    %v777 = vunpack.c.h.b16 %v149
    %v778 = vunpack.c.l.b16 %v150
    %v779 = vunpack.c.h.b16 %v150
    %v780 = vunpack.c.l.b16 %v151
    %v781 = vunpack.c.h.b16 %v151
    %v782 = vunpack.c.l.b16 %v152
    %v783 = vunpack.c.h.b16 %v152
    %v784 = vunpack.c.l.b16 %v153
    %v785 = vunpack.c.h.b16 %v153
    %v786 = vunpack.c.l.b16 %v154
    %v787 = vunpack.c.h.b16 %v154
    %v788 = vunpack.c.l.b16 %v155
    %v789 = vunpack.c.h.b16 %v155
    %v790 = vunpack.c.l.b16 %v156
    %v791 = vunpack.c.h.b16 %v156
    %v792 = vunpack.c.l.b16 %v157
    %v793 = vunpack.c.h.b16 %v157
    %v794 = vunpack.c.l.b16 %v158
    %v795 = vunpack.c.h.b16 %v158
    %v796 = vunpack.c.l.b16 %v159
    %v797 = vunpack.c.h.b16 %v159
    %v798 = vunpack.c.l.b16 %v160
    %v799 = vunpack.c.h.b16 %v160
    %v800 = vunpack.c.l.b16 %v161
    %v801 = vunpack.c.h.b16 %v161
    %v802 = vunpack.c.l.b16 %v162
    %v803 = vunpack.c.h.b16 %v162
    %v804 = vunpack.c.l.b16 %v163
    %v805 = vunpack.c.h.b16 %v163
    %v806 = vunpack.c.l.b16 %v164
    %v807 = vunpack.c.h.b16 %v164
    %v808 = vunpack.c.l.b16 %v165
    %v809 = vunpack.c.h.b16 %v165
    %v810 = vunpack.c.l.b16 %v166
    %v811 = vunpack.c.h.b16 %v166
    %v812 = vunpack.c.l.b16 %v167
    %v813 = vunpack.c.h.b16 %v167
    %v814 = vunpack.c.l.b16 %v168
    %v815 = vunpack.c.h.b16 %v168
    %v816 = vunpack.c.l.b16 %v169
    %v817 = vunpack.c.h.b16 %v169
    %v818 = vunpack.c.l.b16 %v170
    %v819 = vunpack.c.h.b16 %v170
    %v820 = vunpack.c.l.b16 %v171
    %v821 = vunpack.c.h.b16 %v171
    %v822 = vunpack.c.l.b16 %v172
    %v823 = vunpack.c.h.b16 %v172
    %v824 = vunpack.c.l.b16 %v173
    %v825 = vunpack.c.h.b16 %v173
    %v826 = vunpack.c.l.b16 %v174
    %v827 = vunpack.c.h.b16 %v174
    %v828 = vunpack.c.l.b16 %v175
    %v829 = vunpack.c.h.b16 %v175
    %v830 = vunpack.c.l.b16 %v176
    %v831 = vunpack.c.h.b16 %v176
    %v832 = vunpack.c.l.b16 %v177
    %v833 = vunpack.c.h.b16 %v177
    %v834 = vunpack.c.l.b16 %v178
    %v835 = vunpack.c.h.b16 %v178
    %v836 = vunpack.c.l.b16 %v179
    %v837 = vunpack.c.h.b16 %v179
    %v838 = vunpack.c.l.b16 %v180
    %v839 = vunpack.c.h.b16 %v180
    %v840 = vunpack.c.l.b16 %v181
    %v841 = vunpack.c.h.b16 %v181
    %v842 = vunpack.c.l.b16 %v182
    %v843 = vunpack.c.h.b16 %v182
    %v844 = vunpack.c.l.b16 %v183
    %v845 = vunpack.c.h.b16 %v183
    %v846 = vunpack.c.l.b16 %v184
    %v847 = vunpack.c.h.b16 %v184
    %v848 = vunpack.c.l.b16 %v185
    %v849 = vunpack.c.h.b16 %v185
    %v850 = vunpack.c.l.b16 %v186
    %v851 = vunpack.c.h.b16 %v186
    %v852 = vunpack.c.l.b16 %v187
    %v853 = vunpack.c.h.b16 %v187
    %v854 = vunpack.c.l.b16 %v188
    %v855 = vunpack.c.h.b16 %v188
    %v856 = vunpack.c.l.b16 %v189
    %v857 = vunpack.c.h.b16 %v189
    %v858 = vunpack.c.l.b16 %v190
    %v859 = vunpack.c.h.b16 %v190
    %v860 = vunpack.c.l.b16 %v191
    %v861 = vunpack.c.h.b16 %v191
    %v862 = vunpack.c.l.b16 %v192
    %v863 = vunpack.c.h.b16 %v192
    %v864 = vunpack.c.l.b16 %v193
    %v865 = vunpack.c.h.b16 %v193
    %v866 = vunpack.c.l.b16 %v194
    %v867 = vunpack.c.h.b16 %v194
    %v868 = vunpack.c.l.b16 %v195
    %v869 = vunpack.c.h.b16 %v195
    %v870 = vunpack.c.l.b16 %v196
    %v871 = vunpack.c.h.b16 %v196
    %v872 = vunpack.c.l.b16 %v197
    %v873 = vunpack.c.h.b16 %v197
    %v874 = vunpack.c.l.b16 %v198
    %v875 = vunpack.c.h.b16 %v198
    %v876 = vunpack.c.l.b16 %v199
    %v877 = vunpack.c.h.b16 %v199
    %v878 = vunpack.c.l.b16 %v200
    %v879 = vunpack.c.h.b16 %v200
    %v880 = vunpack.c.l.b16 %v201
    %v881 = vunpack.c.h.b16 %v201
    %v882 = vunpack.c.l.b16 %v202
    %v883 = vunpack.c.h.b16 %v202
    %v884 = vunpack.c.l.b16 %v203
    %v885 = vunpack.c.h.b16 %v203
    %v886 = vunpack.c.l.b16 %v204
    %v887 = vunpack.c.h.b16 %v204
    %v888 = vunpack.c.l.b16 %v205
    %v889 = vunpack.c.h.b16 %v205
    %v890 = vunpack.c.l.b16 %v206
    %v891 = vunpack.c.h.b16 %v206
    %v892 = vunpack.c.l.b16 %v207
    %v893 = vunpack.c.h.b16 %v207
    %v894 = vunpack.c.l.b16 %v208
    %v895 = vunpack.c.h.b16 %v208
    %v896 = vunpack.c.l.b16 %v209
    %v897 = vunpack.c.h.b16 %v209
    %v898 = vunpack.c.l.b16 %v210
    %v899 = vunpack.c.h.b16 %v210
    %v900 = vunpack.c.l.b16 %v211
    %v901 = vunpack.c.h.b16 %v211
    %v902 = vunpack.c.l.b16 %v212
    %v903 = vunpack.c.h.b16 %v212
    %v904 = vunpack.c.l.b16 %v213
    %v905 = vunpack.c.h.b16 %v213
    %v906 = vunpack.c.l.b16 %v214
    %v907 = vunpack.c.h.b16 %v214
    %v908 = vunpack.c.l.b16 %v215
    %v909 = vunpack.c.h.b16 %v215
    %v910 = vunpack.c.l.b16 %v216
    %v911 = vunpack.c.h.b16 %v216
    %v912 = vunpack.c.l.b16 %v217
    %v913 = vunpack.c.h.b16 %v217
    %v914 = vunpack.c.l.b16 %v218
    %v915 = vunpack.c.h.b16 %v218
    %v916 = vunpack.c.l.b16 %v219
    %v917 = vunpack.c.h.b16 %v219
    %v918 = vunpack.c.l.b16 %v220
    %v919 = vunpack.c.h.b16 %v220
    %v920 = vunpack.c.l.b16 %v221
    %v921 = vunpack.c.h.b16 %v221
    %v922 = vunpack.c.l.b16 %v222
    %v923 = vunpack.c.h.b16 %v222
    %v924 = vunpack.c.l.b16 %v223
    %v925 = vunpack.c.h.b16 %v223
    %v926 = vunpack.c.l.b16 %v224
    %v927 = vunpack.c.h.b16 %v224
    %v928 = vunpack.c.l.b16 %v225
    %v929 = vunpack.c.h.b16 %v225
    %v930 = vunpack.c.l.b16 %v226
    %v931 = vunpack.c.h.b16 %v226
    %v932 = vunpack.c.l.b16 %v227
    %v933 = vunpack.c.h.b16 %v227
    %v934 = vunpack.c.l.b16 %v228
    %v935 = vunpack.c.h.b16 %v228
    %v936 = vunpack.c.l.b16 %v229
    %v937 = vunpack.c.h.b16 %v229
    %v938 = vunpack.c.l.b16 %v230
    %v939 = vunpack.c.h.b16 %v230
    %v940 = vunpack.c.l.b16 %v231
    %v941 = vunpack.c.h.b16 %v231
    %v942 = vunpack.c.l.b16 %v232
    %v943 = vunpack.c.h.b16 %v232
    %v944 = vunpack.c.l.b16 %v233
    %v945 = vunpack.c.h.b16 %v233
    %v946 = vunpack.c.l.b16 %v234
    %v947 = vunpack.c.h.b16 %v234
    %v948 = vunpack.c.l.b16 %v235
    %v949 = vunpack.c.h.b16 %v235
    %v950 = vunpack.c.l.b16 %v236
    %v951 = vunpack.c.h.b16 %v236
    %v952 = vunpack.c.l.b16 %v237
    %v953 = vunpack.c.h.b16 %v237
    %v954 = vunpack.c.l.b16 %v238
    %v955 = vunpack.c.h.b16 %v238
    %v956 = vunpack.c.l.b16 %v239
    %v957 = vunpack.c.h.b16 %v239
    %v958 = vunpack.c.l.b16 %v240
    %v959 = vunpack.c.h.b16 %v240
    %v960 = vunpack.c.l.b16 %v241
    %v961 = vunpack.c.h.b16 %v241
    %v962 = vunpack.c.l.b16 %v242
    %v963 = vunpack.c.h.b16 %v242
    %v964 = vunpack.c.l.b16 %v243
    %v965 = vunpack.c.h.b16 %v243
    %v966 = vunpack.c.l.b16 %v244
    %v967 = vunpack.c.h.b16 %v244
    %v968 = vunpack.c.l.b16 %v245
    %v969 = vunpack.c.h.b16 %v245
    %v970 = vunpack.c.l.b16 %v246
    %v971 = vunpack.c.h.b16 %v246
    %v972 = vunpack.c.l.b16 %v247
    %v973 = vunpack.c.h.b16 %v247
    %v974 = vunpack.c.l.b16 %v248
    %v975 = vunpack.c.h.b16 %v248
    %v976 = vunpack.c.l.b16 %v249
    %v977 = vunpack.c.h.b16 %v249
    %v978 = vunpack.c.l.b16 %v250
    %v979 = vunpack.c.h.b16 %v250
    %v980 = vunpack.c.l.b16 %v251
    %v981 = vunpack.c.h.b16 %v251
    %v982 = vunpack.c.l.b16 %v252
    %v983 = vunpack.c.h.b16 %v252
    %v984 = vunpack.c.l.b16 %v253
    %v985 = vunpack.c.h.b16 %v253
    %v986 = vunpack.c.l.b16 %v254
    %v987 = vunpack.c.h.b16 %v254
    %v988 = vunpack.c.l.b16 %v255
    %v989 = vunpack.c.h.b16 %v255
    %v990 = vunpack.c.l.b16 %v256
    %v991 = vunpack.c.h.b16 %v256
    %v992 = vunpack.c.l.b16 %v257
    %v993 = vunpack.c.h.b16 %v257
    %v994 = vunpack.c.l.b16 %v258
    %v995 = vunpack.c.h.b16 %v258
    %v996 = vunpack.c.l.b16 %v259
    %v997 = vunpack.c.h.b16 %v259
    %v998 = vunpack.c.l.b16 %v260
    %v999 = vunpack.c.h.b16 %v260
    %v1000 = vunpack.c.l.b16 %v261
    %v1001 = vunpack.c.h.b16 %v261
    %v1002 = vunpack.c.l.b16 %v262
    %v1003 = vunpack.c.h.b16 %v262
    %v1004 = vunpack.c.l.b16 %v263
    %v1005 = vunpack.c.h.b16 %v263
    %v1006 = vunpack.c.l.b16 %v264
    %v1007 = vunpack.c.h.b16 %v264
    %v1008 = vunpack.c.l.b16 %v265
    %v1009 = vunpack.c.h.b16 %v265
    %v1010 = vunpack.c.l.b16 %v266
    %v1011 = vunpack.c.h.b16 %v266
    %v1012 = vunpack.c.l.b16 %v267
    %v1013 = vunpack.c.h.b16 %v267
    %v1014 = vunpack.c.l.b16 %v268
    %v1015 = vunpack.c.h.b16 %v268
    %v1016 = vunpack.c.l.b16 %v269
    %v1017 = vunpack.c.h.b16 %v269
    %v1018 = vunpack.c.l.b16 %v270
    %v1019 = vunpack.c.h.b16 %v270
    %v1020 = vunpack.c.l.b16 %v271
    %v1021 = vunpack.c.h.b16 %v271
    %v1022 = vunpack.c.l.b16 %v272
    %v1023 = vunpack.c.h.b16 %v272
    %v1024 = vunpack.c.l.b16 %v273
    %v1025 = vunpack.c.h.b16 %v273
    %v1026 = vunpack.c.l.b16 %v274
    %v1027 = vunpack.c.h.b16 %v274
    %v1028 = vunpack.c.l.b16 %v275
    %v1029 = vunpack.c.h.b16 %v275
    %v1030 = vunpack.c.l.b16 %v276
    %v1031 = vunpack.c.h.b16 %v276
    %v1032 = vunpack.c.l.b16 %v277
    %v1033 = vunpack.c.h.b16 %v277
    %v1034 = vunpack.c.l.b16 %v278
    %v1035 = vunpack.c.h.b16 %v278
    %v1036 = vunpack.c.l.b16 %v279
    %v1037 = vunpack.c.h.b16 %v279
    %v1038 = vunpack.c.l.b16 %v280
    %v1039 = vunpack.c.h.b16 %v280
    %v1040 = vunpack.c.l.b16 %v281
    %v1041 = vunpack.c.h.b16 %v281
    %v1042 = vunpack.c.l.b16 %v282
    %v1043 = vunpack.c.h.b16 %v282
    %v1044 = vunpack.c.l.b16 %v283
    %v1045 = vunpack.c.h.b16 %v283
    %v1046 = vunpack.c.l.b16 %v284
    %v1047 = vunpack.c.h.b16 %v284
    %v1048 = vunpack.c.l.b16 %v285
    %v1049 = vunpack.c.h.b16 %v285
    %v1050 = vunpack.c.l.b16 %v286
    %v1051 = vunpack.c.h.b16 %v286
    %v1052 = vunpack.c.l.b16 %v287
    %v1053 = vunpack.c.h.b16 %v287
    %v1054 = vunpack.c.l.b16 %v288
    %v1055 = vunpack.c.h.b16 %v288
    %v1056 = vunpack.c.l.b16 %v289
    %v1057 = vunpack.c.h.b16 %v289
    %v1058 = vunpack.c.l.b16 %v290
    %v1059 = vunpack.c.h.b16 %v290
    %v1060 = vunpack.c.l.b16 %v291
    %v1061 = vunpack.c.h.b16 %v291
    %v1062 = vunpack.c.l.b16 %v292
    %v1063 = vunpack.c.h.b16 %v292
    %v1064 = vunpack.c.l.b16 %v293
    %v1065 = vunpack.c.h.b16 %v293
    %v1066 = vunpack.c.l.b16 %v294
    %v1067 = vunpack.c.h.b16 %v294
    %v1068 = vunpack.c.l.b16 %v295
    %v1069 = vunpack.c.h.b16 %v295
    %v1070 = vunpack.c.l.b16 %v296
    %v1071 = vunpack.c.h.b16 %v296
    %v1072 = vunpack.c.l.b16 %v297
    %v1073 = vunpack.c.h.b16 %v297
    %v1074 = vunpack.c.l.b16 %v298
    %v1075 = vunpack.c.h.b16 %v298
    %v1076 = vunpack.c.l.b16 %v299
    %v1077 = vunpack.c.h.b16 %v299
    %v1078 = vunpack.c.l.b16 %v300
    %v1079 = vunpack.c.h.b16 %v300
    %v1080 = vunpack.c.l.b16 %v301
    %v1081 = vunpack.c.h.b16 %v301
    %v1082 = vunpack.c.l.b16 %v302
    %v1083 = vunpack.c.h.b16 %v302
    %v1084 = vunpack.c.l.b16 %v303
    %v1085 = vunpack.c.h.b16 %v303
    %v1086 = vunpack.c.l.b16 %v304
    %v1087 = vunpack.c.h.b16 %v304
    %v1088 = vunpack.c.l.b16 %v305
    %v1089 = vunpack.c.h.b16 %v305
    %v1090 = vunpack.c.l.b16 %v306
    %v1091 = vunpack.c.h.b16 %v306
    %v1092 = vunpack.c.l.b16 %v307
    %v1093 = vunpack.c.h.b16 %v307
    %v1094 = vpack.c.b16 %v590, %v582
    %v1095 = vpack.c.b16 %v591, %v583
    %v1096 = vpack.c.b16 %v592, %v584
    %v1097 = vpack.c.b16 %v593, %v585
    %v1098 = vpack.c.b16 %v594, %v586
    %v1099 = vpack.c.b16 %v595, %v587
    %v1100 = vpack.c.b16 %v596, %v588
    %v1101 = vpack.c.b16 %v597, %v589
    %v1102 = vpack.c.b16 %v606, %v598
    %v1103 = vpack.c.b16 %v607, %v599
    %v1104 = vpack.c.b16 %v608, %v600
    %v1105 = vpack.c.b16 %v609, %v601
    %v1106 = vpack.c.b16 %v610, %v602
    %v1107 = vpack.c.b16 %v611, %v603
    %v1108 = vpack.c.b16 %v612, %v604
    %v1109 = vpack.c.b16 %v613, %v605
    %v1110 = vpack.c.b16 %v622, %v614
    %v1111 = vpack.c.b16 %v623, %v615
    %v1112 = vpack.c.b16 %v624, %v616
    %v1113 = vpack.c.b16 %v625, %v617
    %v1114 = vpack.c.b16 %v626, %v618
    %v1115 = vpack.c.b16 %v627, %v619
    %v1116 = vpack.c.b16 %v628, %v620
    %v1117 = vpack.c.b16 %v629, %v621
    %v1118 = vpack.c.b16 %v638, %v630
    %v1119 = vpack.c.b16 %v639, %v631
    %v1120 = vpack.c.b16 %v640, %v632
    %v1121 = vpack.c.b16 %v641, %v633
    %v1122 = vpack.c.b16 %v642, %v634
    %v1123 = vpack.c.b16 %v643, %v635
    %v1124 = vpack.c.b16 %v644, %v636
    %v1125 = vpack.c.b16 %v645, %v637
    %v1126 = vpack.c.b16 %v654, %v646
    %v1127 = vpack.c.b16 %v655, %v647
    %v1128 = vpack.c.b16 %v656, %v648
    %v1129 = vpack.c.b16 %v657, %v649
    %v1130 = vpack.c.b16 %v658, %v650
    %v1131 = vpack.c.b16 %v659, %v651
    %v1132 = vpack.c.b16 %v660, %v652
    %v1133 = vpack.c.b16 %v661, %v653
    %v1134 = vpack.c.b16 %v670, %v662
    %v1135 = vpack.c.b16 %v671, %v663
    %v1136 = vpack.c.b16 %v672, %v664
    %v1137 = vpack.c.b16 %v673, %v665
    %v1138 = vpack.c.b16 %v674, %v666
    %v1139 = vpack.c.b16 %v675, %v667
    %v1140 = vpack.c.b16 %v676, %v668
    %v1141 = vpack.c.b16 %v677, %v669
    %v1142 = vpack.c.b16 %v686, %v678
    %v1143 = vpack.c.b16 %v687, %v679
    %v1144 = vpack.c.b16 %v688, %v680
    %v1145 = vpack.c.b16 %v689, %v681
    %v1146 = vpack.c.b16 %v690, %v682
    %v1147 = vpack.c.b16 %v691, %v683
    %v1148 = vpack.c.b16 %v692, %v684
    %v1149 = vpack.c.b16 %v693, %v685
    %v1150 = vpack.c.b16 %v702, %v694
    %v1151 = vpack.c.b16 %v703, %v695
    %v1152 = vpack.c.b16 %v704, %v696
    %v1153 = vpack.c.b16 %v705, %v697
    %v1154 = vpack.c.b16 %v706, %v698
    %v1155 = vpack.c.b16 %v707, %v699
    %v1156 = vpack.c.b16 %v708, %v700
    %v1157 = vpack.c.b16 %v709, %v701
    %v1158 = vpack.c.b16 %v718, %v710
    %v1159 = vpack.c.b16 %v719, %v711
    %v1160 = vpack.c.b16 %v720, %v712
    %v1161 = vpack.c.b16 %v721, %v713
    %v1162 = vpack.c.b16 %v722, %v714
    %v1163 = vpack.c.b16 %v723, %v715
    %v1164 = vpack.c.b16 %v724, %v716
    %v1165 = vpack.c.b16 %v725, %v717
    %v1166 = vpack.c.b16 %v734, %v726
    %v1167 = vpack.c.b16 %v735, %v727
    %v1168 = vpack.c.b16 %v736, %v728
    %v1169 = vpack.c.b16 %v737, %v729
    %v1170 = vpack.c.b16 %v738, %v730
    %v1171 = vpack.c.b16 %v739, %v731
    %v1172 = vpack.c.b16 %v740, %v732
    %v1173 = vpack.c.b16 %v741, %v733
    %v1174 = vpack.c.b16 %v750, %v742
    %v1175 = vpack.c.b16 %v751, %v743
    %v1176 = vpack.c.b16 %v752, %v744
    %v1177 = vpack.c.b16 %v753, %v745
    %v1178 = vpack.c.b16 %v754, %v746
    %v1179 = vpack.c.b16 %v755, %v747
    %v1180 = vpack.c.b16 %v756, %v748
    %v1181 = vpack.c.b16 %v757, %v749
    %v1182 = vpack.c.b16 %v766, %v758
    %v1183 = vpack.c.b16 %v767, %v759
    %v1184 = vpack.c.b16 %v768, %v760
    %v1185 = vpack.c.b16 %v769, %v761
    %v1186 = vpack.c.b16 %v770, %v762
    %v1187 = vpack.c.b16 %v771, %v763
    %v1188 = vpack.c.b16 %v772, %v764
    %v1189 = vpack.c.b16 %v773, %v765
    %v1190 = vpack.c.b16 %v782, %v774
    %v1191 = vpack.c.b16 %v783, %v775
    %v1192 = vpack.c.b16 %v784, %v776
    %v1193 = vpack.c.b16 %v785, %v777
    %v1194 = vpack.c.b16 %v786, %v778
    %v1195 = vpack.c.b16 %v787, %v779
    %v1196 = vpack.c.b16 %v788, %v780
    %v1197 = vpack.c.b16 %v789, %v781
    %v1198 = vpack.c.b16 %v798, %v790
    %v1199 = vpack.c.b16 %v799, %v791
    %v1200 = vpack.c.b16 %v800, %v792
    %v1201 = vpack.c.b16 %v801, %v793
    %v1202 = vpack.c.b16 %v802, %v794
    %v1203 = vpack.c.b16 %v803, %v795
    %v1204 = vpack.c.b16 %v804, %v796
    %v1205 = vpack.c.b16 %v805, %v797
    %v1206 = vpack.c.b16 %v814, %v806
    %v1207 = vpack.c.b16 %v815, %v807
    %v1208 = vpack.c.b16 %v816, %v808
    %v1209 = vpack.c.b16 %v817, %v809
    %v1210 = vpack.c.b16 %v818, %v810
    %v1211 = vpack.c.b16 %v819, %v811
    %v1212 = vpack.c.b16 %v820, %v812
    %v1213 = vpack.c.b16 %v821, %v813
    %v1214 = vpack.c.b16 %v830, %v822
    %v1215 = vpack.c.b16 %v831, %v823
    %v1216 = vpack.c.b16 %v832, %v824
    %v1217 = vpack.c.b16 %v833, %v825
    %v1218 = vpack.c.b16 %v834, %v826
    %v1219 = vpack.c.b16 %v835, %v827
    %v1220 = vpack.c.b16 %v836, %v828
    %v1221 = vpack.c.b16 %v837, %v829
    %v1222 = vpack.c.b16 %v846, %v838
    %v1223 = vpack.c.b16 %v847, %v839
    %v1224 = vpack.c.b16 %v848, %v840
    %v1225 = vpack.c.b16 %v849, %v841
    %v1226 = vpack.c.b16 %v850, %v842
    %v1227 = vpack.c.b16 %v851, %v843
    %v1228 = vpack.c.b16 %v852, %v844
    %v1229 = vpack.c.b16 %v853, %v845
    %v1230 = vpack.c.b16 %v862, %v854
    %v1231 = vpack.c.b16 %v863, %v855
    %v1232 = vpack.c.b16 %v864, %v856
    %v1233 = vpack.c.b16 %v865, %v857
    %v1234 = vpack.c.b16 %v866, %v858
    %v1235 = vpack.c.b16 %v867, %v859
    %v1236 = vpack.c.b16 %v868, %v860
    %v1237 = vpack.c.b16 %v869, %v861
    %v1238 = vpack.c.b16 %v878, %v870
    %v1239 = vpack.c.b16 %v879, %v871
    %v1240 = vpack.c.b16 %v880, %v872
    %v1241 = vpack.c.b16 %v881, %v873
    %v1242 = vpack.c.b16 %v882, %v874
    %v1243 = vpack.c.b16 %v883, %v875
    %v1244 = vpack.c.b16 %v884, %v876
    %v1245 = vpack.c.b16 %v885, %v877
    %v1246 = vpack.c.b16 %v894, %v886
    %v1247 = vpack.c.b16 %v895, %v887
    %v1248 = vpack.c.b16 %v896, %v888
    %v1249 = vpack.c.b16 %v897, %v889
    %v1250 = vpack.c.b16 %v898, %v890
    %v1251 = vpack.c.b16 %v899, %v891
    %v1252 = vpack.c.b16 %v900, %v892
    %v1253 = vpack.c.b16 %v901, %v893
    %v1254 = vpack.c.b16 %v910, %v902
    %v1255 = vpack.c.b16 %v911, %v903
    %v1256 = vpack.c.b16 %v912, %v904
    %v1257 = vpack.c.b16 %v913, %v905
    %v1258 = vpack.c.b16 %v914, %v906
    %v1259 = vpack.c.b16 %v915, %v907
    %v1260 = vpack.c.b16 %v916, %v908
    %v1261 = vpack.c.b16 %v917, %v909
    %v1262 = vpack.c.b16 %v926, %v918
    %v1263 = vpack.c.b16 %v927, %v919
    %v1264 = vpack.c.b16 %v928, %v920
    %v1265 = vpack.c.b16 %v929, %v921
    %v1266 = vpack.c.b16 %v930, %v922
    %v1267 = vpack.c.b16 %v931, %v923
    %v1268 = vpack.c.b16 %v932, %v924
    %v1269 = vpack.c.b16 %v933, %v925
    %v1270 = vpack.c.b16 %v942, %v934
    %v1271 = vpack.c.b16 %v943, %v935
    %v1272 = vpack.c.b16 %v944, %v936
    %v1273 = vpack.c.b16 %v945, %v937
    %v1274 = vpack.c.b16 %v946, %v938
    %v1275 = vpack.c.b16 %v947, %v939
    %v1276 = vpack.c.b16 %v948, %v940
    %v1277 = vpack.c.b16 %v949, %v941
    %v1278 = vpack.c.b16 %v958, %v950
    %v1279 = vpack.c.b16 %v959, %v951
    %v1280 = vpack.c.b16 %v960, %v952
    %v1281 = vpack.c.b16 %v961, %v953
    %v1282 = vpack.c.b16 %v962, %v954
    %v1283 = vpack.c.b16 %v963, %v955
    %v1284 = vpack.c.b16 %v964, %v956
    %v1285 = vpack.c.b16 %v965, %v957
    %v1286 = vpack.c.b16 %v974, %v966
    %v1287 = vpack.c.b16 %v975, %v967
    %v1288 = vpack.c.b16 %v976, %v968
    %v1289 = vpack.c.b16 %v977, %v969
    %v1290 = vpack.c.b16 %v978, %v970
    %v1291 = vpack.c.b16 %v979, %v971
    %v1292 = vpack.c.b16 %v980, %v972
    %v1293 = vpack.c.b16 %v981, %v973
    %v1294 = vpack.c.b16 %v990, %v982
    %v1295 = vpack.c.b16 %v991, %v983
    %v1296 = vpack.c.b16 %v992, %v984
    %v1297 = vpack.c.b16 %v993, %v985
    %v1298 = vpack.c.b16 %v994, %v986
    %v1299 = vpack.c.b16 %v995, %v987
    %v1300 = vpack.c.b16 %v996, %v988
    %v1301 = vpack.c.b16 %v997, %v989
    %v1302 = vpack.c.b16 %v1006, %v998
    %v1303 = vpack.c.b16 %v1007, %v999
    %v1304 = vpack.c.b16 %v1008, %v1000
    %v1305 = vpack.c.b16 %v1009, %v1001
    %v1306 = vpack.c.b16 %v1010, %v1002
    %v1307 = vpack.c.b16 %v1011, %v1003
    %v1308 = vpack.c.b16 %v1012, %v1004
    %v1309 = vpack.c.b16 %v1013, %v1005
    %v1310 = vpack.c.b16 %v1022, %v1014
    %v1311 = vpack.c.b16 %v1023, %v1015
    %v1312 = vpack.c.b16 %v1024, %v1016
    %v1313 = vpack.c.b16 %v1025, %v1017
    %v1314 = vpack.c.b16 %v1026, %v1018
    %v1315 = vpack.c.b16 %v1027, %v1019
    %v1316 = vpack.c.b16 %v1028, %v1020
    %v1317 = vpack.c.b16 %v1029, %v1021
    %v1318 = vpack.c.b16 %v1038, %v1030
    %v1319 = vpack.c.b16 %v1039, %v1031
    %v1320 = vpack.c.b16 %v1040, %v1032
    %v1321 = vpack.c.b16 %v1041, %v1033
    %v1322 = vpack.c.b16 %v1042, %v1034
    %v1323 = vpack.c.b16 %v1043, %v1035
    %v1324 = vpack.c.b16 %v1044, %v1036
    %v1325 = vpack.c.b16 %v1045, %v1037
    %v1326 = vpack.c.b16 %v1054, %v1046
    %v1327 = vpack.c.b16 %v1055, %v1047
    %v1328 = vpack.c.b16 %v1056, %v1048
    %v1329 = vpack.c.b16 %v1057, %v1049
    %v1330 = vpack.c.b16 %v1058, %v1050
    %v1331 = vpack.c.b16 %v1059, %v1051
    %v1332 = vpack.c.b16 %v1060, %v1052
    %v1333 = vpack.c.b16 %v1061, %v1053
    %v1334 = vpack.c.b16 %v1070, %v1062
    %v1335 = vpack.c.b16 %v1071, %v1063
    %v1336 = vpack.c.b16 %v1072, %v1064
    %v1337 = vpack.c.b16 %v1073, %v1065
    %v1338 = vpack.c.b16 %v1074, %v1066
    %v1339 = vpack.c.b16 %v1075, %v1067
    %v1340 = vpack.c.b16 %v1076, %v1068
    %v1341 = vpack.c.b16 %v1077, %v1069
    %v1342 = vpack.c.b16 %v1086, %v1078
    %v1343 = vpack.c.b16 %v1087, %v1079
    %v1344 = vpack.c.b16 %v1088, %v1080
    %v1345 = vpack.c.b16 %v1089, %v1081
    %v1346 = vpack.c.b16 %v1090, %v1082
    %v1347 = vpack.c.b16 %v1091, %v1083
    %v1348 = vpack.c.b16 %v1092, %v1084
    %v1349 = vpack.c.b16 %v1093, %v1085
    %1606 = vmatpush.bf16.msra.mxu0 %v1150
    %1607 = vmatpush.bf16.msra.mxu0 %v1142
    %1608 = vmatpush.bf16.msra.mxu0 %v1134
    %1609 = vmatpush.bf16.msra.mxu0 %v1126
    %1610 = vmatpush.bf16.msra.mxu0 %v1118
    %1611 = vmatpush.bf16.msra.mxu0 %v1110
    %1612 = vmatpush.bf16.msra.mxu0 %v1102
    %1613 = vmatpush.bf16.msra.mxu0 %v1094
    %1614 = vmatmul.bf16.gmra.mxu0 %v48
    %v1615 = vpop.f32.mrf.mxu0
    %v1616 = vadd.f32 %v310, %v1615
    %v1617 = vpop.f32.mrf.mxu0
    %1618 = vdwg.mxu0
    %1619 = vmatpush.bf16.msra.mxu0 %v1214
    %1620 = vmatpush.bf16.msra.mxu0 %v1206
    %1621 = vmatpush.bf16.msra.mxu0 %v1198
    %1622 = vmatpush.bf16.msra.mxu0 %v1190
    %1623 = vmatpush.bf16.msra.mxu0 %v1182
    %1624 = vmatpush.bf16.msra.mxu0 %v1174
    %1625 = vmatpush.bf16.msra.mxu0 %v1166
    %1626 = vmatpush.bf16.msra.mxu0 %v1158
    %1627 = vmatmul.bf16.gmra.mxu0 %v49
    %v1628 = vpop.f32.mrf.mxu0
    %v1629 = vadd.f32 %v1616, %v1628
    %v1630 = vpop.f32.mrf.mxu0
    %1631 = vdwg.mxu0
    %1632 = vmatpush.bf16.msra.mxu0 %v1278
    %1633 = vmatpush.bf16.msra.mxu0 %v1270
    %1634 = vmatpush.bf16.msra.mxu0 %v1262
    %1635 = vmatpush.bf16.msra.mxu0 %v1254
    %1636 = vmatpush.bf16.msra.mxu0 %v1246
    %1637 = vmatpush.bf16.msra.mxu0 %v1238
    %1638 = vmatpush.bf16.msra.mxu0 %v1230
    %1639 = vmatpush.bf16.msra.mxu0 %v1222
    %1640 = vmatmul.bf16.gmra.mxu0 %v50
    %v1641 = vpop.f32.mrf.mxu0
    %v1642 = vadd.f32 %v1629, %v1641
    %v1643 = vpop.f32.mrf.mxu0
    %1644 = vdwg.mxu0
    %1645 = vmatpush.bf16.msra.mxu0 %v1342
    %1646 = vmatpush.bf16.msra.mxu0 %v1334
    %1647 = vmatpush.bf16.msra.mxu0 %v1326
    %1648 = vmatpush.bf16.msra.mxu0 %v1318
    %1649 = vmatpush.bf16.msra.mxu0 %v1310
    %1650 = vmatpush.bf16.msra.mxu0 %v1302
    %1651 = vmatpush.bf16.msra.mxu0 %v1294
    %1652 = vmatpush.bf16.msra.mxu0 %v1286
    %1653 = vmatmul.bf16.gmra.mxu0 %v51
    %v1654 = vpop.f32.mrf.mxu0
    %v1655 = vadd.f32 %v1642, %v1654
    %v1656 = vpop.f32.mrf.mxu0
    %1657 = vdwg.mxu0
    %1658 = vmatpush.bf16.msra.mxu0 %v1151
    %1659 = vmatpush.bf16.msra.mxu0 %v1143
    %1660 = vmatpush.bf16.msra.mxu0 %v1135
    %1661 = vmatpush.bf16.msra.mxu0 %v1127
    %1662 = vmatpush.bf16.msra.mxu0 %v1119
    %1663 = vmatpush.bf16.msra.mxu0 %v1111
    %1664 = vmatpush.bf16.msra.mxu0 %v1103
    %1665 = vmatpush.bf16.msra.mxu0 %v1095
    %1666 = vmatmul.bf16.gmra.mxu0 %v48
    %v1667 = vpop.f32.mrf.mxu0
    %v1668 = vadd.f32 %v311, %v1667
    %v1669 = vpop.f32.mrf.mxu0
    %1670 = vdwg.mxu0
    %1671 = vmatpush.bf16.msra.mxu0 %v1215
    %1672 = vmatpush.bf16.msra.mxu0 %v1207
    %1673 = vmatpush.bf16.msra.mxu0 %v1199
    %1674 = vmatpush.bf16.msra.mxu0 %v1191
    %1675 = vmatpush.bf16.msra.mxu0 %v1183
    %1676 = vmatpush.bf16.msra.mxu0 %v1175
    %1677 = vmatpush.bf16.msra.mxu0 %v1167
    %1678 = vmatpush.bf16.msra.mxu0 %v1159
    %1679 = vmatmul.bf16.gmra.mxu0 %v49
    %v1680 = vpop.f32.mrf.mxu0
    %v1681 = vadd.f32 %v1668, %v1680
    %v1682 = vpop.f32.mrf.mxu0
    %1683 = vdwg.mxu0
    %1684 = vmatpush.bf16.msra.mxu0 %v1279
    %1685 = vmatpush.bf16.msra.mxu0 %v1271
    %1686 = vmatpush.bf16.msra.mxu0 %v1263
    %1687 = vmatpush.bf16.msra.mxu0 %v1255
    %1688 = vmatpush.bf16.msra.mxu0 %v1247
    %1689 = vmatpush.bf16.msra.mxu0 %v1239
    %1690 = vmatpush.bf16.msra.mxu0 %v1231
    %1691 = vmatpush.bf16.msra.mxu0 %v1223
    %1692 = vmatmul.bf16.gmra.mxu0 %v50
    %v1693 = vpop.f32.mrf.mxu0
    %v1694 = vadd.f32 %v1681, %v1693
    %v1695 = vpop.f32.mrf.mxu0
    %1696 = vdwg.mxu0
    %1697 = vmatpush.bf16.msra.mxu0 %v1343
    %1698 = vmatpush.bf16.msra.mxu0 %v1335
    %1699 = vmatpush.bf16.msra.mxu0 %v1327
    %1700 = vmatpush.bf16.msra.mxu0 %v1319
    %1701 = vmatpush.bf16.msra.mxu0 %v1311
    %1702 = vmatpush.bf16.msra.mxu0 %v1303
    %1703 = vmatpush.bf16.msra.mxu0 %v1295
    %1704 = vmatpush.bf16.msra.mxu0 %v1287
    %1705 = vmatmul.bf16.gmra.mxu0 %v51
    %v1706 = vpop.f32.mrf.mxu0
    %v1707 = vadd.f32 %v1694, %v1706
    %v1708 = vpop.f32.mrf.mxu0
    %1709 = vdwg.mxu0
    %1710 = vmatpush.bf16.msra.mxu0 %v1152
    %1711 = vmatpush.bf16.msra.mxu0 %v1144
    %1712 = vmatpush.bf16.msra.mxu0 %v1136
    %1713 = vmatpush.bf16.msra.mxu0 %v1128
    %1714 = vmatpush.bf16.msra.mxu0 %v1120
    %1715 = vmatpush.bf16.msra.mxu0 %v1112
    %1716 = vmatpush.bf16.msra.mxu0 %v1104
    %1717 = vmatpush.bf16.msra.mxu0 %v1096
    %1718 = vmatmul.bf16.gmra.mxu0 %v48
    %v1719 = vpop.f32.mrf.mxu0
    %v1720 = vadd.f32 %v312, %v1719
    %v1721 = vpop.f32.mrf.mxu0
    %1722 = vdwg.mxu0
    %1723 = vmatpush.bf16.msra.mxu0 %v1216
    %1724 = vmatpush.bf16.msra.mxu0 %v1208
    %1725 = vmatpush.bf16.msra.mxu0 %v1200
    %1726 = vmatpush.bf16.msra.mxu0 %v1192
    %1727 = vmatpush.bf16.msra.mxu0 %v1184
    %1728 = vmatpush.bf16.msra.mxu0 %v1176
    %1729 = vmatpush.bf16.msra.mxu0 %v1168
    %1730 = vmatpush.bf16.msra.mxu0 %v1160
    %1731 = vmatmul.bf16.gmra.mxu0 %v49
    %v1732 = vpop.f32.mrf.mxu0
    %v1733 = vadd.f32 %v1720, %v1732
    %v1734 = vpop.f32.mrf.mxu0
    %1735 = vdwg.mxu0
    %1736 = vmatpush.bf16.msra.mxu0 %v1280
    %1737 = vmatpush.bf16.msra.mxu0 %v1272
    %1738 = vmatpush.bf16.msra.mxu0 %v1264
    %1739 = vmatpush.bf16.msra.mxu0 %v1256
    %1740 = vmatpush.bf16.msra.mxu0 %v1248
    %1741 = vmatpush.bf16.msra.mxu0 %v1240
    %1742 = vmatpush.bf16.msra.mxu0 %v1232
    %1743 = vmatpush.bf16.msra.mxu0 %v1224
    %1744 = vmatmul.bf16.gmra.mxu0 %v50
    %v1745 = vpop.f32.mrf.mxu0
    %v1746 = vadd.f32 %v1733, %v1745
    %v1747 = vpop.f32.mrf.mxu0
    %1748 = vdwg.mxu0
    %1749 = vmatpush.bf16.msra.mxu0 %v1344
    %1750 = vmatpush.bf16.msra.mxu0 %v1336
    %1751 = vmatpush.bf16.msra.mxu0 %v1328
    %1752 = vmatpush.bf16.msra.mxu0 %v1320
    %1753 = vmatpush.bf16.msra.mxu0 %v1312
    %1754 = vmatpush.bf16.msra.mxu0 %v1304
    %1755 = vmatpush.bf16.msra.mxu0 %v1296
    %1756 = vmatpush.bf16.msra.mxu0 %v1288
    %1757 = vmatmul.bf16.gmra.mxu0 %v51
    %v1758 = vpop.f32.mrf.mxu0
    %v1759 = vadd.f32 %v1746, %v1758
    %v1760 = vpop.f32.mrf.mxu0
    %1761 = vdwg.mxu0
    %1762 = vmatpush.bf16.msra.mxu0 %v1153
    %1763 = vmatpush.bf16.msra.mxu0 %v1145
    %1764 = vmatpush.bf16.msra.mxu0 %v1137
    %1765 = vmatpush.bf16.msra.mxu0 %v1129
    %1766 = vmatpush.bf16.msra.mxu0 %v1121
    %1767 = vmatpush.bf16.msra.mxu0 %v1113
    %1768 = vmatpush.bf16.msra.mxu0 %v1105
    %1769 = vmatpush.bf16.msra.mxu0 %v1097
    %1770 = vmatmul.bf16.gmra.mxu0 %v48
    %v1771 = vpop.f32.mrf.mxu0
    %v1772 = vadd.f32 %v313, %v1771
    %v1773 = vpop.f32.mrf.mxu0
    %1774 = vdwg.mxu0
    %1775 = vmatpush.bf16.msra.mxu0 %v1217
    %1776 = vmatpush.bf16.msra.mxu0 %v1209
    %1777 = vmatpush.bf16.msra.mxu0 %v1201
    %1778 = vmatpush.bf16.msra.mxu0 %v1193
    %1779 = vmatpush.bf16.msra.mxu0 %v1185
    %1780 = vmatpush.bf16.msra.mxu0 %v1177
    %1781 = vmatpush.bf16.msra.mxu0 %v1169
    %1782 = vmatpush.bf16.msra.mxu0 %v1161
    %1783 = vmatmul.bf16.gmra.mxu0 %v49
    %v1784 = vpop.f32.mrf.mxu0
    %v1785 = vadd.f32 %v1772, %v1784
    %v1786 = vpop.f32.mrf.mxu0
    %1787 = vdwg.mxu0
    %1788 = vmatpush.bf16.msra.mxu0 %v1281
    %1789 = vmatpush.bf16.msra.mxu0 %v1273
    %1790 = vmatpush.bf16.msra.mxu0 %v1265
    %1791 = vmatpush.bf16.msra.mxu0 %v1257
    %1792 = vmatpush.bf16.msra.mxu0 %v1249
    %1793 = vmatpush.bf16.msra.mxu0 %v1241
    %1794 = vmatpush.bf16.msra.mxu0 %v1233
    %1795 = vmatpush.bf16.msra.mxu0 %v1225
    %1796 = vmatmul.bf16.gmra.mxu0 %v50
    %v1797 = vpop.f32.mrf.mxu0
    %v1798 = vadd.f32 %v1785, %v1797
    %v1799 = vpop.f32.mrf.mxu0
    %1800 = vdwg.mxu0
    %1801 = vmatpush.bf16.msra.mxu0 %v1345
    %1802 = vmatpush.bf16.msra.mxu0 %v1337
    %1803 = vmatpush.bf16.msra.mxu0 %v1329
    %1804 = vmatpush.bf16.msra.mxu0 %v1321
    %1805 = vmatpush.bf16.msra.mxu0 %v1313
    %1806 = vmatpush.bf16.msra.mxu0 %v1305
    %1807 = vmatpush.bf16.msra.mxu0 %v1297
    %1808 = vmatpush.bf16.msra.mxu0 %v1289
    %1809 = vmatmul.bf16.gmra.mxu0 %v51
    %v1810 = vpop.f32.mrf.mxu0
    %v1811 = vadd.f32 %v1798, %v1810
    %v1812 = vpop.f32.mrf.mxu0
    %1813 = vdwg.mxu0
    %1814 = vmatpush.bf16.msra.mxu0 %v1154
    %1815 = vmatpush.bf16.msra.mxu0 %v1146
    %1816 = vmatpush.bf16.msra.mxu0 %v1138
    %1817 = vmatpush.bf16.msra.mxu0 %v1130
    %1818 = vmatpush.bf16.msra.mxu0 %v1122
    %1819 = vmatpush.bf16.msra.mxu0 %v1114
    %1820 = vmatpush.bf16.msra.mxu0 %v1106
    %1821 = vmatpush.bf16.msra.mxu0 %v1098
    %1822 = vmatmul.bf16.gmra.mxu0 %v48
    %v1823 = vpop.f32.mrf.mxu0
    %v1824 = vadd.f32 %v314, %v1823
    %v1825 = vpop.f32.mrf.mxu0
    %1826 = vdwg.mxu0
    %1827 = vmatpush.bf16.msra.mxu0 %v1218
    %1828 = vmatpush.bf16.msra.mxu0 %v1210
    %1829 = vmatpush.bf16.msra.mxu0 %v1202
    %1830 = vmatpush.bf16.msra.mxu0 %v1194
    %1831 = vmatpush.bf16.msra.mxu0 %v1186
    %1832 = vmatpush.bf16.msra.mxu0 %v1178
    %1833 = vmatpush.bf16.msra.mxu0 %v1170
    %1834 = vmatpush.bf16.msra.mxu0 %v1162
    %1835 = vmatmul.bf16.gmra.mxu0 %v49
    %v1836 = vpop.f32.mrf.mxu0
    %v1837 = vadd.f32 %v1824, %v1836
    %v1838 = vpop.f32.mrf.mxu0
    %1839 = vdwg.mxu0
    %1840 = vmatpush.bf16.msra.mxu0 %v1282
    %1841 = vmatpush.bf16.msra.mxu0 %v1274
    %1842 = vmatpush.bf16.msra.mxu0 %v1266
    %1843 = vmatpush.bf16.msra.mxu0 %v1258
    %1844 = vmatpush.bf16.msra.mxu0 %v1250
    %1845 = vmatpush.bf16.msra.mxu0 %v1242
    %1846 = vmatpush.bf16.msra.mxu0 %v1234
    %1847 = vmatpush.bf16.msra.mxu0 %v1226
    %1848 = vmatmul.bf16.gmra.mxu0 %v50
    %v1849 = vpop.f32.mrf.mxu0
    %v1850 = vadd.f32 %v1837, %v1849
    %v1851 = vpop.f32.mrf.mxu0
    %1852 = vdwg.mxu0
    %1853 = vmatpush.bf16.msra.mxu0 %v1346
    %1854 = vmatpush.bf16.msra.mxu0 %v1338
    %1855 = vmatpush.bf16.msra.mxu0 %v1330
    %1856 = vmatpush.bf16.msra.mxu0 %v1322
    %1857 = vmatpush.bf16.msra.mxu0 %v1314
    %1858 = vmatpush.bf16.msra.mxu0 %v1306
    %1859 = vmatpush.bf16.msra.mxu0 %v1298
    %1860 = vmatpush.bf16.msra.mxu0 %v1290
    %1861 = vmatmul.bf16.gmra.mxu0 %v51
    %v1862 = vpop.f32.mrf.mxu0
    %v1863 = vadd.f32 %v1850, %v1862
    %v1864 = vpop.f32.mrf.mxu0
    %1865 = vdwg.mxu0
    %1866 = vmatpush.bf16.msra.mxu0 %v1155
    %1867 = vmatpush.bf16.msra.mxu0 %v1147
    %1868 = vmatpush.bf16.msra.mxu0 %v1139
    %1869 = vmatpush.bf16.msra.mxu0 %v1131
    %1870 = vmatpush.bf16.msra.mxu0 %v1123
    %1871 = vmatpush.bf16.msra.mxu0 %v1115
    %1872 = vmatpush.bf16.msra.mxu0 %v1107
    %1873 = vmatpush.bf16.msra.mxu0 %v1099
    %1874 = vmatmul.bf16.gmra.mxu0 %v48
    %v1875 = vpop.f32.mrf.mxu0
    %v1876 = vadd.f32 %v315, %v1875
    %v1877 = vpop.f32.mrf.mxu0
    %1878 = vdwg.mxu0
    %1879 = vmatpush.bf16.msra.mxu0 %v1219
    %1880 = vmatpush.bf16.msra.mxu0 %v1211
    %1881 = vmatpush.bf16.msra.mxu0 %v1203
    %1882 = vmatpush.bf16.msra.mxu0 %v1195
    %1883 = vmatpush.bf16.msra.mxu0 %v1187
    %1884 = vmatpush.bf16.msra.mxu0 %v1179
    %1885 = vmatpush.bf16.msra.mxu0 %v1171
    %1886 = vmatpush.bf16.msra.mxu0 %v1163
    %1887 = vmatmul.bf16.gmra.mxu0 %v49
    %v1888 = vpop.f32.mrf.mxu0
    %v1889 = vadd.f32 %v1876, %v1888
    %v1890 = vpop.f32.mrf.mxu0
    %1891 = vdwg.mxu0
    %1892 = vmatpush.bf16.msra.mxu0 %v1283
    %1893 = vmatpush.bf16.msra.mxu0 %v1275
    %1894 = vmatpush.bf16.msra.mxu0 %v1267
    %1895 = vmatpush.bf16.msra.mxu0 %v1259
    %1896 = vmatpush.bf16.msra.mxu0 %v1251
    %1897 = vmatpush.bf16.msra.mxu0 %v1243
    %1898 = vmatpush.bf16.msra.mxu0 %v1235
    %1899 = vmatpush.bf16.msra.mxu0 %v1227
    %1900 = vmatmul.bf16.gmra.mxu0 %v50
    %v1901 = vpop.f32.mrf.mxu0
    %v1902 = vadd.f32 %v1889, %v1901
    %v1903 = vpop.f32.mrf.mxu0
    %1904 = vdwg.mxu0
    %1905 = vmatpush.bf16.msra.mxu0 %v1347
    %1906 = vmatpush.bf16.msra.mxu0 %v1339
    %1907 = vmatpush.bf16.msra.mxu0 %v1331
    %1908 = vmatpush.bf16.msra.mxu0 %v1323
    %1909 = vmatpush.bf16.msra.mxu0 %v1315
    %1910 = vmatpush.bf16.msra.mxu0 %v1307
    %1911 = vmatpush.bf16.msra.mxu0 %v1299
    %1912 = vmatpush.bf16.msra.mxu0 %v1291
    %1913 = vmatmul.bf16.gmra.mxu0 %v51
    %v1914 = vpop.f32.mrf.mxu0
    %v1915 = vadd.f32 %v1902, %v1914
    %v1916 = vpop.f32.mrf.mxu0
    %1917 = vdwg.mxu0
    %1918 = vmatpush.bf16.msra.mxu0 %v1156
    %1919 = vmatpush.bf16.msra.mxu0 %v1148
    %1920 = vmatpush.bf16.msra.mxu0 %v1140
    %1921 = vmatpush.bf16.msra.mxu0 %v1132
    %1922 = vmatpush.bf16.msra.mxu0 %v1124
    %1923 = vmatpush.bf16.msra.mxu0 %v1116
    %1924 = vmatpush.bf16.msra.mxu0 %v1108
    %1925 = vmatpush.bf16.msra.mxu0 %v1100
    %1926 = vmatmul.bf16.gmra.mxu0 %v48
    %v1927 = vpop.f32.mrf.mxu0
    %v1928 = vadd.f32 %v316, %v1927
    %v1929 = vpop.f32.mrf.mxu0
    %1930 = vdwg.mxu0
    %1931 = vmatpush.bf16.msra.mxu0 %v1220
    %1932 = vmatpush.bf16.msra.mxu0 %v1212
    %1933 = vmatpush.bf16.msra.mxu0 %v1204
    %1934 = vmatpush.bf16.msra.mxu0 %v1196
    %1935 = vmatpush.bf16.msra.mxu0 %v1188
    %1936 = vmatpush.bf16.msra.mxu0 %v1180
    %1937 = vmatpush.bf16.msra.mxu0 %v1172
    %1938 = vmatpush.bf16.msra.mxu0 %v1164
    %1939 = vmatmul.bf16.gmra.mxu0 %v49
    %v1940 = vpop.f32.mrf.mxu0
    %v1941 = vadd.f32 %v1928, %v1940
    %v1942 = vpop.f32.mrf.mxu0
    %1943 = vdwg.mxu0
    %1944 = vmatpush.bf16.msra.mxu0 %v1284
    %1945 = vmatpush.bf16.msra.mxu0 %v1276
    %1946 = vmatpush.bf16.msra.mxu0 %v1268
    %1947 = vmatpush.bf16.msra.mxu0 %v1260
    %1948 = vmatpush.bf16.msra.mxu0 %v1252
    %1949 = vmatpush.bf16.msra.mxu0 %v1244
    %1950 = vmatpush.bf16.msra.mxu0 %v1236
    %1951 = vmatpush.bf16.msra.mxu0 %v1228
    %1952 = vmatmul.bf16.gmra.mxu0 %v50
    %v1953 = vpop.f32.mrf.mxu0
    %v1954 = vadd.f32 %v1941, %v1953
    %v1955 = vpop.f32.mrf.mxu0
    %1956 = vdwg.mxu0
    %1957 = vmatpush.bf16.msra.mxu0 %v1348
    %1958 = vmatpush.bf16.msra.mxu0 %v1340
    %1959 = vmatpush.bf16.msra.mxu0 %v1332
    %1960 = vmatpush.bf16.msra.mxu0 %v1324
    %1961 = vmatpush.bf16.msra.mxu0 %v1316
    %1962 = vmatpush.bf16.msra.mxu0 %v1308
    %1963 = vmatpush.bf16.msra.mxu0 %v1300
    %1964 = vmatpush.bf16.msra.mxu0 %v1292
    %1965 = vmatmul.bf16.gmra.mxu0 %v51
    %v1966 = vpop.f32.mrf.mxu0
    %v1967 = vadd.f32 %v1954, %v1966
    %v1968 = vpop.f32.mrf.mxu0
    %1969 = vdwg.mxu0
    %1970 = vmatpush.bf16.msra.mxu0 %v1157
    %1971 = vmatpush.bf16.msra.mxu0 %v1149
    %1972 = vmatpush.bf16.msra.mxu0 %v1141
    %1973 = vmatpush.bf16.msra.mxu0 %v1133
    %1974 = vmatpush.bf16.msra.mxu0 %v1125
    %1975 = vmatpush.bf16.msra.mxu0 %v1117
    %1976 = vmatpush.bf16.msra.mxu0 %v1109
    %1977 = vmatpush.bf16.msra.mxu0 %v1101
    %1978 = vmatmul.bf16.gmra.mxu0 %v48
    %v1979 = vpop.f32.mrf.mxu0
    %v1980 = vadd.f32 %v317, %v1979
    %v1981 = vpop.f32.mrf.mxu0
    %1982 = vdwg.mxu0
    %1983 = vmatpush.bf16.msra.mxu0 %v1221
    %1984 = vmatpush.bf16.msra.mxu0 %v1213
    %1985 = vmatpush.bf16.msra.mxu0 %v1205
    %1986 = vmatpush.bf16.msra.mxu0 %v1197
    %1987 = vmatpush.bf16.msra.mxu0 %v1189
    %1988 = vmatpush.bf16.msra.mxu0 %v1181
    %1989 = vmatpush.bf16.msra.mxu0 %v1173
    %1990 = vmatpush.bf16.msra.mxu0 %v1165
    %1991 = vmatmul.bf16.gmra.mxu0 %v49
    %v1992 = vpop.f32.mrf.mxu0
    %v1993 = vadd.f32 %v1980, %v1992
    %v1994 = vpop.f32.mrf.mxu0
    %1995 = vdwg.mxu0
    %1996 = vmatpush.bf16.msra.mxu0 %v1285
    %1997 = vmatpush.bf16.msra.mxu0 %v1277
    %1998 = vmatpush.bf16.msra.mxu0 %v1269
    %1999 = vmatpush.bf16.msra.mxu0 %v1261
    %2000 = vmatpush.bf16.msra.mxu0 %v1253
    %2001 = vmatpush.bf16.msra.mxu0 %v1245
    %2002 = vmatpush.bf16.msra.mxu0 %v1237
    %2003 = vmatpush.bf16.msra.mxu0 %v1229
    %2004 = vmatmul.bf16.gmra.mxu0 %v50
    %v2005 = vpop.f32.mrf.mxu0
    %v2006 = vadd.f32 %v1993, %v2005
    %v2007 = vpop.f32.mrf.mxu0
    %2008 = vdwg.mxu0
    %2009 = vmatpush.bf16.msra.mxu0 %v1349
    %2010 = vmatpush.bf16.msra.mxu0 %v1341
    %2011 = vmatpush.bf16.msra.mxu0 %v1333
    %2012 = vmatpush.bf16.msra.mxu0 %v1325
    %2013 = vmatpush.bf16.msra.mxu0 %v1317
    %2014 = vmatpush.bf16.msra.mxu0 %v1309
    %2015 = vmatpush.bf16.msra.mxu0 %v1301
    %2016 = vmatpush.bf16.msra.mxu0 %v1293
    %2017 = vmatmul.bf16.gmra.mxu0 %v51
    %v2018 = vpop.f32.mrf.mxu0
    %v2019 = vadd.f32 %v2006, %v2018
    %v2020 = vpop.f32.mrf.mxu0
    %2021 = vdwg.mxu0
    %v2022 = vmax.f32 %v1655, 0.0
    %v2023 = vmax.f32 %v1707, 0.0
    %v2024 = vmax.f32 %v1759, 0.0
    %v2025 = vmax.f32 %v1811, 0.0
    %v2026 = vmax.f32 %v1863, 0.0
    %v2027 = vmax.f32 %v1915, 0.0
    %v2028 = vmax.f32 %v1967, 0.0
    %v2029 = vmax.f32 %v2019, 0.0
    %2030 = vst [vmem:[%s3] sm:$0xff] %v2022
    %2031 = vst [vmem:[%s3 + $0x8] sm:$0xff] %v2023
    %2032 = vst [vmem:[%s3 + $0x10] sm:$0xff] %v2024
    %2033 = vst [vmem:[%s3 + $0x18] sm:$0xff] %v2025
    %2034 = vst [vmem:[%s3 + $0x20] sm:$0xff] %v2026
    %2035 = vst [vmem:[%s3 + $0x28] sm:$0xff] %v2027
    %2036 = vst [vmem:[%s3 + $0x30] sm:$0xff] %v2028
    %2037 = vst [vmem:[%s3 + $0x38] sm:$0xff] %v2029
    // Predicated region
    $region22: #{neural_network_forward.4} parent=1 // pred_check
      _
    $region23: #{neural_network_forward.4} parent=1 // pred_check_branch
      %2039 = sbr.rel (0) target = $region25
    $region24: #{neural_network_forward.4} parent=1 // pred_region
      _
    $region25: #{neural_network_forward.4} parent=1 // pred_fallthru
      _
    // Predicated region
    $region26: #{neural_network_forward.4} parent=1 // pred_check
      _
    $region27: #{neural_network_forward.4} parent=1 // pred_check_branch
      %2041 = sbr.rel (0) target = $region29
    $region28: #{neural_network_forward.4} parent=1 // pred_region
      _
    $region29: #{neural_network_forward.4} parent=1 // pred_fallthru
      _
    %2042 = vsyncpa [#allocation3], 1
    %2043 = vsyncpa [#allocation5], 1

// kernel: neural_network_forward.7
$region0: #{neural_network_forward.7}
  #allocation0 [shape = 'u32[]', space=smem, size = 0x4, offset = 0x4, fixed_abs, tag = 'smem constant byte address 0x4 - core index']
  #allocation1 [shape = 'u32[72,128]{1,0:T(1,128)}', space=vmem, size = 0x9000, scoped, tag = 'internal scratch']
  %s0 = inlined_call_operand.vmem [shape: f32[8,256], index: 0, kind: input, shape index: {}]
  %s1 = inlined_call_operand.hbm [shape: bf16[256,256], index: 1, kind: input, shape index: {}]
  %s2 = inlined_call_operand.hbm [shape: f32[1,256], index: 2, kind: input, shape index: {}]
  %s3 = inlined_call_operand.hbm [shape: f32[8,256], index: 3, kind: output, shape index: {}]
  %s4 = sld [smem:[#allocation0]]
  $region30: #{neural_network_forward.7} parent=0
    _
  %s6 = ssub.s32 1, %s4
  %s7 = scalar_select 0, %s6, %s4
  $region1: #{neural_network_forward.7} parent=0
    #allocation2 [shape = 'u8[131072]{0}', space=vmem, size = 0x20000, scoped, tag = 'input window, operand 1, single buffered']
    #allocation3 [shape = 's32[1]{0}', space=sflag, size = 0x4, scoped, tag = 'scoped memory for neural_network_forward.7']
    #allocation4 [shape = 's32[1]{0}', space=sflag, size = 0x4, scoped, tag = 'scoped memory for neural_network_forward.7']
    #allocation5 [shape = 'u8[1024]{0}', space=vmem, size = 0x400, scoped, tag = 'input window, operand 2, single buffered']
    #allocation6 [shape = 's32[1]{0}', space=sflag, size = 0x4, scoped, tag = 'scoped memory for neural_network_forward.7']
    #allocation7 [shape = 'u8[8192]{0}', space=vmem, size = 0x2000, scoped, tag = 'output window, operand 0, single buffered']
    %8 = vsyncpa [#allocation3], 0
    %9 = vsyncpa [#allocation6], 0
    %10 = vsyncpa [#allocation4], 0
    // Predicated region
    $region2: #{neural_network_forward.7} parent=1 // pred_check
      _
    $region3: #{neural_network_forward.7} parent=1 // pred_check_branch
      %12 = sbr.rel (0) target = $region5
    $region4: #{neural_network_forward.7} parent=1 // pred_region
      _
    $region5: #{neural_network_forward.7} parent=1 // pred_fallthru
      _
    // Predicated region
    $region6: #{neural_network_forward.7} parent=1 // pred_check
      _
    $region7: #{neural_network_forward.7} parent=1 // pred_check_branch
      %14 = sbr.rel (0) target = $region9
    $region8: #{neural_network_forward.7} parent=1 // pred_region
      %16 = vsyncadd [#allocation3], 0
      %s17 = sshll.u32 %s1, 4
      %s18 = int_to_ptr.hbm [resolvable:$true] %s17
      %s19 = sshll.u32 [#allocation2], 4
      %s20 = int_to_ptr.vmem [resolvable:$true] %s19
      %25 = dma.hbm_to_vmem [thread:$0]  %s18, 4096, %s20, [#allocation3], 128, 128, 8
    $region9: #{neural_network_forward.7} parent=1 // pred_fallthru
      _
    // Predicated region
    $region10: #{neural_network_forward.7} parent=1 // pred_check
      _
    $region11: #{neural_network_forward.7} parent=1 // pred_check_branch
      %27 = sbr.rel (0) target = $region13
    $region12: #{neural_network_forward.7} parent=1 // pred_region
      %29 = vsyncadd [#allocation6], 0
      %s31 = sshll.u32 %s2, 4
      %s32 = int_to_ptr.hbm [resolvable:$true] %s31
      %s33 = sshll.u32 [#allocation5], 4
      %s34 = int_to_ptr.vmem [resolvable:$true] %s33
      %36 = dma.hbm_to_vmem [thread:$0]  %s32, 32, %s34, [#allocation6]
    $region13: #{neural_network_forward.7} parent=1 // pred_fallthru
      _
    // Predicated region
    $region14: #{neural_network_forward.7} parent=1 // pred_check
      _
    $region15: #{neural_network_forward.7} parent=1 // pred_check_branch
      %38 = sbr.rel (0) target = $region17
    $region16: #{neural_network_forward.7} parent=1 // pred_region
      %40 = dma.done [#allocation3], 4096
    $region17: #{neural_network_forward.7} parent=1 // pred_fallthru
      _
    // Predicated region
    $region18: #{neural_network_forward.7} parent=1 // pred_check
      _
    $region19: #{neural_network_forward.7} parent=1 // pred_check_branch
      %42 = sbr.rel (0) target = $region21
    $region20: #{neural_network_forward.7} parent=1 // pred_region
      %44 = dma.done [#allocation6], 32
    $region21: #{neural_network_forward.7} parent=1 // pred_fallthru
      _
    %v45 = vld [vmem:[%s0] sm:$0xff]
    %v46 = vld [vmem:[%s0 + $0x8] sm:$0xff]
    %v47 = vpack.c.bf16 %v45, %v45
    %v48 = vpack.c.bf16 %v46, %v46
    %v49 = vld [vmem:[#allocation2] sm:$0xff]
    %v50 = vld [vmem:[#allocation2 + $0x8] sm:$0xff]
    %v51 = vld [vmem:[#allocation2 + $0x10] sm:$0xff]
    %v52 = vld [vmem:[#allocation2 + $0x18] sm:$0xff]
    %v53 = vld [vmem:[#allocation2 + $0x20] sm:$0xff]
    %v54 = vld [vmem:[#allocation2 + $0x28] sm:$0xff]
    %v55 = vld [vmem:[#allocation2 + $0x30] sm:$0xff]
    %v56 = vld [vmem:[#allocation2 + $0x38] sm:$0xff]
    %v57 = vld [vmem:[#allocation2 + $0x40] sm:$0xff]
    %v58 = vld [vmem:[#allocation2 + $0x48] sm:$0xff]
    %v59 = vld [vmem:[#allocation2 + $0x50] sm:$0xff]
    %v60 = vld [vmem:[#allocation2 + $0x58] sm:$0xff]
    %v61 = vld [vmem:[#allocation2 + $0x60] sm:$0xff]
    %v62 = vld [vmem:[#allocation2 + $0x68] sm:$0xff]
    %v63 = vld [vmem:[#allocation2 + $0x70] sm:$0xff]
    %v64 = vld [vmem:[#allocation2 + $0x78] sm:$0xff]
    %v65 = vld [vmem:[#allocation2 + $0x80] sm:$0xff]
    %v66 = vld [vmem:[#allocation2 + $0x88] sm:$0xff]
    %v67 = vld [vmem:[#allocation2 + $0x90] sm:$0xff]
    %v68 = vld [vmem:[#allocation2 + $0x98] sm:$0xff]
    %v69 = vld [vmem:[#allocation2 + $0xa0] sm:$0xff]
    %v70 = vld [vmem:[#allocation2 + $0xa8] sm:$0xff]
    %v71 = vld [vmem:[#allocation2 + $0xb0] sm:$0xff]
    %v72 = vld [vmem:[#allocation2 + $0xb8] sm:$0xff]
    %v73 = vld [vmem:[#allocation2 + $0xc0] sm:$0xff]
    %v74 = vld [vmem:[#allocation2 + $0xc8] sm:$0xff]
    %v75 = vld [vmem:[#allocation2 + $0xd0] sm:$0xff]
    %v76 = vld [vmem:[#allocation2 + $0xd8] sm:$0xff]
    %v77 = vld [vmem:[#allocation2 + $0xe0] sm:$0xff]
    %v78 = vld [vmem:[#allocation2 + $0xe8] sm:$0xff]
    %v79 = vld [vmem:[#allocation2 + $0xf0] sm:$0xff]
    %v80 = vld [vmem:[#allocation2 + $0xf8] sm:$0xff]
    %v81 = vld [vmem:[#allocation5] sm:$0x3]
    %v83 = vperm.slane %v81, 0
    %v84 = vperm.slane %v81, 1
    %v119 = vunpack.c.l.b16 %v49
    %v120 = vunpack.c.h.b16 %v49
    %v121 = vunpack.c.l.b16 %v50
    %v122 = vunpack.c.h.b16 %v50
    %v123 = vunpack.c.l.b16 %v51
    %v124 = vunpack.c.h.b16 %v51
    %v125 = vunpack.c.l.b16 %v52
    %v126 = vunpack.c.h.b16 %v52
    %v127 = vunpack.c.l.b16 %v53
    %v128 = vunpack.c.h.b16 %v53
    %v129 = vunpack.c.l.b16 %v54
    %v130 = vunpack.c.h.b16 %v54
    %v131 = vunpack.c.l.b16 %v55
    %v132 = vunpack.c.h.b16 %v55
    %v133 = vunpack.c.l.b16 %v56
    %v134 = vunpack.c.h.b16 %v56
    %v135 = vunpack.c.l.b16 %v57
    %v136 = vunpack.c.h.b16 %v57
    %v137 = vunpack.c.l.b16 %v58
    %v138 = vunpack.c.h.b16 %v58
    %v139 = vunpack.c.l.b16 %v59
    %v140 = vunpack.c.h.b16 %v59
    %v141 = vunpack.c.l.b16 %v60
    %v142 = vunpack.c.h.b16 %v60
    %v143 = vunpack.c.l.b16 %v61
    %v144 = vunpack.c.h.b16 %v61
    %v145 = vunpack.c.l.b16 %v62
    %v146 = vunpack.c.h.b16 %v62
    %v147 = vunpack.c.l.b16 %v63
    %v148 = vunpack.c.h.b16 %v63
    %v149 = vunpack.c.l.b16 %v64
    %v150 = vunpack.c.h.b16 %v64
    %v151 = vunpack.c.l.b16 %v65
    %v152 = vunpack.c.h.b16 %v65
    %v153 = vunpack.c.l.b16 %v66
    %v154 = vunpack.c.h.b16 %v66
    %v155 = vunpack.c.l.b16 %v67
    %v156 = vunpack.c.h.b16 %v67
    %v157 = vunpack.c.l.b16 %v68
    %v158 = vunpack.c.h.b16 %v68
    %v159 = vunpack.c.l.b16 %v69
    %v160 = vunpack.c.h.b16 %v69
    %v161 = vunpack.c.l.b16 %v70
    %v162 = vunpack.c.h.b16 %v70
    %v163 = vunpack.c.l.b16 %v71
    %v164 = vunpack.c.h.b16 %v71
    %v165 = vunpack.c.l.b16 %v72
    %v166 = vunpack.c.h.b16 %v72
    %v167 = vunpack.c.l.b16 %v73
    %v168 = vunpack.c.h.b16 %v73
    %v169 = vunpack.c.l.b16 %v74
    %v170 = vunpack.c.h.b16 %v74
    %v171 = vunpack.c.l.b16 %v75
    %v172 = vunpack.c.h.b16 %v75
    %v173 = vunpack.c.l.b16 %v76
    %v174 = vunpack.c.h.b16 %v76
    %v175 = vunpack.c.l.b16 %v77
    %v176 = vunpack.c.h.b16 %v77
    %v177 = vunpack.c.l.b16 %v78
    %v178 = vunpack.c.h.b16 %v78
    %v179 = vunpack.c.l.b16 %v79
    %v180 = vunpack.c.h.b16 %v79
    %v181 = vunpack.c.l.b16 %v80
    %v182 = vunpack.c.h.b16 %v80
    %v183 = vpack.c.b16 %v121, %v119
    %v184 = vpack.c.b16 %v122, %v120
    %v185 = vpack.c.b16 %v125, %v123
    %v186 = vpack.c.b16 %v126, %v124
    %v187 = vpack.c.b16 %v129, %v127
    %v188 = vpack.c.b16 %v130, %v128
    %v189 = vpack.c.b16 %v133, %v131
    %v190 = vpack.c.b16 %v134, %v132
    %v191 = vpack.c.b16 %v137, %v135
    %v192 = vpack.c.b16 %v138, %v136
    %v193 = vpack.c.b16 %v141, %v139
    %v194 = vpack.c.b16 %v142, %v140
    %v195 = vpack.c.b16 %v145, %v143
    %v196 = vpack.c.b16 %v146, %v144
    %v197 = vpack.c.b16 %v149, %v147
    %v198 = vpack.c.b16 %v150, %v148
    %v199 = vpack.c.b16 %v153, %v151
    %v200 = vpack.c.b16 %v154, %v152
    %v201 = vpack.c.b16 %v157, %v155
    %v202 = vpack.c.b16 %v158, %v156
    %v203 = vpack.c.b16 %v161, %v159
    %v204 = vpack.c.b16 %v162, %v160
    %v205 = vpack.c.b16 %v165, %v163
    %v206 = vpack.c.b16 %v166, %v164
    %v207 = vpack.c.b16 %v169, %v167
    %v208 = vpack.c.b16 %v170, %v168
    %v209 = vpack.c.b16 %v173, %v171
    %v210 = vpack.c.b16 %v174, %v172
    %v211 = vpack.c.b16 %v177, %v175
    %v212 = vpack.c.b16 %v178, %v176
    %v213 = vpack.c.b16 %v181, %v179
    %v214 = vpack.c.b16 %v182, %v180
    %247 = vmatpush.bf16.msra.mxu0 %v197
    %248 = vmatpush.bf16.msra.mxu0 %v195
    %249 = vmatpush.bf16.msra.mxu0 %v193
    %250 = vmatpush.bf16.msra.mxu0 %v191
    %251 = vmatpush.bf16.msra.mxu0 %v189
    %252 = vmatpush.bf16.msra.mxu0 %v187
    %253 = vmatpush.bf16.msra.mxu0 %v185
    %254 = vmatpush.bf16.msra.mxu0 %v183
    %255 = vmatmul.bf16.gmra.mxu0 %v47
    %v256 = vpop.f32.mrf.mxu0
    %v257 = vadd.f32 %v83, %v256
    %v258 = vpop.f32.mrf.mxu0
    %259 = vdwg.mxu0
    %260 = vmatpush.bf16.msra.mxu0 %v213
    %261 = vmatpush.bf16.msra.mxu0 %v211
    %262 = vmatpush.bf16.msra.mxu0 %v209
    %263 = vmatpush.bf16.msra.mxu0 %v207
    %264 = vmatpush.bf16.msra.mxu0 %v205
    %265 = vmatpush.bf16.msra.mxu0 %v203
    %266 = vmatpush.bf16.msra.mxu0 %v201
    %267 = vmatpush.bf16.msra.mxu0 %v199
    %268 = vmatmul.bf16.gmra.mxu0 %v48
    %v269 = vpop.f32.mrf.mxu0
    %v270 = vadd.f32 %v257, %v269
    %v271 = vpop.f32.mrf.mxu0
    %272 = vdwg.mxu0
    %273 = vmatpush.bf16.msra.mxu0 %v198
    %274 = vmatpush.bf16.msra.mxu0 %v196
    %275 = vmatpush.bf16.msra.mxu0 %v194
    %276 = vmatpush.bf16.msra.mxu0 %v192
    %277 = vmatpush.bf16.msra.mxu0 %v190
    %278 = vmatpush.bf16.msra.mxu0 %v188
    %279 = vmatpush.bf16.msra.mxu0 %v186
    %280 = vmatpush.bf16.msra.mxu0 %v184
    %281 = vmatmul.bf16.gmra.mxu0 %v47
    %v282 = vpop.f32.mrf.mxu0
    %v283 = vadd.f32 %v84, %v282
    %v284 = vpop.f32.mrf.mxu0
    %285 = vdwg.mxu0
    %286 = vmatpush.bf16.msra.mxu0 %v214
    %287 = vmatpush.bf16.msra.mxu0 %v212
    %288 = vmatpush.bf16.msra.mxu0 %v210
    %289 = vmatpush.bf16.msra.mxu0 %v208
    %290 = vmatpush.bf16.msra.mxu0 %v206
    %291 = vmatpush.bf16.msra.mxu0 %v204
    %292 = vmatpush.bf16.msra.mxu0 %v202
    %293 = vmatpush.bf16.msra.mxu0 %v200
    %294 = vmatmul.bf16.gmra.mxu0 %v48
    %v295 = vpop.f32.mrf.mxu0
    %v296 = vadd.f32 %v283, %v295
    %v297 = vpop.f32.mrf.mxu0
    %298 = vdwg.mxu0
    %v299 = vmul.f32 %v270, %v270
    %v300 = vmul.f32 %v296, %v296
    %v301 = vadd.f32 %v299, %v300
    %302 = vadd.xlane.f32.xlu0 %v301
    %v303 = vpop.xlane.xlu0 %302
    %v304 = vmax.f32 %v303, 1e-24
    %v305 = vrsqrt.pop %v304
    %v306 = vmul.f32 %v305, %v304
    %v307 = vmul.f32 %v306, %v305
    %v308 = vmul.f32 0.5, %v307
    %v309 = vsub.f32 1.5, %v308
    %v310 = vmul.f32 %v305, %v309
    %vm311 = vweird.f32 %v304
    %vm312 = vweird.f32 %v305
    %vm313 = vmor %vm311, %vm312
    %v314 = vsel %vm313, %v305, %v310
    %v315 = vmul.f32 %v270, %v314
    %v316 = vmul.f32 %v296, %v314
    %317 = vst [vmem:[#allocation7] sm:$0xff] %v315
    %318 = vst [vmem:[#allocation7 + $0x8] sm:$0xff] %v316
    // Predicated region
    $region22: #{neural_network_forward.7} parent=1 // pred_check
      _
    $region23: #{neural_network_forward.7} parent=1 // pred_check_branch
      %320 = sbr.rel (0) target = $region25
    $region24: #{neural_network_forward.7} parent=1 // pred_region
      %322 = vsyncadd [#allocation4], 0
      %s324 = sshll.u32 [#allocation7], 4
      %s325 = int_to_ptr.vmem [resolvable:$true] %s324
      %s326 = sshll.u32 %s3, 4
      %s327 = int_to_ptr.hbm [resolvable:$true] %s326
      %329 = dma.vmem_to_hbm [thread:$0]  %s325, 256, %s327, [#allocation4]
    $region25: #{neural_network_forward.7} parent=1 // pred_fallthru
      _
    // Predicated region
    $region26: #{neural_network_forward.7} parent=1 // pred_check
      _
    $region27: #{neural_network_forward.7} parent=1 // pred_check_branch
      %331 = sbr.rel (0) target = $region29
    $region28: #{neural_network_forward.7} parent=1 // pred_region
      %333 = dma.done [#allocation4], 256
    $region29: #{neural_network_forward.7} parent=1 // pred_fallthru
      _
    %334 = vsyncpa [#allocation3], 1
    %335 = vsyncpa [#allocation6], 1
    %336 = vsyncpa [#allocation4], 1

// kernel: neural_network_forward.5
$region0: #{neural_network_forward.5}
  #allocation0 [shape = 'u32[]', space=smem, size = 0x4, offset = 0x4, fixed_abs, tag = 'smem constant byte address 0x4 - core index']
  #allocation1 [shape = 'u32[72,128]{1,0:T(1,128)}', space=vmem, size = 0x9000, scoped, tag = 'internal scratch']
  %s0 = inlined_call_operand.vmem [shape: f32[8,1024], index: 0, kind: input, shape index: {}]
  %s1 = inlined_call_operand.hbm [shape: bf16[1024,1024], index: 1, kind: input, shape index: {}]
  %s2 = inlined_call_operand.hbm [shape: f32[1,1024], index: 2, kind: input, shape index: {}]
  %s3 = inlined_call_operand.vmem [shape: f32[8,1024], index: 3, kind: output, shape index: {}]
  %s4 = sld [smem:[#allocation0]]
  $region30: #{neural_network_forward.5} parent=0
    _
  %s6 = ssub.s32 1, %s4
  %s7 = scalar_select 0, %s6, %s4
  $region1: #{neural_network_forward.5} parent=0
    #allocation2 [shape = 'u8[2097152]{0}', space=vmem, size = 0x200000, scoped, tag = 'input window, operand 1, single buffered']
    #allocation3 [shape = 's32[1]{0}', space=sflag, size = 0x4, scoped, tag = 'scoped memory for neural_network_forward.5']
    #allocation4 [shape = 'u8[4096]{0}', space=vmem, size = 0x1000, scoped, tag = 'input window, operand 2, single buffered']
    #allocation5 [shape = 's32[1]{0}', space=sflag, size = 0x4, scoped, tag = 'scoped memory for neural_network_forward.5']
    %8 = vsyncpa [#allocation3], 0
    %9 = vsyncpa [#allocation5], 0
    // Predicated region
    $region2: #{neural_network_forward.5} parent=1 // pred_check
      _
    $region3: #{neural_network_forward.5} parent=1 // pred_check_branch
      %11 = sbr.rel (0) target = $region5
    $region4: #{neural_network_forward.5} parent=1 // pred_region
      _
    $region5: #{neural_network_forward.5} parent=1 // pred_fallthru
      _
    // Predicated region
    $region6: #{neural_network_forward.5} parent=1 // pred_check
      _
    $region7: #{neural_network_forward.5} parent=1 // pred_check_branch
      %13 = sbr.rel (0) target = $region9
    $region8: #{neural_network_forward.5} parent=1 // pred_region
      %15 = vsyncadd [#allocation3], 0
      %s16 = sshll.u32 %s1, 4
      %s17 = int_to_ptr.hbm [resolvable:$true] %s16
      %s18 = sshll.u32 [#allocation2], 4
      %s19 = int_to_ptr.vmem [resolvable:$true] %s18
      %24 = dma.hbm_to_vmem [thread:$0]  %s17, 65536, %s19, [#allocation3], 512, 512, 32
    $region9: #{neural_network_forward.5} parent=1 // pred_fallthru
      _
    // Predicated region
    $region10: #{neural_network_forward.5} parent=1 // pred_check
      _
    $region11: #{neural_network_forward.5} parent=1 // pred_check_branch
      %26 = sbr.rel (0) target = $region13
    $region12: #{neural_network_forward.5} parent=1 // pred_region
      %28 = vsyncadd [#allocation5], 0
      %s30 = sshll.u32 %s2, 4
      %s31 = int_to_ptr.hbm [resolvable:$true] %s30
      %s32 = sshll.u32 [#allocation4], 4
      %s33 = int_to_ptr.vmem [resolvable:$true] %s32
      %35 = dma.hbm_to_vmem [thread:$0]  %s31, 128, %s33, [#allocation5]
    $region13: #{neural_network_forward.5} parent=1 // pred_fallthru
      _
    // Predicated region
    $region14: #{neural_network_forward.5} parent=1 // pred_check
      _
    $region15: #{neural_network_forward.5} parent=1 // pred_check_branch
      %37 = sbr.rel (0) target = $region17
    $region16: #{neural_network_forward.5} parent=1 // pred_region
      %39 = dma.done [#allocation3], 65536
    $region17: #{neural_network_forward.5} parent=1 // pred_fallthru
      _
    // Predicated region
    $region18: #{neural_network_forward.5} parent=1 // pred_check
      _
    $region19: #{neural_network_forward.5} parent=1 // pred_check_branch
      %41 = sbr.rel (0) target = $region21
    $region20: #{neural_network_forward.5} parent=1 // pred_region
      %43 = dma.done [#allocation5], 128
    $region21: #{neural_network_forward.5} parent=1 // pred_fallthru
      _
    %v44 = vld [vmem:[%s0] sm:$0xff]
    %v45 = vld [vmem:[%s0 + $0x8] sm:$0xff]
    %v46 = vld [vmem:[%s0 + $0x10] sm:$0xff]
    %v47 = vld [vmem:[%s0 + $0x18] sm:$0xff]
    %v48 = vld [vmem:[%s0 + $0x20] sm:$0xff]
    %v49 = vld [vmem:[%s0 + $0x28] sm:$0xff]
    %v50 = vld [vmem:[%s0 + $0x30] sm:$0xff]
    %v51 = vld [vmem:[%s0 + $0x38] sm:$0xff]
    %v52 = vpack.c.bf16 %v44, %v44
    %v53 = vpack.c.bf16 %v45, %v45
    %v54 = vpack.c.bf16 %v46, %v46
    %v55 = vpack.c.bf16 %v47, %v47
    %v56 = vpack.c.bf16 %v48, %v48
    %v57 = vpack.c.bf16 %v49, %v49
    %v58 = vpack.c.bf16 %v50, %v50
    %v59 = vpack.c.bf16 %v51, %v51
    %v60 = vld [vmem:[#allocation2] sm:$0xff]
    %v61 = vld [vmem:[#allocation2 + $0x8] sm:$0xff]
    %v62 = vld [vmem:[#allocation2 + $0x10] sm:$0xff]
    %v63 = vld [vmem:[#allocation2 + $0x18] sm:$0xff]
    %v64 = vld [vmem:[#allocation2 + $0x20] sm:$0xff]
    %v65 = vld [vmem:[#allocation2 + $0x28] sm:$0xff]
    %v66 = vld [vmem:[#allocation2 + $0x30] sm:$0xff]
    %v67 = vld [vmem:[#allocation2 + $0x38] sm:$0xff]
    %v68 = vld [vmem:[#allocation2 + $0x40] sm:$0xff]
    %v69 = vld [vmem:[#allocation2 + $0x48] sm:$0xff]
    %v70 = vld [vmem:[#allocation2 + $0x50] sm:$0xff]
    %v71 = vld [vmem:[#allocation2 + $0x58] sm:$0xff]
    %v72 = vld [vmem:[#allocation2 + $0x60] sm:$0xff]
    %v73 = vld [vmem:[#allocation2 + $0x68] sm:$0xff]
    %v74 = vld [vmem:[#allocation2 + $0x70] sm:$0xff]
    %v75 = vld [vmem:[#allocation2 + $0x78] sm:$0xff]
    %v76 = vld [vmem:[#allocation2 + $0x80] sm:$0xff]
    %v77 = vld [vmem:[#allocation2 + $0x88] sm:$0xff]
    %v78 = vld [vmem:[#allocation2 + $0x90] sm:$0xff]
    %v79 = vld [vmem:[#allocation2 + $0x98] sm:$0xff]
    %v80 = vld [vmem:[#allocation2 + $0xa0] sm:$0xff]
    %v81 = vld [vmem:[#allocation2 + $0xa8] sm:$0xff]
    %v82 = vld [vmem:[#allocation2 + $0xb0] sm:$0xff]
    %v83 = vld [vmem:[#allocation2 + $0xb8] sm:$0xff]
    %v84 = vld [vmem:[#allocation2 + $0xc0] sm:$0xff]
    %v85 = vld [vmem:[#allocation2 + $0xc8] sm:$0xff]
    %v86 = vld [vmem:[#allocation2 + $0xd0] sm:$0xff]
    %v87 = vld [vmem:[#allocation2 + $0xd8] sm:$0xff]
    %v88 = vld [vmem:[#allocation2 + $0xe0] sm:$0xff]
    %v89 = vld [vmem:[#allocation2 + $0xe8] sm:$0xff]
    %v90 = vld [vmem:[#allocation2 + $0xf0] sm:$0xff]
    %v91 = vld [vmem:[#allocation2 + $0xf8] sm:$0xff]
    %v92 = vld [vmem:[#allocation2 + $0x100] sm:$0xff]
    %v93 = vld [vmem:[#allocation2 + $0x108] sm:$0xff]
    %v94 = vld [vmem:[#allocation2 + $0x110] sm:$0xff]
    %v95 = vld [vmem:[#allocation2 + $0x118] sm:$0xff]
    %v96 = vld [vmem:[#allocation2 + $0x120] sm:$0xff]
    %v97 = vld [vmem:[#allocation2 + $0x128] sm:$0xff]
    %v98 = vld [vmem:[#allocation2 + $0x130] sm:$0xff]
    %v99 = vld [vmem:[#allocation2 + $0x138] sm:$0xff]
    %v100 = vld [vmem:[#allocation2 + $0x140] sm:$0xff]
    %v101 = vld [vmem:[#allocation2 + $0x148] sm:$0xff]
    %v102 = vld [vmem:[#allocation2 + $0x150] sm:$0xff]
    %v103 = vld [vmem:[#allocation2 + $0x158] sm:$0xff]
    %v104 = vld [vmem:[#allocation2 + $0x160] sm:$0xff]
    %v105 = vld [vmem:[#allocation2 + $0x168] sm:$0xff]
    %v106 = vld [vmem:[#allocation2 + $0x170] sm:$0xff]
    %v107 = vld [vmem:[#allocation2 + $0x178] sm:$0xff]
    %v108 = vld [vmem:[#allocation2 + $0x180] sm:$0xff]
    %v109 = vld [vmem:[#allocation2 + $0x188] sm:$0xff]
    %v110 = vld [vmem:[#allocation2 + $0x190] sm:$0xff]
    %v111 = vld [vmem:[#allocation2 + $0x198] sm:$0xff]
    %v112 = vld [vmem:[#allocation2 + $0x1a0] sm:$0xff]
    %v113 = vld [vmem:[#allocation2 + $0x1a8] sm:$0xff]
    %v114 = vld [vmem:[#allocation2 + $0x1b0] sm:$0xff]
    %v115 = vld [vmem:[#allocation2 + $0x1b8] sm:$0xff]
    %v116 = vld [vmem:[#allocation2 + $0x1c0] sm:$0xff]
    %v117 = vld [vmem:[#allocation2 + $0x1c8] sm:$0xff]
    %v118 = vld [vmem:[#allocation2 + $0x1d0] sm:$0xff]
    %v119 = vld [vmem:[#allocation2 + $0x1d8] sm:$0xff]
    %v120 = vld [vmem:[#allocation2 + $0x1e0] sm:$0xff]
    %v121 = vld [vmem:[#allocation2 + $0x1e8] sm:$0xff]
    %v122 = vld [vmem:[#allocation2 + $0x1f0] sm:$0xff]
    %v123 = vld [vmem:[#allocation2 + $0x1f8] sm:$0xff]
    %v124 = vld [vmem:[#allocation2 + $0x200] sm:$0xff]
    %v125 = vld [vmem:[#allocation2 + $0x208] sm:$0xff]
    %v126 = vld [vmem:[#allocation2 + $0x210] sm:$0xff]
    %v127 = vld [vmem:[#allocation2 + $0x218] sm:$0xff]
    %v128 = vld [vmem:[#allocation2 + $0x220] sm:$0xff]
    %v129 = vld [vmem:[#allocation2 + $0x228] sm:$0xff]
    %v130 = vld [vmem:[#allocation2 + $0x230] sm:$0xff]
    %v131 = vld [vmem:[#allocation2 + $0x238] sm:$0xff]
    %v132 = vld [vmem:[#allocation2 + $0x240] sm:$0xff]
    %v133 = vld [vmem:[#allocation2 + $0x248] sm:$0xff]
    %v134 = vld [vmem:[#allocation2 + $0x250] sm:$0xff]
    %v135 = vld [vmem:[#allocation2 + $0x258] sm:$0xff]
    %v136 = vld [vmem:[#allocation2 + $0x260] sm:$0xff]
    %v137 = vld [vmem:[#allocation2 + $0x268] sm:$0xff]
    %v138 = vld [vmem:[#allocation2 + $0x270] sm:$0xff]
    %v139 = vld [vmem:[#allocation2 + $0x278] sm:$0xff]
    %v140 = vld [vmem:[#allocation2 + $0x280] sm:$0xff]
    %v141 = vld [vmem:[#allocation2 + $0x288] sm:$0xff]
    %v142 = vld [vmem:[#allocation2 + $0x290] sm:$0xff]
    %v143 = vld [vmem:[#allocation2 + $0x298] sm:$0xff]
    %v144 = vld [vmem:[#allocation2 + $0x2a0] sm:$0xff]
    %v145 = vld [vmem:[#allocation2 + $0x2a8] sm:$0xff]
    %v146 = vld [vmem:[#allocation2 + $0x2b0] sm:$0xff]
    %v147 = vld [vmem:[#allocation2 + $0x2b8] sm:$0xff]
    %v148 = vld [vmem:[#allocation2 + $0x2c0] sm:$0xff]
    %v149 = vld [vmem:[#allocation2 + $0x2c8] sm:$0xff]
    %v150 = vld [vmem:[#allocation2 + $0x2d0] sm:$0xff]
    %v151 = vld [vmem:[#allocation2 + $0x2d8] sm:$0xff]
    %v152 = vld [vmem:[#allocation2 + $0x2e0] sm:$0xff]
    %v153 = vld [vmem:[#allocation2 + $0x2e8] sm:$0xff]
    %v154 = vld [vmem:[#allocation2 + $0x2f0] sm:$0xff]
    %v155 = vld [vmem:[#allocation2 + $0x2f8] sm:$0xff]
    %v156 = vld [vmem:[#allocation2 + $0x300] sm:$0xff]
    %v157 = vld [vmem:[#allocation2 + $0x308] sm:$0xff]
    %v158 = vld [vmem:[#allocation2 + $0x310] sm:$0xff]
    %v159 = vld [vmem:[#allocation2 + $0x318] sm:$0xff]
    %v160 = vld [vmem:[#allocation2 + $0x320] sm:$0xff]
    %v161 = vld [vmem:[#allocation2 + $0x328] sm:$0xff]
    %v162 = vld [vmem:[#allocation2 + $0x330] sm:$0xff]
    %v163 = vld [vmem:[#allocation2 + $0x338] sm:$0xff]
    %v164 = vld [vmem:[#allocation2 + $0x340] sm:$0xff]
    %v165 = vld [vmem:[#allocation2 + $0x348] sm:$0xff]
    %v166 = vld [vmem:[#allocation2 + $0x350] sm:$0xff]
    %v167 = vld [vmem:[#allocation2 + $0x358] sm:$0xff]
    %v168 = vld [vmem:[#allocation2 + $0x360] sm:$0xff]
    %v169 = vld [vmem:[#allocation2 + $0x368] sm:$0xff]
    %v170 = vld [vmem:[#allocation2 + $0x370] sm:$0xff]
    %v171 = vld [vmem:[#allocation2 + $0x378] sm:$0xff]
    %v172 = vld [vmem:[#allocation2 + $0x380] sm:$0xff]
    %v173 = vld [vmem:[#allocation2 + $0x388] sm:$0xff]
    %v174 = vld [vmem:[#allocation2 + $0x390] sm:$0xff]
    %v175 = vld [vmem:[#allocation2 + $0x398] sm:$0xff]
    %v176 = vld [vmem:[#allocation2 + $0x3a0] sm:$0xff]
    %v177 = vld [vmem:[#allocation2 + $0x3a8] sm:$0xff]
    %v178 = vld [vmem:[#allocation2 + $0x3b0] sm:$0xff]
    %v179 = vld [vmem:[#allocation2 + $0x3b8] sm:$0xff]
    %v180 = vld [vmem:[#allocation2 + $0x3c0] sm:$0xff]
    %v181 = vld [vmem:[#allocation2 + $0x3c8] sm:$0xff]
    %v182 = vld [vmem:[#allocation2 + $0x3d0] sm:$0xff]
    %v183 = vld [vmem:[#allocation2 + $0x3d8] sm:$0xff]
    %v184 = vld [vmem:[#allocation2 + $0x3e0] sm:$0xff]
    %v185 = vld [vmem:[#allocation2 + $0x3e8] sm:$0xff]
    %v186 = vld [vmem:[#allocation2 + $0x3f0] sm:$0xff]
    %v187 = vld [vmem:[#allocation2 + $0x3f8] sm:$0xff]
    %v188 = vld [vmem:[#allocation2 + $0x400] sm:$0xff]
    %v189 = vld [vmem:[#allocation2 + $0x408] sm:$0xff]
    %v190 = vld [vmem:[#allocation2 + $0x410] sm:$0xff]
    %v191 = vld [vmem:[#allocation2 + $0x418] sm:$0xff]
    %v192 = vld [vmem:[#allocation2 + $0x420] sm:$0xff]
    %v193 = vld [vmem:[#allocation2 + $0x428] sm:$0xff]
    %v194 = vld [vmem:[#allocation2 + $0x430] sm:$0xff]
    %v195 = vld [vmem:[#allocation2 + $0x438] sm:$0xff]
    %v196 = vld [vmem:[#allocation2 + $0x440] sm:$0xff]
    %v197 = vld [vmem:[#allocation2 + $0x448] sm:$0xff]
    %v198 = vld [vmem:[#allocation2 + $0x450] sm:$0xff]
    %v199 = vld [vmem:[#allocation2 + $0x458] sm:$0xff]
    %v200 = vld [vmem:[#allocation2 + $0x460] sm:$0xff]
    %v201 = vld [vmem:[#allocation2 + $0x468] sm:$0xff]
    %v202 = vld [vmem:[#allocation2 + $0x470] sm:$0xff]
    %v203 = vld [vmem:[#allocation2 + $0x478] sm:$0xff]
    %v204 = vld [vmem:[#allocation2 + $0x480] sm:$0xff]
    %v205 = vld [vmem:[#allocation2 + $0x488] sm:$0xff]
    %v206 = vld [vmem:[#allocation2 + $0x490] sm:$0xff]
    %v207 = vld [vmem:[#allocation2 + $0x498] sm:$0xff]
    %v208 = vld [vmem:[#allocation2 + $0x4a0] sm:$0xff]
    %v209 = vld [vmem:[#allocation2 + $0x4a8] sm:$0xff]
    %v210 = vld [vmem:[#allocation2 + $0x4b0] sm:$0xff]
    %v211 = vld [vmem:[#allocation2 + $0x4b8] sm:$0xff]
    %v212 = vld [vmem:[#allocation2 + $0x4c0] sm:$0xff]
    %v213 = vld [vmem:[#allocation2 + $0x4c8] sm:$0xff]
    %v214 = vld [vmem:[#allocation2 + $0x4d0] sm:$0xff]
    %v215 = vld [vmem:[#allocation2 + $0x4d8] sm:$0xff]
    %v216 = vld [vmem:[#allocation2 + $0x4e0] sm:$0xff]
    %v217 = vld [vmem:[#allocation2 + $0x4e8] sm:$0xff]
    %v218 = vld [vmem:[#allocation2 + $0x4f0] sm:$0xff]
    %v219 = vld [vmem:[#allocation2 + $0x4f8] sm:$0xff]
    %v220 = vld [vmem:[#allocation2 + $0x500] sm:$0xff]
    %v221 = vld [vmem:[#allocation2 + $0x508] sm:$0xff]
    %v222 = vld [vmem:[#allocation2 + $0x510] sm:$0xff]
    %v223 = vld [vmem:[#allocation2 + $0x518] sm:$0xff]
    %v224 = vld [vmem:[#allocation2 + $0x520] sm:$0xff]
    %v225 = vld [vmem:[#allocation2 + $0x528] sm:$0xff]
    %v226 = vld [vmem:[#allocation2 + $0x530] sm:$0xff]
    %v227 = vld [vmem:[#allocation2 + $0x538] sm:$0xff]
    %v228 = vld [vmem:[#allocation2 + $0x540] sm:$0xff]
    %v229 = vld [vmem:[#allocation2 + $0x548] sm:$0xff]
    %v230 = vld [vmem:[#allocation2 + $0x550] sm:$0xff]
    %v231 = vld [vmem:[#allocation2 + $0x558] sm:$0xff]
    %v232 = vld [vmem:[#allocation2 + $0x560] sm:$0xff]
    %v233 = vld [vmem:[#allocation2 + $0x568] sm:$0xff]
    %v234 = vld [vmem:[#allocation2 + $0x570] sm:$0xff]
    %v235 = vld [vmem:[#allocation2 + $0x578] sm:$0xff]
    %v236 = vld [vmem:[#allocation2 + $0x580] sm:$0xff]
    %v237 = vld [vmem:[#allocation2 + $0x588] sm:$0xff]
    %v238 = vld [vmem:[#allocation2 + $0x590] sm:$0xff]
    %v239 = vld [vmem:[#allocation2 + $0x598] sm:$0xff]
    %v240 = vld [vmem:[#allocation2 + $0x5a0] sm:$0xff]
    %v241 = vld [vmem:[#allocation2 + $0x5a8] sm:$0xff]
    %v242 = vld [vmem:[#allocation2 + $0x5b0] sm:$0xff]
    %v243 = vld [vmem:[#allocation2 + $0x5b8] sm:$0xff]
    %v244 = vld [vmem:[#allocation2 + $0x5c0] sm:$0xff]
    %v245 = vld [vmem:[#allocation2 + $0x5c8] sm:$0xff]
    %v246 = vld [vmem:[#allocation2 + $0x5d0] sm:$0xff]
    %v247 = vld [vmem:[#allocation2 + $0x5d8] sm:$0xff]
    %v248 = vld [vmem:[#allocation2 + $0x5e0] sm:$0xff]
    %v249 = vld [vmem:[#allocation2 + $0x5e8] sm:$0xff]
    %v250 = vld [vmem:[#allocation2 + $0x5f0] sm:$0xff]
    %v251 = vld [vmem:[#allocation2 + $0x5f8] sm:$0xff]
    %v252 = vld [vmem:[#allocation2 + $0x600] sm:$0xff]
    %v253 = vld [vmem:[#allocation2 + $0x608] sm:$0xff]
    %v254 = vld [vmem:[#allocation2 + $0x610] sm:$0xff]
    %v255 = vld [vmem:[#allocation2 + $0x618] sm:$0xff]
    %v256 = vld [vmem:[#allocation2 + $0x620] sm:$0xff]
    %v257 = vld [vmem:[#allocation2 + $0x628] sm:$0xff]
    %v258 = vld [vmem:[#allocation2 + $0x630] sm:$0xff]
    %v259 = vld [vmem:[#allocation2 + $0x638] sm:$0xff]
    %v260 = vld [vmem:[#allocation2 + $0x640] sm:$0xff]
    %v261 = vld [vmem:[#allocation2 + $0x648] sm:$0xff]
    %v262 = vld [vmem:[#allocation2 + $0x650] sm:$0xff]
    %v263 = vld [vmem:[#allocation2 + $0x658] sm:$0xff]
    %v264 = vld [vmem:[#allocation2 + $0x660] sm:$0xff]
    %v265 = vld [vmem:[#allocation2 + $0x668] sm:$0xff]
    %v266 = vld [vmem:[#allocation2 + $0x670] sm:$0xff]
    %v267 = vld [vmem:[#allocation2 + $0x678] sm:$0xff]
    %v268 = vld [vmem:[#allocation2 + $0x680] sm:$0xff]
    %v269 = vld [vmem:[#allocation2 + $0x688] sm:$0xff]
    %v270 = vld [vmem:[#allocation2 + $0x690] sm:$0xff]
    %v271 = vld [vmem:[#allocation2 + $0x698] sm:$0xff]
    %v272 = vld [vmem:[#allocation2 + $0x6a0] sm:$0xff]
    %v273 = vld [vmem:[#allocation2 + $0x6a8] sm:$0xff]
    %v274 = vld [vmem:[#allocation2 + $0x6b0] sm:$0xff]
    %v275 = vld [vmem:[#allocation2 + $0x6b8] sm:$0xff]
    %v276 = vld [vmem:[#allocation2 + $0x6c0] sm:$0xff]
    %v277 = vld [vmem:[#allocation2 + $0x6c8] sm:$0xff]
    %v278 = vld [vmem:[#allocation2 + $0x6d0] sm:$0xff]
    %v279 = vld [vmem:[#allocation2 + $0x6d8] sm:$0xff]
    %v280 = vld [vmem:[#allocation2 + $0x6e0] sm:$0xff]
    %v281 = vld [vmem:[#allocation2 + $0x6e8] sm:$0xff]
    %v282 = vld [vmem:[#allocation2 + $0x6f0] sm:$0xff]
    %v283 = vld [vmem:[#allocation2 + $0x6f8] sm:$0xff]
    %v284 = vld [vmem:[#allocation2 + $0x700] sm:$0xff]
    %v285 = vld [vmem:[#allocation2 + $0x708] sm:$0xff]
    %v286 = vld [vmem:[#allocation2 + $0x710] sm:$0xff]
    %v287 = vld [vmem:[#allocation2 + $0x718] sm:$0xff]
    %v288 = vld [vmem:[#allocation2 + $0x720] sm:$0xff]
    %v289 = vld [vmem:[#allocation2 + $0x728] sm:$0xff]
    %v290 = vld [vmem:[#allocation2 + $0x730] sm:$0xff]
    %v291 = vld [vmem:[#allocation2 + $0x738] sm:$0xff]
    %v292 = vld [vmem:[#allocation2 + $0x740] sm:$0xff]
    %v293 = vld [vmem:[#allocation2 + $0x748] sm:$0xff]
    %v294 = vld [vmem:[#allocation2 + $0x750] sm:$0xff]
    %v295 = vld [vmem:[#allocation2 + $0x758] sm:$0xff]
    %v296 = vld [vmem:[#allocation2 + $0x760] sm:$0xff]
    %v297 = vld [vmem:[#allocation2 + $0x768] sm:$0xff]
    %v298 = vld [vmem:[#allocation2 + $0x770] sm:$0xff]
    %v299 = vld [vmem:[#allocation2 + $0x778] sm:$0xff]
    %v300 = vld [vmem:[#allocation2 + $0x780] sm:$0xff]
    %v301 = vld [vmem:[#allocation2 + $0x788] sm:$0xff]
    %v302 = vld [vmem:[#allocation2 + $0x790] sm:$0xff]
    %v303 = vld [vmem:[#allocation2 + $0x798] sm:$0xff]
    %v304 = vld [vmem:[#allocation2 + $0x7a0] sm:$0xff]
    %v305 = vld [vmem:[#allocation2 + $0x7a8] sm:$0xff]
    %v306 = vld [vmem:[#allocation2 + $0x7b0] sm:$0xff]
    %v307 = vld [vmem:[#allocation2 + $0x7b8] sm:$0xff]
    %v308 = vld [vmem:[#allocation2 + $0x7c0] sm:$0xff]
    %v309 = vld [vmem:[#allocation2 + $0x7c8] sm:$0xff]
    %v310 = vld [vmem:[#allocation2 + $0x7d0] sm:$0xff]
    %v311 = vld [vmem:[#allocation2 + $0x7d8] sm:$0xff]
    %v312 = vld [vmem:[#allocation2 + $0x7e0] sm:$0xff]
    %v313 = vld [vmem:[#allocation2 + $0x7e8] sm:$0xff]
    %v314 = vld [vmem:[#allocation2 + $0x7f0] sm:$0xff]
    %v315 = vld [vmem:[#allocation2 + $0x7f8] sm:$0xff]
    %v316 = vld [vmem:[#allocation2 + $0x800] sm:$0xff]
    %v317 = vld [vmem:[#allocation2 + $0x808] sm:$0xff]
    %v318 = vld [vmem:[#allocation2 + $0x810] sm:$0xff]
    %v319 = vld [vmem:[#allocation2 + $0x818] sm:$0xff]
    %v320 = vld [vmem:[#allocation2 + $0x820] sm:$0xff]
    %v321 = vld [vmem:[#allocation2 + $0x828] sm:$0xff]
    %v322 = vld [vmem:[#allocation2 + $0x830] sm:$0xff]
    %v323 = vld [vmem:[#allocation2 + $0x838] sm:$0xff]
    %v324 = vld [vmem:[#allocation2 + $0x840] sm:$0xff]
    %v325 = vld [vmem:[#allocation2 + $0x848] sm:$0xff]
    %v326 = vld [vmem:[#allocation2 + $0x850] sm:$0xff]
    %v327 = vld [vmem:[#allocation2 + $0x858] sm:$0xff]
    %v328 = vld [vmem:[#allocation2 + $0x860] sm:$0xff]
    %v329 = vld [vmem:[#allocation2 + $0x868] sm:$0xff]
    %v330 = vld [vmem:[#allocation2 + $0x870] sm:$0xff]
    %v331 = vld [vmem:[#allocation2 + $0x878] sm:$0xff]
    %v332 = vld [vmem:[#allocation2 + $0x880] sm:$0xff]
    %v333 = vld [vmem:[#allocation2 + $0x888] sm:$0xff]
    %v334 = vld [vmem:[#allocation2 + $0x890] sm:$0xff]
    %v335 = vld [vmem:[#allocation2 + $0x898] sm:$0xff]
    %v336 = vld [vmem:[#allocation2 + $0x8a0] sm:$0xff]
    %v337 = vld [vmem:[#allocation2 + $0x8a8] sm:$0xff]
    %v338 = vld [vmem:[#allocation2 + $0x8b0] sm:$0xff]
    %v339 = vld [vmem:[#allocation2 + $0x8b8] sm:$0xff]
    %v340 = vld [vmem:[#allocation2 + $0x8c0] sm:$0xff]
    %v341 = vld [vmem:[#allocation2 + $0x8c8] sm:$0xff]
    %v342 = vld [vmem:[#allocation2 + $0x8d0] sm:$0xff]
    %v343 = vld [vmem:[#allocation2 + $0x8d8] sm:$0xff]
    %v344 = vld [vmem:[#allocation2 + $0x8e0] sm:$0xff]
    %v345 = vld [vmem:[#allocation2 + $0x8e8] sm:$0xff]
    %v346 = vld [vmem:[#allocation2 + $0x8f0] sm:$0xff]
    %v347 = vld [vmem:[#allocation2 + $0x8f8] sm:$0xff]
    %v348 = vld [vmem:[#allocation2 + $0x900] sm:$0xff]
    %v349 = vld [vmem:[#allocation2 + $0x908] sm:$0xff]
    %v350 = vld [vmem:[#allocation2 + $0x910] sm:$0xff]
    %v351 = vld [vmem:[#allocation2 + $0x918] sm:$0xff]
    %v352 = vld [vmem:[#allocation2 + $0x920] sm:$0xff]
    %v353 = vld [vmem:[#allocation2 + $0x928] sm:$0xff]
    %v354 = vld [vmem:[#allocation2 + $0x930] sm:$0xff]
    %v355 = vld [vmem:[#allocation2 + $0x938] sm:$0xff]
    %v356 = vld [vmem:[#allocation2 + $0x940] sm:$0xff]
    %v357 = vld [vmem:[#allocation2 + $0x948] sm:$0xff]
    %v358 = vld [vmem:[#allocation2 + $0x950] sm:$0xff]
    %v359 = vld [vmem:[#allocation2 + $0x958] sm:$0xff]
    %v360 = vld [vmem:[#allocation2 + $0x960] sm:$0xff]
    %v361 = vld [vmem:[#allocation2 + $0x968] sm:$0xff]
    %v362 = vld [vmem:[#allocation2 + $0x970] sm:$0xff]
    %v363 = vld [vmem:[#allocation2 + $0x978] sm:$0xff]
    %v364 = vld [vmem:[#allocation2 + $0x980] sm:$0xff]
    %v365 = vld [vmem:[#allocation2 + $0x988] sm:$0xff]
    %v366 = vld [vmem:[#allocation2 + $0x990] sm:$0xff]
    %v367 = vld [vmem:[#allocation2 + $0x998] sm:$0xff]
    %v368 = vld [vmem:[#allocation2 + $0x9a0] sm:$0xff]
    %v369 = vld [vmem:[#allocation2 + $0x9a8] sm:$0xff]
    %v370 = vld [vmem:[#allocation2 + $0x9b0] sm:$0xff]
    %v371 = vld [vmem:[#allocation2 + $0x9b8] sm:$0xff]
    %v372 = vld [vmem:[#allocation2 + $0x9c0] sm:$0xff]
    %v373 = vld [vmem:[#allocation2 + $0x9c8] sm:$0xff]
    %v374 = vld [vmem:[#allocation2 + $0x9d0] sm:$0xff]
    %v375 = vld [vmem:[#allocation2 + $0x9d8] sm:$0xff]
    %v376 = vld [vmem:[#allocation2 + $0x9e0] sm:$0xff]
    %v377 = vld [vmem:[#allocation2 + $0x9e8] sm:$0xff]
    %v378 = vld [vmem:[#allocation2 + $0x9f0] sm:$0xff]
    %v379 = vld [vmem:[#allocation2 + $0x9f8] sm:$0xff]
    %v380 = vld [vmem:[#allocation2 + $0xa00] sm:$0xff]
    %v381 = vld [vmem:[#allocation2 + $0xa08] sm:$0xff]
    %v382 = vld [vmem:[#allocation2 + $0xa10] sm:$0xff]
    %v383 = vld [vmem:[#allocation2 + $0xa18] sm:$0xff]
    %v384 = vld [vmem:[#allocation2 + $0xa20] sm:$0xff]
    %v385 = vld [vmem:[#allocation2 + $0xa28] sm:$0xff]
    %v386 = vld [vmem:[#allocation2 + $0xa30] sm:$0xff]
    %v387 = vld [vmem:[#allocation2 + $0xa38] sm:$0xff]
    %v388 = vld [vmem:[#allocation2 + $0xa40] sm:$0xff]
    %v389 = vld [vmem:[#allocation2 + $0xa48] sm:$0xff]
    %v390 = vld [vmem:[#allocation2 + $0xa50] sm:$0xff]
    %v391 = vld [vmem:[#allocation2 + $0xa58] sm:$0xff]
    %v392 = vld [vmem:[#allocation2 + $0xa60] sm:$0xff]
    %v393 = vld [vmem:[#allocation2 + $0xa68] sm:$0xff]
    %v394 = vld [vmem:[#allocation2 + $0xa70] sm:$0xff]
    %v395 = vld [vmem:[#allocation2 + $0xa78] sm:$0xff]
    %v396 = vld [vmem:[#allocation2 + $0xa80] sm:$0xff]
    %v397 = vld [vmem:[#allocation2 + $0xa88] sm:$0xff]
    %v398 = vld [vmem:[#allocation2 + $0xa90] sm:$0xff]
    %v399 = vld [vmem:[#allocation2 + $0xa98] sm:$0xff]
    %v400 = vld [vmem:[#allocation2 + $0xaa0] sm:$0xff]
    %v401 = vld [vmem:[#allocation2 + $0xaa8] sm:$0xff]
    %v402 = vld [vmem:[#allocation2 + $0xab0] sm:$0xff]
    %v403 = vld [vmem:[#allocation2 + $0xab8] sm:$0xff]
    %v404 = vld [vmem:[#allocation2 + $0xac0] sm:$0xff]
    %v405 = vld [vmem:[#allocation2 + $0xac8] sm:$0xff]
    %v406 = vld [vmem:[#allocation2 + $0xad0] sm:$0xff]
    %v407 = vld [vmem:[#allocation2 + $0xad8] sm:$0xff]
    %v408 = vld [vmem:[#allocation2 + $0xae0] sm:$0xff]
    %v409 = vld [vmem:[#allocation2 + $0xae8] sm:$0xff]
    %v410 = vld [vmem:[#allocation2 + $0xaf0] sm:$0xff]
    %v411 = vld [vmem:[#allocation2 + $0xaf8] sm:$0xff]
    %v412 = vld [vmem:[#allocation2 + $0xb00] sm:$0xff]
    %v413 = vld [vmem:[#allocation2 + $0xb08] sm:$0xff]
    %v414 = vld [vmem:[#allocation2 + $0xb10] sm:$0xff]
    %v415 = vld [vmem:[#allocation2 + $0xb18] sm:$0xff]
    %v416 = vld [vmem:[#allocation2 + $0xb20] sm:$0xff]
    %v417 = vld [vmem:[#allocation2 + $0xb28] sm:$0xff]
    %v418 = vld [vmem:[#allocation2 + $0xb30] sm:$0xff]
    %v419 = vld [vmem:[#allocation2 + $0xb38] sm:$0xff]
    %v420 = vld [vmem:[#allocation2 + $0xb40] sm:$0xff]
    %v421 = vld [vmem:[#allocation2 + $0xb48] sm:$0xff]
    %v422 = vld [vmem:[#allocation2 + $0xb50] sm:$0xff]
    %v423 = vld [vmem:[#allocation2 + $0xb58] sm:$0xff]
    %v424 = vld [vmem:[#allocation2 + $0xb60] sm:$0xff]
    %v425 = vld [vmem:[#allocation2 + $0xb68] sm:$0xff]
    %v426 = vld [vmem:[#allocation2 + $0xb70] sm:$0xff]
    %v427 = vld [vmem:[#allocation2 + $0xb78] sm:$0xff]
    %v428 = vld [vmem:[#allocation2 + $0xb80] sm:$0xff]
    %v429 = vld [vmem:[#allocation2 + $0xb88] sm:$0xff]
    %v430 = vld [vmem:[#allocation2 + $0xb90] sm:$0xff]
    %v431 = vld [vmem:[#allocation2 + $0xb98] sm:$0xff]
    %v432 = vld [vmem:[#allocation2 + $0xba0] sm:$0xff]
    %v433 = vld [vmem:[#allocation2 + $0xba8] sm:$0xff]
    %v434 = vld [vmem:[#allocation2 + $0xbb0] sm:$0xff]
    %v435 = vld [vmem:[#allocation2 + $0xbb8] sm:$0xff]
    %v436 = vld [vmem:[#allocation2 + $0xbc0] sm:$0xff]
    %v437 = vld [vmem:[#allocation2 + $0xbc8] sm:$0xff]
    %v438 = vld [vmem:[#allocation2 + $0xbd0] sm:$0xff]
    %v439 = vld [vmem:[#allocation2 + $0xbd8] sm:$0xff]
    %v440 = vld [vmem:[#allocation2 + $0xbe0] sm:$0xff]
    %v441 = vld [vmem:[#allocation2 + $0xbe8] sm:$0xff]
    %v442 = vld [vmem:[#allocation2 + $0xbf0] sm:$0xff]
    %v443 = vld [vmem:[#allocation2 + $0xbf8] sm:$0xff]
    %v444 = vld [vmem:[#allocation2 + $0xc00] sm:$0xff]
    %v445 = vld [vmem:[#allocation2 + $0xc08] sm:$0xff]
    %v446 = vld [vmem:[#allocation2 + $0xc10] sm:$0xff]
    %v447 = vld [vmem:[#allocation2 + $0xc18] sm:$0xff]
    %v448 = vld [vmem:[#allocation2 + $0xc20] sm:$0xff]
    %v449 = vld [vmem:[#allocation2 + $0xc28] sm:$0xff]
    %v450 = vld [vmem:[#allocation2 + $0xc30] sm:$0xff]
    %v451 = vld [vmem:[#allocation2 + $0xc38] sm:$0xff]
    %v452 = vld [vmem:[#allocation2 + $0xc40] sm:$0xff]
    %v453 = vld [vmem:[#allocation2 + $0xc48] sm:$0xff]
    %v454 = vld [vmem:[#allocation2 + $0xc50] sm:$0xff]
    %v455 = vld [vmem:[#allocation2 + $0xc58] sm:$0xff]
    %v456 = vld [vmem:[#allocation2 + $0xc60] sm:$0xff]
    %v457 = vld [vmem:[#allocation2 + $0xc68] sm:$0xff]
    %v458 = vld [vmem:[#allocation2 + $0xc70] sm:$0xff]
    %v459 = vld [vmem:[#allocation2 + $0xc78] sm:$0xff]
    %v460 = vld [vmem:[#allocation2 + $0xc80] sm:$0xff]
    %v461 = vld [vmem:[#allocation2 + $0xc88] sm:$0xff]
    %v462 = vld [vmem:[#allocation2 + $0xc90] sm:$0xff]
    %v463 = vld [vmem:[#allocation2 + $0xc98] sm:$0xff]
    %v464 = vld [vmem:[#allocation2 + $0xca0] sm:$0xff]
    %v465 = vld [vmem:[#allocation2 + $0xca8] sm:$0xff]
    %v466 = vld [vmem:[#allocation2 + $0xcb0] sm:$0xff]
    %v467 = vld [vmem:[#allocation2 + $0xcb8] sm:$0xff]
    %v468 = vld [vmem:[#allocation2 + $0xcc0] sm:$0xff]
    %v469 = vld [vmem:[#allocation2 + $0xcc8] sm:$0xff]
    %v470 = vld [vmem:[#allocation2 + $0xcd0] sm:$0xff]
    %v471 = vld [vmem:[#allocation2 + $0xcd8] sm:$0xff]
    %v472 = vld [vmem:[#allocation2 + $0xce0] sm:$0xff]
    %v473 = vld [vmem:[#allocation2 + $0xce8] sm:$0xff]
    %v474 = vld [vmem:[#allocation2 + $0xcf0] sm:$0xff]
    %v475 = vld [vmem:[#allocation2 + $0xcf8] sm:$0xff]
    %v476 = vld [vmem:[#allocation2 + $0xd00] sm:$0xff]
    %v477 = vld [vmem:[#allocation2 + $0xd08] sm:$0xff]
    %v478 = vld [vmem:[#allocation2 + $0xd10] sm:$0xff]
    %v479 = vld [vmem:[#allocation2 + $0xd18] sm:$0xff]
    %v480 = vld [vmem:[#allocation2 + $0xd20] sm:$0xff]
    %v481 = vld [vmem:[#allocation2 + $0xd28] sm:$0xff]
    %v482 = vld [vmem:[#allocation2 + $0xd30] sm:$0xff]
    %v483 = vld [vmem:[#allocation2 + $0xd38] sm:$0xff]
    %v484 = vld [vmem:[#allocation2 + $0xd40] sm:$0xff]
    %v485 = vld [vmem:[#allocation2 + $0xd48] sm:$0xff]
    %v486 = vld [vmem:[#allocation2 + $0xd50] sm:$0xff]
    %v487 = vld [vmem:[#allocation2 + $0xd58] sm:$0xff]
    %v488 = vld [vmem:[#allocation2 + $0xd60] sm:$0xff]
    %v489 = vld [vmem:[#allocation2 + $0xd68] sm:$0xff]
    %v490 = vld [vmem:[#allocation2 + $0xd70] sm:$0xff]
    %v491 = vld [vmem:[#allocation2 + $0xd78] sm:$0xff]
    %v492 = vld [vmem:[#allocation2 + $0xd80] sm:$0xff]
    %v493 = vld [vmem:[#allocation2 + $0xd88] sm:$0xff]
    %v494 = vld [vmem:[#allocation2 + $0xd90] sm:$0xff]
    %v495 = vld [vmem:[#allocation2 + $0xd98] sm:$0xff]
    %v496 = vld [vmem:[#allocation2 + $0xda0] sm:$0xff]
    %v497 = vld [vmem:[#allocation2 + $0xda8] sm:$0xff]
    %v498 = vld [vmem:[#allocation2 + $0xdb0] sm:$0xff]
    %v499 = vld [vmem:[#allocation2 + $0xdb8] sm:$0xff]
    %v500 = vld [vmem:[#allocation2 + $0xdc0] sm:$0xff]
    %v501 = vld [vmem:[#allocation2 + $0xdc8] sm:$0xff]
    %v502 = vld [vmem:[#allocation2 + $0xdd0] sm:$0xff]
    %v503 = vld [vmem:[#allocation2 + $0xdd8] sm:$0xff]
    %v504 = vld [vmem:[#allocation2 + $0xde0] sm:$0xff]
    %v505 = vld [vmem:[#allocation2 + $0xde8] sm:$0xff]
    %v506 = vld [vmem:[#allocation2 + $0xdf0] sm:$0xff]
    %v507 = vld [vmem:[#allocation2 + $0xdf8] sm:$0xff]
    %v508 = vld [vmem:[#allocation2 + $0xe00] sm:$0xff]
    %v509 = vld [vmem:[#allocation2 + $0xe08] sm:$0xff]
    %v510 = vld [vmem:[#allocation2 + $0xe10] sm:$0xff]
    %v511 = vld [vmem:[#allocation2 + $0xe18] sm:$0xff]
    %v512 = vld [vmem:[#allocation2 + $0xe20] sm:$0xff]
    %v513 = vld [vmem:[#allocation2 + $0xe28] sm:$0xff]
    %v514 = vld [vmem:[#allocation2 + $0xe30] sm:$0xff]
    %v515 = vld [vmem:[#allocation2 + $0xe38] sm:$0xff]
    %v516 = vld [vmem:[#allocation2 + $0xe40] sm:$0xff]
    %v517 = vld [vmem:[#allocation2 + $0xe48] sm:$0xff]
    %v518 = vld [vmem:[#allocation2 + $0xe50] sm:$0xff]
    %v519 = vld [vmem:[#allocation2 + $0xe58] sm:$0xff]
    %v520 = vld [vmem:[#allocation2 + $0xe60] sm:$0xff]
    %v521 = vld [vmem:[#allocation2 + $0xe68] sm:$0xff]
    %v522 = vld [vmem:[#allocation2 + $0xe70] sm:$0xff]
    %v523 = vld [vmem:[#allocation2 + $0xe78] sm:$0xff]
    %v524 = vld [vmem:[#allocation2 + $0xe80] sm:$0xff]
    %v525 = vld [vmem:[#allocation2 + $0xe88] sm:$0xff]
    %v526 = vld [vmem:[#allocation2 + $0xe90] sm:$0xff]
    %v527 = vld [vmem:[#allocation2 + $0xe98] sm:$0xff]
    %v528 = vld [vmem:[#allocation2 + $0xea0] sm:$0xff]
    %v529 = vld [vmem:[#allocation2 + $0xea8] sm:$0xff]
    %v530 = vld [vmem:[#allocation2 + $0xeb0] sm:$0xff]
    %v531 = vld [vmem:[#allocation2 + $0xeb8] sm:$0xff]
    %v532 = vld [vmem:[#allocation2 + $0xec0] sm:$0xff]
    %v533 = vld [vmem:[#allocation2 + $0xec8] sm:$0xff]
    %v534 = vld [vmem:[#allocation2 + $0xed0] sm:$0xff]
    %v535 = vld [vmem:[#allocation2 + $0xed8] sm:$0xff]
    %v536 = vld [vmem:[#allocation2 + $0xee0] sm:$0xff]
    %v537 = vld [vmem:[#allocation2 + $0xee8] sm:$0xff]
    %v538 = vld [vmem:[#allocation2 + $0xef0] sm:$0xff]
    %v539 = vld [vmem:[#allocation2 + $0xef8] sm:$0xff]
    %v540 = vld [vmem:[#allocation2 + $0xf00] sm:$0xff]
    %v541 = vld [vmem:[#allocation2 + $0xf08] sm:$0xff]
    %v542 = vld [vmem:[#allocation2 + $0xf10] sm:$0xff]
    %v543 = vld [vmem:[#allocation2 + $0xf18] sm:$0xff]
    %v544 = vld [vmem:[#allocation2 + $0xf20] sm:$0xff]
    %v545 = vld [vmem:[#allocation2 + $0xf28] sm:$0xff]
    %v546 = vld [vmem:[#allocation2 + $0xf30] sm:$0xff]
    %v547 = vld [vmem:[#allocation2 + $0xf38] sm:$0xff]
    %v548 = vld [vmem:[#allocation2 + $0xf40] sm:$0xff]
    %v549 = vld [vmem:[#allocation2 + $0xf48] sm:$0xff]
    %v550 = vld [vmem:[#allocation2 + $0xf50] sm:$0xff]
    %v551 = vld [vmem:[#allocation2 + $0xf58] sm:$0xff]
    %v552 = vld [vmem:[#allocation2 + $0xf60] sm:$0xff]
    %v553 = vld [vmem:[#allocation2 + $0xf68] sm:$0xff]
    %v554 = vld [vmem:[#allocation2 + $0xf70] sm:$0xff]
    %v555 = vld [vmem:[#allocation2 + $0xf78] sm:$0xff]
    %v556 = vld [vmem:[#allocation2 + $0xf80] sm:$0xff]
    %v557 = vld [vmem:[#allocation2 + $0xf88] sm:$0xff]
    %v558 = vld [vmem:[#allocation2 + $0xf90] sm:$0xff]
    %v559 = vld [vmem:[#allocation2 + $0xf98] sm:$0xff]
    %v560 = vld [vmem:[#allocation2 + $0xfa0] sm:$0xff]
    %v561 = vld [vmem:[#allocation2 + $0xfa8] sm:$0xff]
    %v562 = vld [vmem:[#allocation2 + $0xfb0] sm:$0xff]
    %v563 = vld [vmem:[#allocation2 + $0xfb8] sm:$0xff]
    %v564 = vld [vmem:[#allocation2 + $0xfc0] sm:$0xff]
    %v565 = vld [vmem:[#allocation2 + $0xfc8] sm:$0xff]
    %v566 = vld [vmem:[#allocation2 + $0xfd0] sm:$0xff]
    %v567 = vld [vmem:[#allocation2 + $0xfd8] sm:$0xff]
    %v568 = vld [vmem:[#allocation2 + $0xfe0] sm:$0xff]
    %v569 = vld [vmem:[#allocation2 + $0xfe8] sm:$0xff]
    %v570 = vld [vmem:[#allocation2 + $0xff0] sm:$0xff]
    %v571 = vld [vmem:[#allocation2 + $0xff8] sm:$0xff]
    %v572 = vld [vmem:[#allocation4] sm:$0xff]
    %v574 = vperm.slane %v572, 0
    %v575 = vperm.slane %v572, 1
    %v576 = vperm.slane %v572, 2
    %v577 = vperm.slane %v572, 3
    %v578 = vperm.slane %v572, 4
    %v579 = vperm.slane %v572, 5
    %v580 = vperm.slane %v572, 6
    %v581 = vperm.slane %v572, 7
    %v1102 = vunpack.c.l.b16 %v60
    %v1103 = vunpack.c.h.b16 %v60
    %v1104 = vunpack.c.l.b16 %v61
    %v1105 = vunpack.c.h.b16 %v61
    %v1106 = vunpack.c.l.b16 %v62
    %v1107 = vunpack.c.h.b16 %v62
    %v1108 = vunpack.c.l.b16 %v63
    %v1109 = vunpack.c.h.b16 %v63
    %v1110 = vunpack.c.l.b16 %v64
    %v1111 = vunpack.c.h.b16 %v64
    %v1112 = vunpack.c.l.b16 %v65
    %v1113 = vunpack.c.h.b16 %v65
    %v1114 = vunpack.c.l.b16 %v66
    %v1115 = vunpack.c.h.b16 %v66
    %v1116 = vunpack.c.l.b16 %v67
    %v1117 = vunpack.c.h.b16 %v67
    %v1118 = vunpack.c.l.b16 %v68
    %v1119 = vunpack.c.h.b16 %v68
    %v1120 = vunpack.c.l.b16 %v69
    %v1121 = vunpack.c.h.b16 %v69
    %v1122 = vunpack.c.l.b16 %v70
    %v1123 = vunpack.c.h.b16 %v70
    %v1124 = vunpack.c.l.b16 %v71
    %v1125 = vunpack.c.h.b16 %v71
    %v1126 = vunpack.c.l.b16 %v72
    %v1127 = vunpack.c.h.b16 %v72
    %v1128 = vunpack.c.l.b16 %v73
    %v1129 = vunpack.c.h.b16 %v73
    %v1130 = vunpack.c.l.b16 %v74
    %v1131 = vunpack.c.h.b16 %v74
    %v1132 = vunpack.c.l.b16 %v75
    %v1133 = vunpack.c.h.b16 %v75
    %v1134 = vunpack.c.l.b16 %v76
    %v1135 = vunpack.c.h.b16 %v76
    %v1136 = vunpack.c.l.b16 %v77
    %v1137 = vunpack.c.h.b16 %v77
    %v1138 = vunpack.c.l.b16 %v78
    %v1139 = vunpack.c.h.b16 %v78
    %v1140 = vunpack.c.l.b16 %v79
    %v1141 = vunpack.c.h.b16 %v79
    %v1142 = vunpack.c.l.b16 %v80
    %v1143 = vunpack.c.h.b16 %v80
    %v1144 = vunpack.c.l.b16 %v81
    %v1145 = vunpack.c.h.b16 %v81
    %v1146 = vunpack.c.l.b16 %v82
    %v1147 = vunpack.c.h.b16 %v82
    %v1148 = vunpack.c.l.b16 %v83
    %v1149 = vunpack.c.h.b16 %v83
    %v1150 = vunpack.c.l.b16 %v84
    %v1151 = vunpack.c.h.b16 %v84
    %v1152 = vunpack.c.l.b16 %v85
    %v1153 = vunpack.c.h.b16 %v85
    %v1154 = vunpack.c.l.b16 %v86
    %v1155 = vunpack.c.h.b16 %v86
    %v1156 = vunpack.c.l.b16 %v87
    %v1157 = vunpack.c.h.b16 %v87
    %v1158 = vunpack.c.l.b16 %v88
    %v1159 = vunpack.c.h.b16 %v88
    %v1160 = vunpack.c.l.b16 %v89
    %v1161 = vunpack.c.h.b16 %v89
    %v1162 = vunpack.c.l.b16 %v90
    %v1163 = vunpack.c.h.b16 %v90
    %v1164 = vunpack.c.l.b16 %v91
    %v1165 = vunpack.c.h.b16 %v91
    %v1166 = vunpack.c.l.b16 %v92
    %v1167 = vunpack.c.h.b16 %v92
    %v1168 = vunpack.c.l.b16 %v93
    %v1169 = vunpack.c.h.b16 %v93
    %v1170 = vunpack.c.l.b16 %v94
    %v1171 = vunpack.c.h.b16 %v94
    %v1172 = vunpack.c.l.b16 %v95
    %v1173 = vunpack.c.h.b16 %v95
    %v1174 = vunpack.c.l.b16 %v96
    %v1175 = vunpack.c.h.b16 %v96
    %v1176 = vunpack.c.l.b16 %v97
    %v1177 = vunpack.c.h.b16 %v97
    %v1178 = vunpack.c.l.b16 %v98
    %v1179 = vunpack.c.h.b16 %v98
    %v1180 = vunpack.c.l.b16 %v99
    %v1181 = vunpack.c.h.b16 %v99
    %v1182 = vunpack.c.l.b16 %v100
    %v1183 = vunpack.c.h.b16 %v100
    %v1184 = vunpack.c.l.b16 %v101
    %v1185 = vunpack.c.h.b16 %v101
    %v1186 = vunpack.c.l.b16 %v102
    %v1187 = vunpack.c.h.b16 %v102
    %v1188 = vunpack.c.l.b16 %v103
    %v1189 = vunpack.c.h.b16 %v103
    %v1190 = vunpack.c.l.b16 %v104
    %v1191 = vunpack.c.h.b16 %v104
    %v1192 = vunpack.c.l.b16 %v105
    %v1193 = vunpack.c.h.b16 %v105
    %v1194 = vunpack.c.l.b16 %v106
    %v1195 = vunpack.c.h.b16 %v106
    %v1196 = vunpack.c.l.b16 %v107
    %v1197 = vunpack.c.h.b16 %v107
    %v1198 = vunpack.c.l.b16 %v108
    %v1199 = vunpack.c.h.b16 %v108
    %v1200 = vunpack.c.l.b16 %v109
    %v1201 = vunpack.c.h.b16 %v109
    %v1202 = vunpack.c.l.b16 %v110
    %v1203 = vunpack.c.h.b16 %v110
    %v1204 = vunpack.c.l.b16 %v111
    %v1205 = vunpack.c.h.b16 %v111
    %v1206 = vunpack.c.l.b16 %v112
    %v1207 = vunpack.c.h.b16 %v112
    %v1208 = vunpack.c.l.b16 %v113
    %v1209 = vunpack.c.h.b16 %v113
    %v1210 = vunpack.c.l.b16 %v114
    %v1211 = vunpack.c.h.b16 %v114
    %v1212 = vunpack.c.l.b16 %v115
    %v1213 = vunpack.c.h.b16 %v115
    %v1214 = vunpack.c.l.b16 %v116
    %v1215 = vunpack.c.h.b16 %v116
    %v1216 = vunpack.c.l.b16 %v117
    %v1217 = vunpack.c.h.b16 %v117
    %v1218 = vunpack.c.l.b16 %v118
    %v1219 = vunpack.c.h.b16 %v118
    %v1220 = vunpack.c.l.b16 %v119
    %v1221 = vunpack.c.h.b16 %v119
    %v1222 = vunpack.c.l.b16 %v120
    %v1223 = vunpack.c.h.b16 %v120
    %v1224 = vunpack.c.l.b16 %v121
    %v1225 = vunpack.c.h.b16 %v121
    %v1226 = vunpack.c.l.b16 %v122
    %v1227 = vunpack.c.h.b16 %v122
    %v1228 = vunpack.c.l.b16 %v123
    %v1229 = vunpack.c.h.b16 %v123
    %v1230 = vunpack.c.l.b16 %v124
    %v1231 = vunpack.c.h.b16 %v124
    %v1232 = vunpack.c.l.b16 %v125
    %v1233 = vunpack.c.h.b16 %v125
    %v1234 = vunpack.c.l.b16 %v126
    %v1235 = vunpack.c.h.b16 %v126
    %v1236 = vunpack.c.l.b16 %v127
    %v1237 = vunpack.c.h.b16 %v127
    %v1238 = vunpack.c.l.b16 %v128
    %v1239 = vunpack.c.h.b16 %v128
    %v1240 = vunpack.c.l.b16 %v129
    %v1241 = vunpack.c.h.b16 %v129
    %v1242 = vunpack.c.l.b16 %v130
    %v1243 = vunpack.c.h.b16 %v130
    %v1244 = vunpack.c.l.b16 %v131
    %v1245 = vunpack.c.h.b16 %v131
    %v1246 = vunpack.c.l.b16 %v132
    %v1247 = vunpack.c.h.b16 %v132
    %v1248 = vunpack.c.l.b16 %v133
    %v1249 = vunpack.c.h.b16 %v133
    %v1250 = vunpack.c.l.b16 %v134
    %v1251 = vunpack.c.h.b16 %v134
    %v1252 = vunpack.c.l.b16 %v135
    %v1253 = vunpack.c.h.b16 %v135
    %v1254 = vunpack.c.l.b16 %v136
    %v1255 = vunpack.c.h.b16 %v136
    %v1256 = vunpack.c.l.b16 %v137
    %v1257 = vunpack.c.h.b16 %v137
    %v1258 = vunpack.c.l.b16 %v138
    %v1259 = vunpack.c.h.b16 %v138
    %v1260 = vunpack.c.l.b16 %v139
    %v1261 = vunpack.c.h.b16 %v139
    %v1262 = vunpack.c.l.b16 %v140
    %v1263 = vunpack.c.h.b16 %v140
    %v1264 = vunpack.c.l.b16 %v141
    %v1265 = vunpack.c.h.b16 %v141
    %v1266 = vunpack.c.l.b16 %v142
    %v1267 = vunpack.c.h.b16 %v142
    %v1268 = vunpack.c.l.b16 %v143
    %v1269 = vunpack.c.h.b16 %v143
    %v1270 = vunpack.c.l.b16 %v144
    %v1271 = vunpack.c.h.b16 %v144
    %v1272 = vunpack.c.l.b16 %v145
    %v1273 = vunpack.c.h.b16 %v145
    %v1274 = vunpack.c.l.b16 %v146
    %v1275 = vunpack.c.h.b16 %v146
    %v1276 = vunpack.c.l.b16 %v147
    %v1277 = vunpack.c.h.b16 %v147
    %v1278 = vunpack.c.l.b16 %v148
    %v1279 = vunpack.c.h.b16 %v148
    %v1280 = vunpack.c.l.b16 %v149
    %v1281 = vunpack.c.h.b16 %v149
    %v1282 = vunpack.c.l.b16 %v150
    %v1283 = vunpack.c.h.b16 %v150
    %v1284 = vunpack.c.l.b16 %v151
    %v1285 = vunpack.c.h.b16 %v151
    %v1286 = vunpack.c.l.b16 %v152
    %v1287 = vunpack.c.h.b16 %v152
    %v1288 = vunpack.c.l.b16 %v153
    %v1289 = vunpack.c.h.b16 %v153
    %v1290 = vunpack.c.l.b16 %v154
    %v1291 = vunpack.c.h.b16 %v154
    %v1292 = vunpack.c.l.b16 %v155
    %v1293 = vunpack.c.h.b16 %v155
    %v1294 = vunpack.c.l.b16 %v156
    %v1295 = vunpack.c.h.b16 %v156
    %v1296 = vunpack.c.l.b16 %v157
    %v1297 = vunpack.c.h.b16 %v157
    %v1298 = vunpack.c.l.b16 %v158
    %v1299 = vunpack.c.h.b16 %v158
    %v1300 = vunpack.c.l.b16 %v159
    %v1301 = vunpack.c.h.b16 %v159
    %v1302 = vunpack.c.l.b16 %v160
    %v1303 = vunpack.c.h.b16 %v160
    %v1304 = vunpack.c.l.b16 %v161
    %v1305 = vunpack.c.h.b16 %v161
    %v1306 = vunpack.c.l.b16 %v162
    %v1307 = vunpack.c.h.b16 %v162
    %v1308 = vunpack.c.l.b16 %v163
    %v1309 = vunpack.c.h.b16 %v163
    %v1310 = vunpack.c.l.b16 %v164
    %v1311 = vunpack.c.h.b16 %v164
    %v1312 = vunpack.c.l.b16 %v165
    %v1313 = vunpack.c.h.b16 %v165
    %v1314 = vunpack.c.l.b16 %v166
    %v1315 = vunpack.c.h.b16 %v166
    %v1316 = vunpack.c.l.b16 %v167
    %v1317 = vunpack.c.h.b16 %v167
    %v1318 = vunpack.c.l.b16 %v168
    %v1319 = vunpack.c.h.b16 %v168
    %v1320 = vunpack.c.l.b16 %v169
    %v1321 = vunpack.c.h.b16 %v169
    %v1322 = vunpack.c.l.b16 %v170
    %v1323 = vunpack.c.h.b16 %v170
    %v1324 = vunpack.c.l.b16 %v171
    %v1325 = vunpack.c.h.b16 %v171
    %v1326 = vunpack.c.l.b16 %v172
    %v1327 = vunpack.c.h.b16 %v172
    %v1328 = vunpack.c.l.b16 %v173
    %v1329 = vunpack.c.h.b16 %v173
    %v1330 = vunpack.c.l.b16 %v174
    %v1331 = vunpack.c.h.b16 %v174
    %v1332 = vunpack.c.l.b16 %v175
    %v1333 = vunpack.c.h.b16 %v175
    %v1334 = vunpack.c.l.b16 %v176
    %v1335 = vunpack.c.h.b16 %v176
    %v1336 = vunpack.c.l.b16 %v177
    %v1337 = vunpack.c.h.b16 %v177
    %v1338 = vunpack.c.l.b16 %v178
    %v1339 = vunpack.c.h.b16 %v178
    %v1340 = vunpack.c.l.b16 %v179
    %v1341 = vunpack.c.h.b16 %v179
    %v1342 = vunpack.c.l.b16 %v180
    %v1343 = vunpack.c.h.b16 %v180
    %v1344 = vunpack.c.l.b16 %v181
    %v1345 = vunpack.c.h.b16 %v181
    %v1346 = vunpack.c.l.b16 %v182
    %v1347 = vunpack.c.h.b16 %v182
    %v1348 = vunpack.c.l.b16 %v183
    %v1349 = vunpack.c.h.b16 %v183
    %v1350 = vunpack.c.l.b16 %v184
    %v1351 = vunpack.c.h.b16 %v184
    %v1352 = vunpack.c.l.b16 %v185
    %v1353 = vunpack.c.h.b16 %v185
    %v1354 = vunpack.c.l.b16 %v186
    %v1355 = vunpack.c.h.b16 %v186
    %v1356 = vunpack.c.l.b16 %v187
    %v1357 = vunpack.c.h.b16 %v187
    %v1358 = vunpack.c.l.b16 %v188
    %v1359 = vunpack.c.h.b16 %v188
    %v1360 = vunpack.c.l.b16 %v189
    %v1361 = vunpack.c.h.b16 %v189
    %v1362 = vunpack.c.l.b16 %v190
    %v1363 = vunpack.c.h.b16 %v190
    %v1364 = vunpack.c.l.b16 %v191
    %v1365 = vunpack.c.h.b16 %v191
    %v1366 = vunpack.c.l.b16 %v192
    %v1367 = vunpack.c.h.b16 %v192
    %v1368 = vunpack.c.l.b16 %v193
    %v1369 = vunpack.c.h.b16 %v193
    %v1370 = vunpack.c.l.b16 %v194
    %v1371 = vunpack.c.h.b16 %v194
    %v1372 = vunpack.c.l.b16 %v195
    %v1373 = vunpack.c.h.b16 %v195
    %v1374 = vunpack.c.l.b16 %v196
    %v1375 = vunpack.c.h.b16 %v196
    %v1376 = vunpack.c.l.b16 %v197
    %v1377 = vunpack.c.h.b16 %v197
    %v1378 = vunpack.c.l.b16 %v198
    %v1379 = vunpack.c.h.b16 %v198
    %v1380 = vunpack.c.l.b16 %v199
    %v1381 = vunpack.c.h.b16 %v199
    %v1382 = vunpack.c.l.b16 %v200
    %v1383 = vunpack.c.h.b16 %v200
    %v1384 = vunpack.c.l.b16 %v201
    %v1385 = vunpack.c.h.b16 %v201
    %v1386 = vunpack.c.l.b16 %v202
    %v1387 = vunpack.c.h.b16 %v202
    %v1388 = vunpack.c.l.b16 %v203
    %v1389 = vunpack.c.h.b16 %v203
    %v1390 = vunpack.c.l.b16 %v204
    %v1391 = vunpack.c.h.b16 %v204
    %v1392 = vunpack.c.l.b16 %v205
    %v1393 = vunpack.c.h.b16 %v205
    %v1394 = vunpack.c.l.b16 %v206
    %v1395 = vunpack.c.h.b16 %v206
    %v1396 = vunpack.c.l.b16 %v207
    %v1397 = vunpack.c.h.b16 %v207
    %v1398 = vunpack.c.l.b16 %v208
    %v1399 = vunpack.c.h.b16 %v208
    %v1400 = vunpack.c.l.b16 %v209
    %v1401 = vunpack.c.h.b16 %v209
    %v1402 = vunpack.c.l.b16 %v210
    %v1403 = vunpack.c.h.b16 %v210
    %v1404 = vunpack.c.l.b16 %v211
    %v1405 = vunpack.c.h.b16 %v211
    %v1406 = vunpack.c.l.b16 %v212
    %v1407 = vunpack.c.h.b16 %v212
    %v1408 = vunpack.c.l.b16 %v213
    %v1409 = vunpack.c.h.b16 %v213
    %v1410 = vunpack.c.l.b16 %v214
    %v1411 = vunpack.c.h.b16 %v214
    %v1412 = vunpack.c.l.b16 %v215
    %v1413 = vunpack.c.h.b16 %v215
    %v1414 = vunpack.c.l.b16 %v216
    %v1415 = vunpack.c.h.b16 %v216
    %v1416 = vunpack.c.l.b16 %v217
    %v1417 = vunpack.c.h.b16 %v217
    %v1418 = vunpack.c.l.b16 %v218
    %v1419 = vunpack.c.h.b16 %v218
    %v1420 = vunpack.c.l.b16 %v219
    %v1421 = vunpack.c.h.b16 %v219
    %v1422 = vunpack.c.l.b16 %v220
    %v1423 = vunpack.c.h.b16 %v220
    %v1424 = vunpack.c.l.b16 %v221
    %v1425 = vunpack.c.h.b16 %v221
    %v1426 = vunpack.c.l.b16 %v222
    %v1427 = vunpack.c.h.b16 %v222
    %v1428 = vunpack.c.l.b16 %v223
    %v1429 = vunpack.c.h.b16 %v223
    %v1430 = vunpack.c.l.b16 %v224
    %v1431 = vunpack.c.h.b16 %v224
    %v1432 = vunpack.c.l.b16 %v225
    %v1433 = vunpack.c.h.b16 %v225
    %v1434 = vunpack.c.l.b16 %v226
    %v1435 = vunpack.c.h.b16 %v226
    %v1436 = vunpack.c.l.b16 %v227
    %v1437 = vunpack.c.h.b16 %v227
    %v1438 = vunpack.c.l.b16 %v228
    %v1439 = vunpack.c.h.b16 %v228
    %v1440 = vunpack.c.l.b16 %v229
    %v1441 = vunpack.c.h.b16 %v229
    %v1442 = vunpack.c.l.b16 %v230
    %v1443 = vunpack.c.h.b16 %v230
    %v1444 = vunpack.c.l.b16 %v231
    %v1445 = vunpack.c.h.b16 %v231
    %v1446 = vunpack.c.l.b16 %v232
    %v1447 = vunpack.c.h.b16 %v232
    %v1448 = vunpack.c.l.b16 %v233
    %v1449 = vunpack.c.h.b16 %v233
    %v1450 = vunpack.c.l.b16 %v234
    %v1451 = vunpack.c.h.b16 %v234
    %v1452 = vunpack.c.l.b16 %v235
    %v1453 = vunpack.c.h.b16 %v235
    %v1454 = vunpack.c.l.b16 %v236
    %v1455 = vunpack.c.h.b16 %v236
    %v1456 = vunpack.c.l.b16 %v237
    %v1457 = vunpack.c.h.b16 %v237
    %v1458 = vunpack.c.l.b16 %v238
    %v1459 = vunpack.c.h.b16 %v238
    %v1460 = vunpack.c.l.b16 %v239
    %v1461 = vunpack.c.h.b16 %v239
    %v1462 = vunpack.c.l.b16 %v240
    %v1463 = vunpack.c.h.b16 %v240
    %v1464 = vunpack.c.l.b16 %v241
    %v1465 = vunpack.c.h.b16 %v241
    %v1466 = vunpack.c.l.b16 %v242
    %v1467 = vunpack.c.h.b16 %v242
    %v1468 = vunpack.c.l.b16 %v243
    %v1469 = vunpack.c.h.b16 %v243
    %v1470 = vunpack.c.l.b16 %v244
    %v1471 = vunpack.c.h.b16 %v244
    %v1472 = vunpack.c.l.b16 %v245
    %v1473 = vunpack.c.h.b16 %v245
    %v1474 = vunpack.c.l.b16 %v246
    %v1475 = vunpack.c.h.b16 %v246
    %v1476 = vunpack.c.l.b16 %v247
    %v1477 = vunpack.c.h.b16 %v247
    %v1478 = vunpack.c.l.b16 %v248
    %v1479 = vunpack.c.h.b16 %v248
    %v1480 = vunpack.c.l.b16 %v249
    %v1481 = vunpack.c.h.b16 %v249
    %v1482 = vunpack.c.l.b16 %v250
    %v1483 = vunpack.c.h.b16 %v250
    %v1484 = vunpack.c.l.b16 %v251
    %v1485 = vunpack.c.h.b16 %v251
    %v1486 = vunpack.c.l.b16 %v252
    %v1487 = vunpack.c.h.b16 %v252
    %v1488 = vunpack.c.l.b16 %v253
    %v1489 = vunpack.c.h.b16 %v253
    %v1490 = vunpack.c.l.b16 %v254
    %v1491 = vunpack.c.h.b16 %v254
    %v1492 = vunpack.c.l.b16 %v255
    %v1493 = vunpack.c.h.b16 %v255
    %v1494 = vunpack.c.l.b16 %v256
    %v1495 = vunpack.c.h.b16 %v256
    %v1496 = vunpack.c.l.b16 %v257
    %v1497 = vunpack.c.h.b16 %v257
    %v1498 = vunpack.c.l.b16 %v258
    %v1499 = vunpack.c.h.b16 %v258
    %v1500 = vunpack.c.l.b16 %v259
    %v1501 = vunpack.c.h.b16 %v259
    %v1502 = vunpack.c.l.b16 %v260
    %v1503 = vunpack.c.h.b16 %v260
    %v1504 = vunpack.c.l.b16 %v261
    %v1505 = vunpack.c.h.b16 %v261
    %v1506 = vunpack.c.l.b16 %v262
    %v1507 = vunpack.c.h.b16 %v262
    %v1508 = vunpack.c.l.b16 %v263
    %v1509 = vunpack.c.h.b16 %v263
    %v1510 = vunpack.c.l.b16 %v264
    %v1511 = vunpack.c.h.b16 %v264
    %v1512 = vunpack.c.l.b16 %v265
    %v1513 = vunpack.c.h.b16 %v265
    %v1514 = vunpack.c.l.b16 %v266
    %v1515 = vunpack.c.h.b16 %v266
    %v1516 = vunpack.c.l.b16 %v267
    %v1517 = vunpack.c.h.b16 %v267
    %v1518 = vunpack.c.l.b16 %v268
    %v1519 = vunpack.c.h.b16 %v268
    %v1520 = vunpack.c.l.b16 %v269
    %v1521 = vunpack.c.h.b16 %v269
    %v1522 = vunpack.c.l.b16 %v270
    %v1523 = vunpack.c.h.b16 %v270
    %v1524 = vunpack.c.l.b16 %v271
    %v1525 = vunpack.c.h.b16 %v271
    %v1526 = vunpack.c.l.b16 %v272
    %v1527 = vunpack.c.h.b16 %v272
    %v1528 = vunpack.c.l.b16 %v273
    %v1529 = vunpack.c.h.b16 %v273
    %v1530 = vunpack.c.l.b16 %v274
    %v1531 = vunpack.c.h.b16 %v274
    %v1532 = vunpack.c.l.b16 %v275
    %v1533 = vunpack.c.h.b16 %v275
    %v1534 = vunpack.c.l.b16 %v276
    %v1535 = vunpack.c.h.b16 %v276
    %v1536 = vunpack.c.l.b16 %v277
    %v1537 = vunpack.c.h.b16 %v277
    %v1538 = vunpack.c.l.b16 %v278
    %v1539 = vunpack.c.h.b16 %v278
    %v1540 = vunpack.c.l.b16 %v279
    %v1541 = vunpack.c.h.b16 %v279
    %v1542 = vunpack.c.l.b16 %v280
    %v1543 = vunpack.c.h.b16 %v280
    %v1544 = vunpack.c.l.b16 %v281
    %v1545 = vunpack.c.h.b16 %v281
    %v1546 = vunpack.c.l.b16 %v282
    %v1547 = vunpack.c.h.b16 %v282
    %v1548 = vunpack.c.l.b16 %v283
    %v1549 = vunpack.c.h.b16 %v283
    %v1550 = vunpack.c.l.b16 %v284
    %v1551 = vunpack.c.h.b16 %v284
    %v1552 = vunpack.c.l.b16 %v285
    %v1553 = vunpack.c.h.b16 %v285
    %v1554 = vunpack.c.l.b16 %v286
    %v1555 = vunpack.c.h.b16 %v286
    %v1556 = vunpack.c.l.b16 %v287
    %v1557 = vunpack.c.h.b16 %v287
    %v1558 = vunpack.c.l.b16 %v288
    %v1559 = vunpack.c.h.b16 %v288
    %v1560 = vunpack.c.l.b16 %v289
    %v1561 = vunpack.c.h.b16 %v289
    %v1562 = vunpack.c.l.b16 %v290
    %v1563 = vunpack.c.h.b16 %v290
    %v1564 = vunpack.c.l.b16 %v291
    %v1565 = vunpack.c.h.b16 %v291
    %v1566 = vunpack.c.l.b16 %v292
    %v1567 = vunpack.c.h.b16 %v292
    %v1568 = vunpack.c.l.b16 %v293
    %v1569 = vunpack.c.h.b16 %v293
    %v1570 = vunpack.c.l.b16 %v294
    %v1571 = vunpack.c.h.b16 %v294
    %v1572 = vunpack.c.l.b16 %v295
    %v1573 = vunpack.c.h.b16 %v295
    %v1574 = vunpack.c.l.b16 %v296
    %v1575 = vunpack.c.h.b16 %v296
    %v1576 = vunpack.c.l.b16 %v297
    %v1577 = vunpack.c.h.b16 %v297
    %v1578 = vunpack.c.l.b16 %v298
    %v1579 = vunpack.c.h.b16 %v298
    %v1580 = vunpack.c.l.b16 %v299
    %v1581 = vunpack.c.h.b16 %v299
    %v1582 = vunpack.c.l.b16 %v300
    %v1583 = vunpack.c.h.b16 %v300
    %v1584 = vunpack.c.l.b16 %v301
    %v1585 = vunpack.c.h.b16 %v301
    %v1586 = vunpack.c.l.b16 %v302
    %v1587 = vunpack.c.h.b16 %v302
    %v1588 = vunpack.c.l.b16 %v303
    %v1589 = vunpack.c.h.b16 %v303
    %v1590 = vunpack.c.l.b16 %v304
    %v1591 = vunpack.c.h.b16 %v304
    %v1592 = vunpack.c.l.b16 %v305
    %v1593 = vunpack.c.h.b16 %v305
    %v1594 = vunpack.c.l.b16 %v306
    %v1595 = vunpack.c.h.b16 %v306
    %v1596 = vunpack.c.l.b16 %v307
    %v1597 = vunpack.c.h.b16 %v307
    %v1598 = vunpack.c.l.b16 %v308
    %v1599 = vunpack.c.h.b16 %v308
    %v1600 = vunpack.c.l.b16 %v309
    %v1601 = vunpack.c.h.b16 %v309
    %v1602 = vunpack.c.l.b16 %v310
    %v1603 = vunpack.c.h.b16 %v310
    %v1604 = vunpack.c.l.b16 %v311
    %v1605 = vunpack.c.h.b16 %v311
    %v1606 = vunpack.c.l.b16 %v312
    %v1607 = vunpack.c.h.b16 %v312
    %v1608 = vunpack.c.l.b16 %v313
    %v1609 = vunpack.c.h.b16 %v313
    %v1610 = vunpack.c.l.b16 %v314
    %v1611 = vunpack.c.h.b16 %v314
    %v1612 = vunpack.c.l.b16 %v315
    %v1613 = vunpack.c.h.b16 %v315
    %v1614 = vunpack.c.l.b16 %v316
    %v1615 = vunpack.c.h.b16 %v316
    %v1616 = vunpack.c.l.b16 %v317
    %v1617 = vunpack.c.h.b16 %v317
    %v1618 = vunpack.c.l.b16 %v318
    %v1619 = vunpack.c.h.b16 %v318
    %v1620 = vunpack.c.l.b16 %v319
    %v1621 = vunpack.c.h.b16 %v319
    %v1622 = vunpack.c.l.b16 %v320
    %v1623 = vunpack.c.h.b16 %v320
    %v1624 = vunpack.c.l.b16 %v321
    %v1625 = vunpack.c.h.b16 %v321
    %v1626 = vunpack.c.l.b16 %v322
    %v1627 = vunpack.c.h.b16 %v322
    %v1628 = vunpack.c.l.b16 %v323
    %v1629 = vunpack.c.h.b16 %v323
    %v1630 = vunpack.c.l.b16 %v324
    %v1631 = vunpack.c.h.b16 %v324
    %v1632 = vunpack.c.l.b16 %v325
    %v1633 = vunpack.c.h.b16 %v325
    %v1634 = vunpack.c.l.b16 %v326
    %v1635 = vunpack.c.h.b16 %v326
    %v1636 = vunpack.c.l.b16 %v327
    %v1637 = vunpack.c.h.b16 %v327
    %v1638 = vunpack.c.l.b16 %v328
    %v1639 = vunpack.c.h.b16 %v328
    %v1640 = vunpack.c.l.b16 %v329
    %v1641 = vunpack.c.h.b16 %v329
    %v1642 = vunpack.c.l.b16 %v330
    %v1643 = vunpack.c.h.b16 %v330
    %v1644 = vunpack.c.l.b16 %v331
    %v1645 = vunpack.c.h.b16 %v331
    %v1646 = vunpack.c.l.b16 %v332
    %v1647 = vunpack.c.h.b16 %v332
    %v1648 = vunpack.c.l.b16 %v333
    %v1649 = vunpack.c.h.b16 %v333
    %v1650 = vunpack.c.l.b16 %v334
    %v1651 = vunpack.c.h.b16 %v334
    %v1652 = vunpack.c.l.b16 %v335
    %v1653 = vunpack.c.h.b16 %v335
    %v1654 = vunpack.c.l.b16 %v336
    %v1655 = vunpack.c.h.b16 %v336
    %v1656 = vunpack.c.l.b16 %v337
    %v1657 = vunpack.c.h.b16 %v337
    %v1658 = vunpack.c.l.b16 %v338
    %v1659 = vunpack.c.h.b16 %v338
    %v1660 = vunpack.c.l.b16 %v339
    %v1661 = vunpack.c.h.b16 %v339
    %v1662 = vunpack.c.l.b16 %v340
    %v1663 = vunpack.c.h.b16 %v340
    %v1664 = vunpack.c.l.b16 %v341
    %v1665 = vunpack.c.h.b16 %v341
    %v1666 = vunpack.c.l.b16 %v342
    %v1667 = vunpack.c.h.b16 %v342
    %v1668 = vunpack.c.l.b16 %v343
    %v1669 = vunpack.c.h.b16 %v343
    %v1670 = vunpack.c.l.b16 %v344
    %v1671 = vunpack.c.h.b16 %v344
    %v1672 = vunpack.c.l.b16 %v345
    %v1673 = vunpack.c.h.b16 %v345
    %v1674 = vunpack.c.l.b16 %v346
    %v1675 = vunpack.c.h.b16 %v346
    %v1676 = vunpack.c.l.b16 %v347
    %v1677 = vunpack.c.h.b16 %v347
    %v1678 = vunpack.c.l.b16 %v348
    %v1679 = vunpack.c.h.b16 %v348
    %v1680 = vunpack.c.l.b16 %v349
    %v1681 = vunpack.c.h.b16 %v349
    %v1682 = vunpack.c.l.b16 %v350
    %v1683 = vunpack.c.h.b16 %v350
    %v1684 = vunpack.c.l.b16 %v351
    %v1685 = vunpack.c.h.b16 %v351
    %v1686 = vunpack.c.l.b16 %v352
    %v1687 = vunpack.c.h.b16 %v352
    %v1688 = vunpack.c.l.b16 %v353
    %v1689 = vunpack.c.h.b16 %v353
    %v1690 = vunpack.c.l.b16 %v354
    %v1691 = vunpack.c.h.b16 %v354
    %v1692 = vunpack.c.l.b16 %v355
    %v1693 = vunpack.c.h.b16 %v355
    %v1694 = vunpack.c.l.b16 %v356
    %v1695 = vunpack.c.h.b16 %v356
    %v1696 = vunpack.c.l.b16 %v357
    %v1697 = vunpack.c.h.b16 %v357
    %v1698 = vunpack.c.l.b16 %v358
    %v1699 = vunpack.c.h.b16 %v358
    %v1700 = vunpack.c.l.b16 %v359
    %v1701 = vunpack.c.h.b16 %v359
    %v1702 = vunpack.c.l.b16 %v360
    %v1703 = vunpack.c.h.b16 %v360
    %v1704 = vunpack.c.l.b16 %v361
    %v1705 = vunpack.c.h.b16 %v361
    %v1706 = vunpack.c.l.b16 %v362
    %v1707 = vunpack.c.h.b16 %v362
    %v1708 = vunpack.c.l.b16 %v363
    %v1709 = vunpack.c.h.b16 %v363
    %v1710 = vunpack.c.l.b16 %v364
    %v1711 = vunpack.c.h.b16 %v364
    %v1712 = vunpack.c.l.b16 %v365
    %v1713 = vunpack.c.h.b16 %v365
    %v1714 = vunpack.c.l.b16 %v366
    %v1715 = vunpack.c.h.b16 %v366
    %v1716 = vunpack.c.l.b16 %v367
    %v1717 = vunpack.c.h.b16 %v367
    %v1718 = vunpack.c.l.b16 %v368
    %v1719 = vunpack.c.h.b16 %v368
    %v1720 = vunpack.c.l.b16 %v369
    %v1721 = vunpack.c.h.b16 %v369
    %v1722 = vunpack.c.l.b16 %v370
    %v1723 = vunpack.c.h.b16 %v370
    %v1724 = vunpack.c.l.b16 %v371
    %v1725 = vunpack.c.h.b16 %v371
    %v1726 = vunpack.c.l.b16 %v372
    %v1727 = vunpack.c.h.b16 %v372
    %v1728 = vunpack.c.l.b16 %v373
    %v1729 = vunpack.c.h.b16 %v373
    %v1730 = vunpack.c.l.b16 %v374
    %v1731 = vunpack.c.h.b16 %v374
    %v1732 = vunpack.c.l.b16 %v375
    %v1733 = vunpack.c.h.b16 %v375
    %v1734 = vunpack.c.l.b16 %v376
    %v1735 = vunpack.c.h.b16 %v376
    %v1736 = vunpack.c.l.b16 %v377
    %v1737 = vunpack.c.h.b16 %v377
    %v1738 = vunpack.c.l.b16 %v378
    %v1739 = vunpack.c.h.b16 %v378
    %v1740 = vunpack.c.l.b16 %v379
    %v1741 = vunpack.c.h.b16 %v379
    %v1742 = vunpack.c.l.b16 %v380
    %v1743 = vunpack.c.h.b16 %v380
    %v1744 = vunpack.c.l.b16 %v381
    %v1745 = vunpack.c.h.b16 %v381
    %v1746 = vunpack.c.l.b16 %v382
    %v1747 = vunpack.c.h.b16 %v382
    %v1748 = vunpack.c.l.b16 %v383
    %v1749 = vunpack.c.h.b16 %v383
    %v1750 = vunpack.c.l.b16 %v384
    %v1751 = vunpack.c.h.b16 %v384
    %v1752 = vunpack.c.l.b16 %v385
    %v1753 = vunpack.c.h.b16 %v385
    %v1754 = vunpack.c.l.b16 %v386
    %v1755 = vunpack.c.h.b16 %v386
    %v1756 = vunpack.c.l.b16 %v387
    %v1757 = vunpack.c.h.b16 %v387
    %v1758 = vunpack.c.l.b16 %v388
    %v1759 = vunpack.c.h.b16 %v388
    %v1760 = vunpack.c.l.b16 %v389
    %v1761 = vunpack.c.h.b16 %v389
    %v1762 = vunpack.c.l.b16 %v390
    %v1763 = vunpack.c.h.b16 %v390
    %v1764 = vunpack.c.l.b16 %v391
    %v1765 = vunpack.c.h.b16 %v391
    %v1766 = vunpack.c.l.b16 %v392
    %v1767 = vunpack.c.h.b16 %v392
    %v1768 = vunpack.c.l.b16 %v393
    %v1769 = vunpack.c.h.b16 %v393
    %v1770 = vunpack.c.l.b16 %v394
    %v1771 = vunpack.c.h.b16 %v394
    %v1772 = vunpack.c.l.b16 %v395
    %v1773 = vunpack.c.h.b16 %v395
    %v1774 = vunpack.c.l.b16 %v396
    %v1775 = vunpack.c.h.b16 %v396
    %v1776 = vunpack.c.l.b16 %v397
    %v1777 = vunpack.c.h.b16 %v397
    %v1778 = vunpack.c.l.b16 %v398
    %v1779 = vunpack.c.h.b16 %v398
    %v1780 = vunpack.c.l.b16 %v399
    %v1781 = vunpack.c.h.b16 %v399
    %v1782 = vunpack.c.l.b16 %v400
    %v1783 = vunpack.c.h.b16 %v400
    %v1784 = vunpack.c.l.b16 %v401
    %v1785 = vunpack.c.h.b16 %v401
    %v1786 = vunpack.c.l.b16 %v402
    %v1787 = vunpack.c.h.b16 %v402
    %v1788 = vunpack.c.l.b16 %v403
    %v1789 = vunpack.c.h.b16 %v403
    %v1790 = vunpack.c.l.b16 %v404
    %v1791 = vunpack.c.h.b16 %v404
    %v1792 = vunpack.c.l.b16 %v405
    %v1793 = vunpack.c.h.b16 %v405
    %v1794 = vunpack.c.l.b16 %v406
    %v1795 = vunpack.c.h.b16 %v406
    %v1796 = vunpack.c.l.b16 %v407
    %v1797 = vunpack.c.h.b16 %v407
    %v1798 = vunpack.c.l.b16 %v408
    %v1799 = vunpack.c.h.b16 %v408
    %v1800 = vunpack.c.l.b16 %v409
    %v1801 = vunpack.c.h.b16 %v409
    %v1802 = vunpack.c.l.b16 %v410
    %v1803 = vunpack.c.h.b16 %v410
    %v1804 = vunpack.c.l.b16 %v411
    %v1805 = vunpack.c.h.b16 %v411
    %v1806 = vunpack.c.l.b16 %v412
    %v1807 = vunpack.c.h.b16 %v412
    %v1808 = vunpack.c.l.b16 %v413
    %v1809 = vunpack.c.h.b16 %v413
    %v1810 = vunpack.c.l.b16 %v414
    %v1811 = vunpack.c.h.b16 %v414
    %v1812 = vunpack.c.l.b16 %v415
    %v1813 = vunpack.c.h.b16 %v415
    %v1814 = vunpack.c.l.b16 %v416
    %v1815 = vunpack.c.h.b16 %v416
    %v1816 = vunpack.c.l.b16 %v417
    %v1817 = vunpack.c.h.b16 %v417
    %v1818 = vunpack.c.l.b16 %v418
    %v1819 = vunpack.c.h.b16 %v418
    %v1820 = vunpack.c.l.b16 %v419
    %v1821 = vunpack.c.h.b16 %v419
    %v1822 = vunpack.c.l.b16 %v420
    %v1823 = vunpack.c.h.b16 %v420
    %v1824 = vunpack.c.l.b16 %v421
    %v1825 = vunpack.c.h.b16 %v421
    %v1826 = vunpack.c.l.b16 %v422
    %v1827 = vunpack.c.h.b16 %v422
    %v1828 = vunpack.c.l.b16 %v423
    %v1829 = vunpack.c.h.b16 %v423
    %v1830 = vunpack.c.l.b16 %v424
    %v1831 = vunpack.c.h.b16 %v424
    %v1832 = vunpack.c.l.b16 %v425
    %v1833 = vunpack.c.h.b16 %v425
    %v1834 = vunpack.c.l.b16 %v426
    %v1835 = vunpack.c.h.b16 %v426
    %v1836 = vunpack.c.l.b16 %v427
    %v1837 = vunpack.c.h.b16 %v427
    %v1838 = vunpack.c.l.b16 %v428
    %v1839 = vunpack.c.h.b16 %v428
    %v1840 = vunpack.c.l.b16 %v429
    %v1841 = vunpack.c.h.b16 %v429
    %v1842 = vunpack.c.l.b16 %v430
    %v1843 = vunpack.c.h.b16 %v430
    %v1844 = vunpack.c.l.b16 %v431
    %v1845 = vunpack.c.h.b16 %v431
    %v1846 = vunpack.c.l.b16 %v432
    %v1847 = vunpack.c.h.b16 %v432
    %v1848 = vunpack.c.l.b16 %v433
    %v1849 = vunpack.c.h.b16 %v433
    %v1850 = vunpack.c.l.b16 %v434
    %v1851 = vunpack.c.h.b16 %v434
    %v1852 = vunpack.c.l.b16 %v435
    %v1853 = vunpack.c.h.b16 %v435
    %v1854 = vunpack.c.l.b16 %v436
    %v1855 = vunpack.c.h.b16 %v436
    %v1856 = vunpack.c.l.b16 %v437
    %v1857 = vunpack.c.h.b16 %v437
    %v1858 = vunpack.c.l.b16 %v438
    %v1859 = vunpack.c.h.b16 %v438
    %v1860 = vunpack.c.l.b16 %v439
    %v1861 = vunpack.c.h.b16 %v439
    %v1862 = vunpack.c.l.b16 %v440
    %v1863 = vunpack.c.h.b16 %v440
    %v1864 = vunpack.c.l.b16 %v441
    %v1865 = vunpack.c.h.b16 %v441
    %v1866 = vunpack.c.l.b16 %v442
    %v1867 = vunpack.c.h.b16 %v442
    %v1868 = vunpack.c.l.b16 %v443
    %v1869 = vunpack.c.h.b16 %v443
    %v1870 = vunpack.c.l.b16 %v444
    %v1871 = vunpack.c.h.b16 %v444
    %v1872 = vunpack.c.l.b16 %v445
    %v1873 = vunpack.c.h.b16 %v445
    %v1874 = vunpack.c.l.b16 %v446
    %v1875 = vunpack.c.h.b16 %v446
    %v1876 = vunpack.c.l.b16 %v447
    %v1877 = vunpack.c.h.b16 %v447
    %v1878 = vunpack.c.l.b16 %v448
    %v1879 = vunpack.c.h.b16 %v448
    %v1880 = vunpack.c.l.b16 %v449
    %v1881 = vunpack.c.h.b16 %v449
    %v1882 = vunpack.c.l.b16 %v450
    %v1883 = vunpack.c.h.b16 %v450
    %v1884 = vunpack.c.l.b16 %v451
    %v1885 = vunpack.c.h.b16 %v451
    %v1886 = vunpack.c.l.b16 %v452
    %v1887 = vunpack.c.h.b16 %v452
    %v1888 = vunpack.c.l.b16 %v453
    %v1889 = vunpack.c.h.b16 %v453
    %v1890 = vunpack.c.l.b16 %v454
    %v1891 = vunpack.c.h.b16 %v454
    %v1892 = vunpack.c.l.b16 %v455
    %v1893 = vunpack.c.h.b16 %v455
    %v1894 = vunpack.c.l.b16 %v456
    %v1895 = vunpack.c.h.b16 %v456
    %v1896 = vunpack.c.l.b16 %v457
    %v1897 = vunpack.c.h.b16 %v457
    %v1898 = vunpack.c.l.b16 %v458
    %v1899 = vunpack.c.h.b16 %v458
    %v1900 = vunpack.c.l.b16 %v459
    %v1901 = vunpack.c.h.b16 %v459
    %v1902 = vunpack.c.l.b16 %v460
    %v1903 = vunpack.c.h.b16 %v460
    %v1904 = vunpack.c.l.b16 %v461
    %v1905 = vunpack.c.h.b16 %v461
    %v1906 = vunpack.c.l.b16 %v462
    %v1907 = vunpack.c.h.b16 %v462
    %v1908 = vunpack.c.l.b16 %v463
    %v1909 = vunpack.c.h.b16 %v463
    %v1910 = vunpack.c.l.b16 %v464
    %v1911 = vunpack.c.h.b16 %v464
    %v1912 = vunpack.c.l.b16 %v465
    %v1913 = vunpack.c.h.b16 %v465
    %v1914 = vunpack.c.l.b16 %v466
    %v1915 = vunpack.c.h.b16 %v466
    %v1916 = vunpack.c.l.b16 %v467
    %v1917 = vunpack.c.h.b16 %v467
    %v1918 = vunpack.c.l.b16 %v468
    %v1919 = vunpack.c.h.b16 %v468
    %v1920 = vunpack.c.l.b16 %v469
    %v1921 = vunpack.c.h.b16 %v469
    %v1922 = vunpack.c.l.b16 %v470
    %v1923 = vunpack.c.h.b16 %v470
    %v1924 = vunpack.c.l.b16 %v471
    %v1925 = vunpack.c.h.b16 %v471
    %v1926 = vunpack.c.l.b16 %v472
    %v1927 = vunpack.c.h.b16 %v472
    %v1928 = vunpack.c.l.b16 %v473
    %v1929 = vunpack.c.h.b16 %v473
    %v1930 = vunpack.c.l.b16 %v474
    %v1931 = vunpack.c.h.b16 %v474
    %v1932 = vunpack.c.l.b16 %v475
    %v1933 = vunpack.c.h.b16 %v475
    %v1934 = vunpack.c.l.b16 %v476
    %v1935 = vunpack.c.h.b16 %v476
    %v1936 = vunpack.c.l.b16 %v477
    %v1937 = vunpack.c.h.b16 %v477
    %v1938 = vunpack.c.l.b16 %v478
    %v1939 = vunpack.c.h.b16 %v478
    %v1940 = vunpack.c.l.b16 %v479
    %v1941 = vunpack.c.h.b16 %v479
    %v1942 = vunpack.c.l.b16 %v480
    %v1943 = vunpack.c.h.b16 %v480
    %v1944 = vunpack.c.l.b16 %v481
    %v1945 = vunpack.c.h.b16 %v481
    %v1946 = vunpack.c.l.b16 %v482
    %v1947 = vunpack.c.h.b16 %v482
    %v1948 = vunpack.c.l.b16 %v483
    %v1949 = vunpack.c.h.b16 %v483
    %v1950 = vunpack.c.l.b16 %v484
    %v1951 = vunpack.c.h.b16 %v484
    %v1952 = vunpack.c.l.b16 %v485
    %v1953 = vunpack.c.h.b16 %v485
    %v1954 = vunpack.c.l.b16 %v486
    %v1955 = vunpack.c.h.b16 %v486
    %v1956 = vunpack.c.l.b16 %v487
    %v1957 = vunpack.c.h.b16 %v487
    %v1958 = vunpack.c.l.b16 %v488
    %v1959 = vunpack.c.h.b16 %v488
    %v1960 = vunpack.c.l.b16 %v489
    %v1961 = vunpack.c.h.b16 %v489
    %v1962 = vunpack.c.l.b16 %v490
    %v1963 = vunpack.c.h.b16 %v490
    %v1964 = vunpack.c.l.b16 %v491
    %v1965 = vunpack.c.h.b16 %v491
    %v1966 = vunpack.c.l.b16 %v492
    %v1967 = vunpack.c.h.b16 %v492
    %v1968 = vunpack.c.l.b16 %v493
    %v1969 = vunpack.c.h.b16 %v493
    %v1970 = vunpack.c.l.b16 %v494
    %v1971 = vunpack.c.h.b16 %v494
    %v1972 = vunpack.c.l.b16 %v495
    %v1973 = vunpack.c.h.b16 %v495
    %v1974 = vunpack.c.l.b16 %v496
    %v1975 = vunpack.c.h.b16 %v496
    %v1976 = vunpack.c.l.b16 %v497
    %v1977 = vunpack.c.h.b16 %v497
    %v1978 = vunpack.c.l.b16 %v498
    %v1979 = vunpack.c.h.b16 %v498
    %v1980 = vunpack.c.l.b16 %v499
    %v1981 = vunpack.c.h.b16 %v499
    %v1982 = vunpack.c.l.b16 %v500
    %v1983 = vunpack.c.h.b16 %v500
    %v1984 = vunpack.c.l.b16 %v501
    %v1985 = vunpack.c.h.b16 %v501
    %v1986 = vunpack.c.l.b16 %v502
    %v1987 = vunpack.c.h.b16 %v502
    %v1988 = vunpack.c.l.b16 %v503
    %v1989 = vunpack.c.h.b16 %v503
    %v1990 = vunpack.c.l.b16 %v504
    %v1991 = vunpack.c.h.b16 %v504
    %v1992 = vunpack.c.l.b16 %v505
    %v1993 = vunpack.c.h.b16 %v505
    %v1994 = vunpack.c.l.b16 %v506
    %v1995 = vunpack.c.h.b16 %v506
    %v1996 = vunpack.c.l.b16 %v507
    %v1997 = vunpack.c.h.b16 %v507
    %v1998 = vunpack.c.l.b16 %v508
    %v1999 = vunpack.c.h.b16 %v508
    %v2000 = vunpack.c.l.b16 %v509
    %v2001 = vunpack.c.h.b16 %v509
    %v2002 = vunpack.c.l.b16 %v510
    %v2003 = vunpack.c.h.b16 %v510
    %v2004 = vunpack.c.l.b16 %v511
    %v2005 = vunpack.c.h.b16 %v511
    %v2006 = vunpack.c.l.b16 %v512
    %v2007 = vunpack.c.h.b16 %v512
    %v2008 = vunpack.c.l.b16 %v513
    %v2009 = vunpack.c.h.b16 %v513
    %v2010 = vunpack.c.l.b16 %v514
    %v2011 = vunpack.c.h.b16 %v514
    %v2012 = vunpack.c.l.b16 %v515
    %v2013 = vunpack.c.h.b16 %v515
    %v2014 = vunpack.c.l.b16 %v516
    %v2015 = vunpack.c.h.b16 %v516
    %v2016 = vunpack.c.l.b16 %v517
    %v2017 = vunpack.c.h.b16 %v517
    %v2018 = vunpack.c.l.b16 %v518
    %v2019 = vunpack.c.h.b16 %v518
    %v2020 = vunpack.c.l.b16 %v519
    %v2021 = vunpack.c.h.b16 %v519
    %v2022 = vunpack.c.l.b16 %v520
    %v2023 = vunpack.c.h.b16 %v520
    %v2024 = vunpack.c.l.b16 %v521
    %v2025 = vunpack.c.h.b16 %v521
    %v2026 = vunpack.c.l.b16 %v522
    %v2027 = vunpack.c.h.b16 %v522
    %v2028 = vunpack.c.l.b16 %v523
    %v2029 = vunpack.c.h.b16 %v523
    %v2030 = vunpack.c.l.b16 %v524
    %v2031 = vunpack.c.h.b16 %v524
    %v2032 = vunpack.c.l.b16 %v525
    %v2033 = vunpack.c.h.b16 %v525
    %v2034 = vunpack.c.l.b16 %v526
    %v2035 = vunpack.c.h.b16 %v526
    %v2036 = vunpack.c.l.b16 %v527
    %v2037 = vunpack.c.h.b16 %v527
    %v2038 = vunpack.c.l.b16 %v528
    %v2039 = vunpack.c.h.b16 %v528
    %v2040 = vunpack.c.l.b16 %v529
    %v2041 = vunpack.c.h.b16 %v529
    %v2042 = vunpack.c.l.b16 %v530
    %v2043 = vunpack.c.h.b16 %v530
    %v2044 = vunpack.c.l.b16 %v531
    %v2045 = vunpack.c.h.b16 %v531
    %v2046 = vunpack.c.l.b16 %v532
    %v2047 = vunpack.c.h.b16 %v532
    %v2048 = vunpack.c.l.b16 %v533
    %v2049 = vunpack.c.h.b16 %v533
    %v2050 = vunpack.c.l.b16 %v534
    %v2051 = vunpack.c.h.b16 %v534
    %v2052 = vunpack.c.l.b16 %v535
    %v2053 = vunpack.c.h.b16 %v535
    %v2054 = vunpack.c.l.b16 %v536
    %v2055 = vunpack.c.h.b16 %v536
    %v2056 = vunpack.c.l.b16 %v537
    %v2057 = vunpack.c.h.b16 %v537
    %v2058 = vunpack.c.l.b16 %v538
    %v2059 = vunpack.c.h.b16 %v538
    %v2060 = vunpack.c.l.b16 %v539
    %v2061 = vunpack.c.h.b16 %v539
    %v2062 = vunpack.c.l.b16 %v540
    %v2063 = vunpack.c.h.b16 %v540
    %v2064 = vunpack.c.l.b16 %v541
    %v2065 = vunpack.c.h.b16 %v541
    %v2066 = vunpack.c.l.b16 %v542
    %v2067 = vunpack.c.h.b16 %v542
    %v2068 = vunpack.c.l.b16 %v543
    %v2069 = vunpack.c.h.b16 %v543
    %v2070 = vunpack.c.l.b16 %v544
    %v2071 = vunpack.c.h.b16 %v544
    %v2072 = vunpack.c.l.b16 %v545
    %v2073 = vunpack.c.h.b16 %v545
    %v2074 = vunpack.c.l.b16 %v546
    %v2075 = vunpack.c.h.b16 %v546
    %v2076 = vunpack.c.l.b16 %v547
    %v2077 = vunpack.c.h.b16 %v547
    %v2078 = vunpack.c.l.b16 %v548
    %v2079 = vunpack.c.h.b16 %v548
    %v2080 = vunpack.c.l.b16 %v549
    %v2081 = vunpack.c.h.b16 %v549
    %v2082 = vunpack.c.l.b16 %v550
    %v2083 = vunpack.c.h.b16 %v550
    %v2084 = vunpack.c.l.b16 %v551
    %v2085 = vunpack.c.h.b16 %v551
    %v2086 = vunpack.c.l.b16 %v552
    %v2087 = vunpack.c.h.b16 %v552
    %v2088 = vunpack.c.l.b16 %v553
    %v2089 = vunpack.c.h.b16 %v553
    %v2090 = vunpack.c.l.b16 %v554
    %v2091 = vunpack.c.h.b16 %v554
    %v2092 = vunpack.c.l.b16 %v555
    %v2093 = vunpack.c.h.b16 %v555
    %v2094 = vunpack.c.l.b16 %v556
    %v2095 = vunpack.c.h.b16 %v556
    %v2096 = vunpack.c.l.b16 %v557
    %v2097 = vunpack.c.h.b16 %v557
    %v2098 = vunpack.c.l.b16 %v558
    %v2099 = vunpack.c.h.b16 %v558
    %v2100 = vunpack.c.l.b16 %v559
    %v2101 = vunpack.c.h.b16 %v559
    %v2102 = vunpack.c.l.b16 %v560
    %v2103 = vunpack.c.h.b16 %v560
    %v2104 = vunpack.c.l.b16 %v561
    %v2105 = vunpack.c.h.b16 %v561
    %v2106 = vunpack.c.l.b16 %v562
    %v2107 = vunpack.c.h.b16 %v562
    %v2108 = vunpack.c.l.b16 %v563
    %v2109 = vunpack.c.h.b16 %v563
    %v2110 = vunpack.c.l.b16 %v564
    %v2111 = vunpack.c.h.b16 %v564
    %v2112 = vunpack.c.l.b16 %v565
    %v2113 = vunpack.c.h.b16 %v565
    %v2114 = vunpack.c.l.b16 %v566
    %v2115 = vunpack.c.h.b16 %v566
    %v2116 = vunpack.c.l.b16 %v567
    %v2117 = vunpack.c.h.b16 %v567
    %v2118 = vunpack.c.l.b16 %v568
    %v2119 = vunpack.c.h.b16 %v568
    %v2120 = vunpack.c.l.b16 %v569
    %v2121 = vunpack.c.h.b16 %v569
    %v2122 = vunpack.c.l.b16 %v570
    %v2123 = vunpack.c.h.b16 %v570
    %v2124 = vunpack.c.l.b16 %v571
    %v2125 = vunpack.c.h.b16 %v571
    %v2126 = vpack.c.b16 %v1110, %v1102
    %v2127 = vpack.c.b16 %v1111, %v1103
    %v2128 = vpack.c.b16 %v1112, %v1104
    %v2129 = vpack.c.b16 %v1113, %v1105
    %v2130 = vpack.c.b16 %v1114, %v1106
    %v2131 = vpack.c.b16 %v1115, %v1107
    %v2132 = vpack.c.b16 %v1116, %v1108
    %v2133 = vpack.c.b16 %v1117, %v1109
    %v2134 = vpack.c.b16 %v1126, %v1118
    %v2135 = vpack.c.b16 %v1127, %v1119
    %v2136 = vpack.c.b16 %v1128, %v1120
    %v2137 = vpack.c.b16 %v1129, %v1121
    %v2138 = vpack.c.b16 %v1130, %v1122
    %v2139 = vpack.c.b16 %v1131, %v1123
    %v2140 = vpack.c.b16 %v1132, %v1124
    %v2141 = vpack.c.b16 %v1133, %v1125
    %v2142 = vpack.c.b16 %v1142, %v1134
    %v2143 = vpack.c.b16 %v1143, %v1135
    %v2144 = vpack.c.b16 %v1144, %v1136
    %v2145 = vpack.c.b16 %v1145, %v1137
    %v2146 = vpack.c.b16 %v1146, %v1138
    %v2147 = vpack.c.b16 %v1147, %v1139
    %v2148 = vpack.c.b16 %v1148, %v1140
    %v2149 = vpack.c.b16 %v1149, %v1141
    %v2150 = vpack.c.b16 %v1158, %v1150
    %v2151 = vpack.c.b16 %v1159, %v1151
    %v2152 = vpack.c.b16 %v1160, %v1152
    %v2153 = vpack.c.b16 %v1161, %v1153
    %v2154 = vpack.c.b16 %v1162, %v1154
    %v2155 = vpack.c.b16 %v1163, %v1155
    %v2156 = vpack.c.b16 %v1164, %v1156
    %v2157 = vpack.c.b16 %v1165, %v1157
    %v2158 = vpack.c.b16 %v1174, %v1166
    %v2159 = vpack.c.b16 %v1175, %v1167
    %v2160 = vpack.c.b16 %v1176, %v1168
    %v2161 = vpack.c.b16 %v1177, %v1169
    %v2162 = vpack.c.b16 %v1178, %v1170
    %v2163 = vpack.c.b16 %v1179, %v1171
    %v2164 = vpack.c.b16 %v1180, %v1172
    %v2165 = vpack.c.b16 %v1181, %v1173
    %v2166 = vpack.c.b16 %v1190, %v1182
    %v2167 = vpack.c.b16 %v1191, %v1183
    %v2168 = vpack.c.b16 %v1192, %v1184
    %v2169 = vpack.c.b16 %v1193, %v1185
    %v2170 = vpack.c.b16 %v1194, %v1186
    %v2171 = vpack.c.b16 %v1195, %v1187
    %v2172 = vpack.c.b16 %v1196, %v1188
    %v2173 = vpack.c.b16 %v1197, %v1189
    %v2174 = vpack.c.b16 %v1206, %v1198
    %v2175 = vpack.c.b16 %v1207, %v1199
    %v2176 = vpack.c.b16 %v1208, %v1200
    %v2177 = vpack.c.b16 %v1209, %v1201
    %v2178 = vpack.c.b16 %v1210, %v1202
    %v2179 = vpack.c.b16 %v1211, %v1203
    %v2180 = vpack.c.b16 %v1212, %v1204
    %v2181 = vpack.c.b16 %v1213, %v1205
    %v2182 = vpack.c.b16 %v1222, %v1214
    %v2183 = vpack.c.b16 %v1223, %v1215
    %v2184 = vpack.c.b16 %v1224, %v1216
    %v2185 = vpack.c.b16 %v1225, %v1217
    %v2186 = vpack.c.b16 %v1226, %v1218
    %v2187 = vpack.c.b16 %v1227, %v1219
    %v2188 = vpack.c.b16 %v1228, %v1220
    %v2189 = vpack.c.b16 %v1229, %v1221
    %v2190 = vpack.c.b16 %v1238, %v1230
    %v2191 = vpack.c.b16 %v1239, %v1231
    %v2192 = vpack.c.b16 %v1240, %v1232
    %v2193 = vpack.c.b16 %v1241, %v1233
    %v2194 = vpack.c.b16 %v1242, %v1234
    %v2195 = vpack.c.b16 %v1243, %v1235
    %v2196 = vpack.c.b16 %v1244, %v1236
    %v2197 = vpack.c.b16 %v1245, %v1237
    %v2198 = vpack.c.b16 %v1254, %v1246
    %v2199 = vpack.c.b16 %v1255, %v1247
    %v2200 = vpack.c.b16 %v1256, %v1248
    %v2201 = vpack.c.b16 %v1257, %v1249
    %v2202 = vpack.c.b16 %v1258, %v1250
    %v2203 = vpack.c.b16 %v1259, %v1251
    %v2204 = vpack.c.b16 %v1260, %v1252
    %v2205 = vpack.c.b16 %v1261, %v1253
    %v2206 = vpack.c.b16 %v1270, %v1262
    %v2207 = vpack.c.b16 %v1271, %v1263
    %v2208 = vpack.c.b16 %v1272, %v1264
    %v2209 = vpack.c.b16 %v1273, %v1265
    %v2210 = vpack.c.b16 %v1274, %v1266
    %v2211 = vpack.c.b16 %v1275, %v1267
    %v2212 = vpack.c.b16 %v1276, %v1268
    %v2213 = vpack.c.b16 %v1277, %v1269
    %v2214 = vpack.c.b16 %v1286, %v1278
    %v2215 = vpack.c.b16 %v1287, %v1279
    %v2216 = vpack.c.b16 %v1288, %v1280
    %v2217 = vpack.c.b16 %v1289, %v1281
    %v2218 = vpack.c.b16 %v1290, %v1282
    %v2219 = vpack.c.b16 %v1291, %v1283
    %v2220 = vpack.c.b16 %v1292, %v1284
    %v2221 = vpack.c.b16 %v1293, %v1285
    %v2222 = vpack.c.b16 %v1302, %v1294
    %v2223 = vpack.c.b16 %v1303, %v1295
    %v2224 = vpack.c.b16 %v1304, %v1296
    %v2225 = vpack.c.b16 %v1305, %v1297
    %v2226 = vpack.c.b16 %v1306, %v1298
    %v2227 = vpack.c.b16 %v1307, %v1299
    %v2228 = vpack.c.b16 %v1308, %v1300
    %v2229 = vpack.c.b16 %v1309, %v1301
    %v2230 = vpack.c.b16 %v1318, %v1310
    %v2231 = vpack.c.b16 %v1319, %v1311
    %v2232 = vpack.c.b16 %v1320, %v1312
    %v2233 = vpack.c.b16 %v1321, %v1313
    %v2234 = vpack.c.b16 %v1322, %v1314
    %v2235 = vpack.c.b16 %v1323, %v1315
    %v2236 = vpack.c.b16 %v1324, %v1316
    %v2237 = vpack.c.b16 %v1325, %v1317
    %v2238 = vpack.c.b16 %v1334, %v1326
    %v2239 = vpack.c.b16 %v1335, %v1327
    %v2240 = vpack.c.b16 %v1336, %v1328
    %v2241 = vpack.c.b16 %v1337, %v1329
    %v2242 = vpack.c.b16 %v1338, %v1330
    %v2243 = vpack.c.b16 %v1339, %v1331
    %v2244 = vpack.c.b16 %v1340, %v1332
    %v2245 = vpack.c.b16 %v1341, %v1333
    %v2246 = vpack.c.b16 %v1350, %v1342
    %v2247 = vpack.c.b16 %v1351, %v1343
    %v2248 = vpack.c.b16 %v1352, %v1344
    %v2249 = vpack.c.b16 %v1353, %v1345
    %v2250 = vpack.c.b16 %v1354, %v1346
    %v2251 = vpack.c.b16 %v1355, %v1347
    %v2252 = vpack.c.b16 %v1356, %v1348
    %v2253 = vpack.c.b16 %v1357, %v1349
    %v2254 = vpack.c.b16 %v1366, %v1358
    %v2255 = vpack.c.b16 %v1367, %v1359
    %v2256 = vpack.c.b16 %v1368, %v1360
    %v2257 = vpack.c.b16 %v1369, %v1361
    %v2258 = vpack.c.b16 %v1370, %v1362
    %v2259 = vpack.c.b16 %v1371, %v1363
    %v2260 = vpack.c.b16 %v1372, %v1364
    %v2261 = vpack.c.b16 %v1373, %v1365
    %v2262 = vpack.c.b16 %v1382, %v1374
    %v2263 = vpack.c.b16 %v1383, %v1375
    %v2264 = vpack.c.b16 %v1384, %v1376
    %v2265 = vpack.c.b16 %v1385, %v1377
    %v2266 = vpack.c.b16 %v1386, %v1378
    %v2267 = vpack.c.b16 %v1387, %v1379
    %v2268 = vpack.c.b16 %v1388, %v1380
    %v2269 = vpack.c.b16 %v1389, %v1381
    %v2270 = vpack.c.b16 %v1398, %v1390
    %v2271 = vpack.c.b16 %v1399, %v1391
    %v2272 = vpack.c.b16 %v1400, %v1392
    %v2273 = vpack.c.b16 %v1401, %v1393
    %v2274 = vpack.c.b16 %v1402, %v1394
    %v2275 = vpack.c.b16 %v1403, %v1395
    %v2276 = vpack.c.b16 %v1404, %v1396
    %v2277 = vpack.c.b16 %v1405, %v1397
    %v2278 = vpack.c.b16 %v1414, %v1406
    %v2279 = vpack.c.b16 %v1415, %v1407
    %v2280 = vpack.c.b16 %v1416, %v1408
    %v2281 = vpack.c.b16 %v1417, %v1409
    %v2282 = vpack.c.b16 %v1418, %v1410
    %v2283 = vpack.c.b16 %v1419, %v1411
    %v2284 = vpack.c.b16 %v1420, %v1412
    %v2285 = vpack.c.b16 %v1421, %v1413
    %v2286 = vpack.c.b16 %v1430, %v1422
    %v2287 = vpack.c.b16 %v1431, %v1423
    %v2288 = vpack.c.b16 %v1432, %v1424
    %v2289 = vpack.c.b16 %v1433, %v1425
    %v2290 = vpack.c.b16 %v1434, %v1426
    %v2291 = vpack.c.b16 %v1435, %v1427
    %v2292 = vpack.c.b16 %v1436, %v1428
    %v2293 = vpack.c.b16 %v1437, %v1429
    %v2294 = vpack.c.b16 %v1446, %v1438
    %v2295 = vpack.c.b16 %v1447, %v1439
    %v2296 = vpack.c.b16 %v1448, %v1440
    %v2297 = vpack.c.b16 %v1449, %v1441
    %v2298 = vpack.c.b16 %v1450, %v1442
    %v2299 = vpack.c.b16 %v1451, %v1443
    %v2300 = vpack.c.b16 %v1452, %v1444
    %v2301 = vpack.c.b16 %v1453, %v1445
    %v2302 = vpack.c.b16 %v1462, %v1454
    %v2303 = vpack.c.b16 %v1463, %v1455
    %v2304 = vpack.c.b16 %v1464, %v1456
    %v2305 = vpack.c.b16 %v1465, %v1457
    %v2306 = vpack.c.b16 %v1466, %v1458
    %v2307 = vpack.c.b16 %v1467, %v1459
    %v2308 = vpack.c.b16 %v1468, %v1460
    %v2309 = vpack.c.b16 %v1469, %v1461
    %v2310 = vpack.c.b16 %v1478, %v1470
    %v2311 = vpack.c.b16 %v1479, %v1471
    %v2312 = vpack.c.b16 %v1480, %v1472
    %v2313 = vpack.c.b16 %v1481, %v1473
    %v2314 = vpack.c.b16 %v1482, %v1474
    %v2315 = vpack.c.b16 %v1483, %v1475
    %v2316 = vpack.c.b16 %v1484, %v1476
    %v2317 = vpack.c.b16 %v1485, %v1477
    %v2318 = vpack.c.b16 %v1494, %v1486
    %v2319 = vpack.c.b16 %v1495, %v1487
    %v2320 = vpack.c.b16 %v1496, %v1488
    %v2321 = vpack.c.b16 %v1497, %v1489
    %v2322 = vpack.c.b16 %v1498, %v1490
    %v2323 = vpack.c.b16 %v1499, %v1491
    %v2324 = vpack.c.b16 %v1500, %v1492
    %v2325 = vpack.c.b16 %v1501, %v1493
    %v2326 = vpack.c.b16 %v1510, %v1502
    %v2327 = vpack.c.b16 %v1511, %v1503
    %v2328 = vpack.c.b16 %v1512, %v1504
    %v2329 = vpack.c.b16 %v1513, %v1505
    %v2330 = vpack.c.b16 %v1514, %v1506
    %v2331 = vpack.c.b16 %v1515, %v1507
    %v2332 = vpack.c.b16 %v1516, %v1508
    %v2333 = vpack.c.b16 %v1517, %v1509
    %v2334 = vpack.c.b16 %v1526, %v1518
    %v2335 = vpack.c.b16 %v1527, %v1519
    %v2336 = vpack.c.b16 %v1528, %v1520
    %v2337 = vpack.c.b16 %v1529, %v1521
    %v2338 = vpack.c.b16 %v1530, %v1522
    %v2339 = vpack.c.b16 %v1531, %v1523
    %v2340 = vpack.c.b16 %v1532, %v1524
    %v2341 = vpack.c.b16 %v1533, %v1525
    %v2342 = vpack.c.b16 %v1542, %v1534
    %v2343 = vpack.c.b16 %v1543, %v1535
    %v2344 = vpack.c.b16 %v1544, %v1536
    %v2345 = vpack.c.b16 %v1545, %v1537
    %v2346 = vpack.c.b16 %v1546, %v1538
    %v2347 = vpack.c.b16 %v1547, %v1539
    %v2348 = vpack.c.b16 %v1548, %v1540
    %v2349 = vpack.c.b16 %v1549, %v1541
    %v2350 = vpack.c.b16 %v1558, %v1550
    %v2351 = vpack.c.b16 %v1559, %v1551
    %v2352 = vpack.c.b16 %v1560, %v1552
    %v2353 = vpack.c.b16 %v1561, %v1553
    %v2354 = vpack.c.b16 %v1562, %v1554
    %v2355 = vpack.c.b16 %v1563, %v1555
    %v2356 = vpack.c.b16 %v1564, %v1556
    %v2357 = vpack.c.b16 %v1565, %v1557
    %v2358 = vpack.c.b16 %v1574, %v1566
    %v2359 = vpack.c.b16 %v1575, %v1567
    %v2360 = vpack.c.b16 %v1576, %v1568
    %v2361 = vpack.c.b16 %v1577, %v1569
    %v2362 = vpack.c.b16 %v1578, %v1570
    %v2363 = vpack.c.b16 %v1579, %v1571
    %v2364 = vpack.c.b16 %v1580, %v1572
    %v2365 = vpack.c.b16 %v1581, %v1573
    %v2366 = vpack.c.b16 %v1590, %v1582
    %v2367 = vpack.c.b16 %v1591, %v1583
    %v2368 = vpack.c.b16 %v1592, %v1584
    %v2369 = vpack.c.b16 %v1593, %v1585
    %v2370 = vpack.c.b16 %v1594, %v1586
    %v2371 = vpack.c.b16 %v1595, %v1587
    %v2372 = vpack.c.b16 %v1596, %v1588
    %v2373 = vpack.c.b16 %v1597, %v1589
    %v2374 = vpack.c.b16 %v1606, %v1598
    %v2375 = vpack.c.b16 %v1607, %v1599
    %v2376 = vpack.c.b16 %v1608, %v1600
    %v2377 = vpack.c.b16 %v1609, %v1601
    %v2378 = vpack.c.b16 %v1610, %v1602
    %v2379 = vpack.c.b16 %v1611, %v1603
    %v2380 = vpack.c.b16 %v1612, %v1604
    %v2381 = vpack.c.b16 %v1613, %v1605
    %v2382 = vpack.c.b16 %v1622, %v1614
    %v2383 = vpack.c.b16 %v1623, %v1615
    %v2384 = vpack.c.b16 %v1624, %v1616
    %v2385 = vpack.c.b16 %v1625, %v1617
    %v2386 = vpack.c.b16 %v1626, %v1618
    %v2387 = vpack.c.b16 %v1627, %v1619
    %v2388 = vpack.c.b16 %v1628, %v1620
    %v2389 = vpack.c.b16 %v1629, %v1621
    %v2390 = vpack.c.b16 %v1638, %v1630
    %v2391 = vpack.c.b16 %v1639, %v1631
    %v2392 = vpack.c.b16 %v1640, %v1632
    %v2393 = vpack.c.b16 %v1641, %v1633
    %v2394 = vpack.c.b16 %v1642, %v1634
    %v2395 = vpack.c.b16 %v1643, %v1635
    %v2396 = vpack.c.b16 %v1644, %v1636
    %v2397 = vpack.c.b16 %v1645, %v1637
    %v2398 = vpack.c.b16 %v1654, %v1646
    %v2399 = vpack.c.b16 %v1655, %v1647
    %v2400 = vpack.c.b16 %v1656, %v1648
    %v2401 = vpack.c.b16 %v1657, %v1649
    %v2402 = vpack.c.b16 %v1658, %v1650
    %v2403 = vpack.c.b16 %v1659, %v1651
    %v2404 = vpack.c.b16 %v1660, %v1652
    %v2405 = vpack.c.b16 %v1661, %v1653
    %v2406 = vpack.c.b16 %v1670, %v1662
    %v2407 = vpack.c.b16 %v1671, %v1663
    %v2408 = vpack.c.b16 %v1672, %v1664
    %v2409 = vpack.c.b16 %v1673, %v1665
    %v2410 = vpack.c.b16 %v1674, %v1666
    %v2411 = vpack.c.b16 %v1675, %v1667
    %v2412 = vpack.c.b16 %v1676, %v1668
    %v2413 = vpack.c.b16 %v1677, %v1669
    %v2414 = vpack.c.b16 %v1686, %v1678
    %v2415 = vpack.c.b16 %v1687, %v1679
    %v2416 = vpack.c.b16 %v1688, %v1680
    %v2417 = vpack.c.b16 %v1689, %v1681
    %v2418 = vpack.c.b16 %v1690, %v1682
    %v2419 = vpack.c.b16 %v1691, %v1683
    %v2420 = vpack.c.b16 %v1692, %v1684
    %v2421 = vpack.c.b16 %v1693, %v1685
    %v2422 = vpack.c.b16 %v1702, %v1694
    %v2423 = vpack.c.b16 %v1703, %v1695
    %v2424 = vpack.c.b16 %v1704, %v1696
    %v2425 = vpack.c.b16 %v1705, %v1697
    %v2426 = vpack.c.b16 %v1706, %v1698
    %v2427 = vpack.c.b16 %v1707, %v1699
    %v2428 = vpack.c.b16 %v1708, %v1700
    %v2429 = vpack.c.b16 %v1709, %v1701
    %v2430 = vpack.c.b16 %v1718, %v1710
    %v2431 = vpack.c.b16 %v1719, %v1711
    %v2432 = vpack.c.b16 %v1720, %v1712
    %v2433 = vpack.c.b16 %v1721, %v1713
    %v2434 = vpack.c.b16 %v1722, %v1714
    %v2435 = vpack.c.b16 %v1723, %v1715
    %v2436 = vpack.c.b16 %v1724, %v1716
    %v2437 = vpack.c.b16 %v1725, %v1717
    %v2438 = vpack.c.b16 %v1734, %v1726
    %v2439 = vpack.c.b16 %v1735, %v1727
    %v2440 = vpack.c.b16 %v1736, %v1728
    %v2441 = vpack.c.b16 %v1737, %v1729
    %v2442 = vpack.c.b16 %v1738, %v1730
    %v2443 = vpack.c.b16 %v1739, %v1731
    %v2444 = vpack.c.b16 %v1740, %v1732
    %v2445 = vpack.c.b16 %v1741, %v1733
    %v2446 = vpack.c.b16 %v1750, %v1742
    %v2447 = vpack.c.b16 %v1751, %v1743
    %v2448 = vpack.c.b16 %v1752, %v1744
    %v2449 = vpack.c.b16 %v1753, %v1745
    %v2450 = vpack.c.b16 %v1754, %v1746
    %v2451 = vpack.c.b16 %v1755, %v1747
    %v2452 = vpack.c.b16 %v1756, %v1748
    %v2453 = vpack.c.b16 %v1757, %v1749
    %v2454 = vpack.c.b16 %v1766, %v1758
    %v2455 = vpack.c.b16 %v1767, %v1759
    %v2456 = vpack.c.b16 %v1768, %v1760
    %v2457 = vpack.c.b16 %v1769, %v1761
    %v2458 = vpack.c.b16 %v1770, %v1762
    %v2459 = vpack.c.b16 %v1771, %v1763
    %v2460 = vpack.c.b16 %v1772, %v1764
    %v2461 = vpack.c.b16 %v1773, %v1765
    %v2462 = vpack.c.b16 %v1782, %v1774
    %v2463 = vpack.c.b16 %v1783, %v1775
    %v2464 = vpack.c.b16 %v1784, %v1776
    %v2465 = vpack.c.b16 %v1785, %v1777
    %v2466 = vpack.c.b16 %v1786, %v1778
    %v2467 = vpack.c.b16 %v1787, %v1779
    %v2468 = vpack.c.b16 %v1788, %v1780
    %v2469 = vpack.c.b16 %v1789, %v1781
    %v2470 = vpack.c.b16 %v1798, %v1790
    %v2471 = vpack.c.b16 %v1799, %v1791
    %v2472 = vpack.c.b16 %v1800, %v1792
    %v2473 = vpack.c.b16 %v1801, %v1793
    %v2474 = vpack.c.b16 %v1802, %v1794
    %v2475 = vpack.c.b16 %v1803, %v1795
    %v2476 = vpack.c.b16 %v1804, %v1796
    %v2477 = vpack.c.b16 %v1805, %v1797
    %v2478 = vpack.c.b16 %v1814, %v1806
    %v2479 = vpack.c.b16 %v1815, %v1807
    %v2480 = vpack.c.b16 %v1816, %v1808
    %v2481 = vpack.c.b16 %v1817, %v1809
    %v2482 = vpack.c.b16 %v1818, %v1810
    %v2483 = vpack.c.b16 %v1819, %v1811
    %v2484 = vpack.c.b16 %v1820, %v1812
    %v2485 = vpack.c.b16 %v1821, %v1813
    %v2486 = vpack.c.b16 %v1830, %v1822
    %v2487 = vpack.c.b16 %v1831, %v1823
    %v2488 = vpack.c.b16 %v1832, %v1824
    %v2489 = vpack.c.b16 %v1833, %v1825
    %v2490 = vpack.c.b16 %v1834, %v1826
    %v2491 = vpack.c.b16 %v1835, %v1827
    %v2492 = vpack.c.b16 %v1836, %v1828
    %v2493 = vpack.c.b16 %v1837, %v1829
    %v2494 = vpack.c.b16 %v1846, %v1838
    %v2495 = vpack.c.b16 %v1847, %v1839
    %v2496 = vpack.c.b16 %v1848, %v1840
    %v2497 = vpack.c.b16 %v1849, %v1841
    %v2498 = vpack.c.b16 %v1850, %v1842
    %v2499 = vpack.c.b16 %v1851, %v1843
    %v2500 = vpack.c.b16 %v1852, %v1844
    %v2501 = vpack.c.b16 %v1853, %v1845
    %v2502 = vpack.c.b16 %v1862, %v1854
    %v2503 = vpack.c.b16 %v1863, %v1855
    %v2504 = vpack.c.b16 %v1864, %v1856
    %v2505 = vpack.c.b16 %v1865, %v1857
    %v2506 = vpack.c.b16 %v1866, %v1858
    %v2507 = vpack.c.b16 %v1867, %v1859
    %v2508 = vpack.c.b16 %v1868, %v1860
    %v2509 = vpack.c.b16 %v1869, %v1861
    %v2510 = vpack.c.b16 %v1878, %v1870
    %v2511 = vpack.c.b16 %v1879, %v1871
    %v2512 = vpack.c.b16 %v1880, %v1872
    %v2513 = vpack.c.b16 %v1881, %v1873
    %v2514 = vpack.c.b16 %v1882, %v1874
    %v2515 = vpack.c.b16 %v1883, %v1875
    %v2516 = vpack.c.b16 %v1884, %v1876
    %v2517 = vpack.c.b16 %v1885, %v1877
    %v2518 = vpack.c.b16 %v1894, %v1886
    %v2519 = vpack.c.b16 %v1895, %v1887
    %v2520 = vpack.c.b16 %v1896, %v1888
    %v2521 = vpack.c.b16 %v1897, %v1889
    %v2522 = vpack.c.b16 %v1898, %v1890
    %v2523 = vpack.c.b16 %v1899, %v1891
    %v2524 = vpack.c.b16 %v1900, %v1892
    %v2525 = vpack.c.b16 %v1901, %v1893
    %v2526 = vpack.c.b16 %v1910, %v1902
    %v2527 = vpack.c.b16 %v1911, %v1903
    %v2528 = vpack.c.b16 %v1912, %v1904
    %v2529 = vpack.c.b16 %v1913, %v1905
    %v2530 = vpack.c.b16 %v1914, %v1906
    %v2531 = vpack.c.b16 %v1915, %v1907
    %v2532 = vpack.c.b16 %v1916, %v1908
    %v2533 = vpack.c.b16 %v1917, %v1909
    %v2534 = vpack.c.b16 %v1926, %v1918
    %v2535 = vpack.c.b16 %v1927, %v1919
    %v2536 = vpack.c.b16 %v1928, %v1920
    %v2537 = vpack.c.b16 %v1929, %v1921
    %v2538 = vpack.c.b16 %v1930, %v1922
    %v2539 = vpack.c.b16 %v1931, %v1923
    %v2540 = vpack.c.b16 %v1932, %v1924
    %v2541 = vpack.c.b16 %v1933, %v1925
    %v2542 = vpack.c.b16 %v1942, %v1934
    %v2543 = vpack.c.b16 %v1943, %v1935
    %v2544 = vpack.c.b16 %v1944, %v1936
    %v2545 = vpack.c.b16 %v1945, %v1937
    %v2546 = vpack.c.b16 %v1946, %v1938
    %v2547 = vpack.c.b16 %v1947, %v1939
    %v2548 = vpack.c.b16 %v1948, %v1940
    %v2549 = vpack.c.b16 %v1949, %v1941
    %v2550 = vpack.c.b16 %v1958, %v1950
    %v2551 = vpack.c.b16 %v1959, %v1951
    %v2552 = vpack.c.b16 %v1960, %v1952
    %v2553 = vpack.c.b16 %v1961, %v1953
    %v2554 = vpack.c.b16 %v1962, %v1954
    %v2555 = vpack.c.b16 %v1963, %v1955
    %v2556 = vpack.c.b16 %v1964, %v1956
    %v2557 = vpack.c.b16 %v1965, %v1957
    %v2558 = vpack.c.b16 %v1974, %v1966
    %v2559 = vpack.c.b16 %v1975, %v1967
    %v2560 = vpack.c.b16 %v1976, %v1968
    %v2561 = vpack.c.b16 %v1977, %v1969
    %v2562 = vpack.c.b16 %v1978, %v1970
    %v2563 = vpack.c.b16 %v1979, %v1971
    %v2564 = vpack.c.b16 %v1980, %v1972
    %v2565 = vpack.c.b16 %v1981, %v1973
    %v2566 = vpack.c.b16 %v1990, %v1982
    %v2567 = vpack.c.b16 %v1991, %v1983
    %v2568 = vpack.c.b16 %v1992, %v1984
    %v2569 = vpack.c.b16 %v1993, %v1985
    %v2570 = vpack.c.b16 %v1994, %v1986
    %v2571 = vpack.c.b16 %v1995, %v1987
    %v2572 = vpack.c.b16 %v1996, %v1988
    %v2573 = vpack.c.b16 %v1997, %v1989
    %v2574 = vpack.c.b16 %v2006, %v1998
    %v2575 = vpack.c.b16 %v2007, %v1999
    %v2576 = vpack.c.b16 %v2008, %v2000
    %v2577 = vpack.c.b16 %v2009, %v2001
    %v2578 = vpack.c.b16 %v2010, %v2002
    %v2579 = vpack.c.b16 %v2011, %v2003
    %v2580 = vpack.c.b16 %v2012, %v2004
    %v2581 = vpack.c.b16 %v2013, %v2005
    %v2582 = vpack.c.b16 %v2022, %v2014
    %v2583 = vpack.c.b16 %v2023, %v2015
    %v2584 = vpack.c.b16 %v2024, %v2016
    %v2585 = vpack.c.b16 %v2025, %v2017
    %v2586 = vpack.c.b16 %v2026, %v2018
    %v2587 = vpack.c.b16 %v2027, %v2019
    %v2588 = vpack.c.b16 %v2028, %v2020
    %v2589 = vpack.c.b16 %v2029, %v2021
    %v2590 = vpack.c.b16 %v2038, %v2030
    %v2591 = vpack.c.b16 %v2039, %v2031
    %v2592 = vpack.c.b16 %v2040, %v2032
    %v2593 = vpack.c.b16 %v2041, %v2033
    %v2594 = vpack.c.b16 %v2042, %v2034
    %v2595 = vpack.c.b16 %v2043, %v2035
    %v2596 = vpack.c.b16 %v2044, %v2036
    %v2597 = vpack.c.b16 %v2045, %v2037
    %v2598 = vpack.c.b16 %v2054, %v2046
    %v2599 = vpack.c.b16 %v2055, %v2047
    %v2600 = vpack.c.b16 %v2056, %v2048
    %v2601 = vpack.c.b16 %v2057, %v2049
    %v2602 = vpack.c.b16 %v2058, %v2050
    %v2603 = vpack.c.b16 %v2059, %v2051
    %v2604 = vpack.c.b16 %v2060, %v2052
    %v2605 = vpack.c.b16 %v2061, %v2053
    %v2606 = vpack.c.b16 %v2070, %v2062
    %v2607 = vpack.c.b16 %v2071, %v2063
    %v2608 = vpack.c.b16 %v2072, %v2064
    %v2609 = vpack.c.b16 %v2073, %v2065
    %v2610 = vpack.c.b16 %v2074, %v2066
    %v2611 = vpack.c.b16 %v2075, %v2067
    %v2612 = vpack.c.b16 %v2076, %v2068
    %v2613 = vpack.c.b16 %v2077, %v2069
    %v2614 = vpack.c.b16 %v2086, %v2078
    %v2615 = vpack.c.b16 %v2087, %v2079
    %v2616 = vpack.c.b16 %v2088, %v2080
    %v2617 = vpack.c.b16 %v2089, %v2081
    %v2618 = vpack.c.b16 %v2090, %v2082
    %v2619 = vpack.c.b16 %v2091, %v2083
    %v2620 = vpack.c.b16 %v2092, %v2084
    %v2621 = vpack.c.b16 %v2093, %v2085
    %v2622 = vpack.c.b16 %v2102, %v2094
    %v2623 = vpack.c.b16 %v2103, %v2095
    %v2624 = vpack.c.b16 %v2104, %v2096
    %v2625 = vpack.c.b16 %v2105, %v2097
    %v2626 = vpack.c.b16 %v2106, %v2098
    %v2627 = vpack.c.b16 %v2107, %v2099
    %v2628 = vpack.c.b16 %v2108, %v2100
    %v2629 = vpack.c.b16 %v2109, %v2101
    %v2630 = vpack.c.b16 %v2118, %v2110
    %v2631 = vpack.c.b16 %v2119, %v2111
    %v2632 = vpack.c.b16 %v2120, %v2112
    %v2633 = vpack.c.b16 %v2121, %v2113
    %v2634 = vpack.c.b16 %v2122, %v2114
    %v2635 = vpack.c.b16 %v2123, %v2115
    %v2636 = vpack.c.b16 %v2124, %v2116
    %v2637 = vpack.c.b16 %v2125, %v2117
    %3150 = vmatpush.bf16.msra.mxu0 %v2182
    %3151 = vmatpush.bf16.msra.mxu0 %v2174
    %3152 = vmatpush.bf16.msra.mxu0 %v2166
    %3153 = vmatpush.bf16.msra.mxu0 %v2158
    %3154 = vmatpush.bf16.msra.mxu0 %v2150
    %3155 = vmatpush.bf16.msra.mxu0 %v2142
    %3156 = vmatpush.bf16.msra.mxu0 %v2134
    %3157 = vmatpush.bf16.msra.mxu0 %v2126
    %3158 = vmatmul.bf16.gmra.mxu0 %v52
    %v3159 = vpop.f32.mrf.mxu0
    %v3160 = vadd.f32 %v574, %v3159
    %v3161 = vpop.f32.mrf.mxu0
    %3162 = vdwg.mxu0
    %3163 = vmatpush.bf16.msra.mxu0 %v2246
    %3164 = vmatpush.bf16.msra.mxu0 %v2238
    %3165 = vmatpush.bf16.msra.mxu0 %v2230
    %3166 = vmatpush.bf16.msra.mxu0 %v2222
    %3167 = vmatpush.bf16.msra.mxu0 %v2214
    %3168 = vmatpush.bf16.msra.mxu0 %v2206
    %3169 = vmatpush.bf16.msra.mxu0 %v2198
    %3170 = vmatpush.bf16.msra.mxu0 %v2190
    %3171 = vmatmul.bf16.gmra.mxu0 %v53
    %v3172 = vpop.f32.mrf.mxu0
    %v3173 = vadd.f32 %v3160, %v3172
    %v3174 = vpop.f32.mrf.mxu0
    %3175 = vdwg.mxu0
    %3176 = vmatpush.bf16.msra.mxu0 %v2310
    %3177 = vmatpush.bf16.msra.mxu0 %v2302
    %3178 = vmatpush.bf16.msra.mxu0 %v2294
    %3179 = vmatpush.bf16.msra.mxu0 %v2286
    %3180 = vmatpush.bf16.msra.mxu0 %v2278
    %3181 = vmatpush.bf16.msra.mxu0 %v2270
    %3182 = vmatpush.bf16.msra.mxu0 %v2262
    %3183 = vmatpush.bf16.msra.mxu0 %v2254
    %3184 = vmatmul.bf16.gmra.mxu0 %v54
    %v3185 = vpop.f32.mrf.mxu0
    %v3186 = vadd.f32 %v3173, %v3185
    %v3187 = vpop.f32.mrf.mxu0
    %3188 = vdwg.mxu0
    %3189 = vmatpush.bf16.msra.mxu0 %v2374
    %3190 = vmatpush.bf16.msra.mxu0 %v2366
    %3191 = vmatpush.bf16.msra.mxu0 %v2358
    %3192 = vmatpush.bf16.msra.mxu0 %v2350
    %3193 = vmatpush.bf16.msra.mxu0 %v2342
    %3194 = vmatpush.bf16.msra.mxu0 %v2334
    %3195 = vmatpush.bf16.msra.mxu0 %v2326
    %3196 = vmatpush.bf16.msra.mxu0 %v2318
    %3197 = vmatmul.bf16.gmra.mxu0 %v55
    %v3198 = vpop.f32.mrf.mxu0
    %v3199 = vadd.f32 %v3186, %v3198
    %v3200 = vpop.f32.mrf.mxu0
    %3201 = vdwg.mxu0
    %3202 = vmatpush.bf16.msra.mxu0 %v2438
    %3203 = vmatpush.bf16.msra.mxu0 %v2430
    %3204 = vmatpush.bf16.msra.mxu0 %v2422
    %3205 = vmatpush.bf16.msra.mxu0 %v2414
    %3206 = vmatpush.bf16.msra.mxu0 %v2406
    %3207 = vmatpush.bf16.msra.mxu0 %v2398
    %3208 = vmatpush.bf16.msra.mxu0 %v2390
    %3209 = vmatpush.bf16.msra.mxu0 %v2382
    %3210 = vmatmul.bf16.gmra.mxu0 %v56
    %v3211 = vpop.f32.mrf.mxu0
    %v3212 = vadd.f32 %v3199, %v3211
    %v3213 = vpop.f32.mrf.mxu0
    %3214 = vdwg.mxu0
    %3215 = vmatpush.bf16.msra.mxu0 %v2502
    %3216 = vmatpush.bf16.msra.mxu0 %v2494
    %3217 = vmatpush.bf16.msra.mxu0 %v2486
    %3218 = vmatpush.bf16.msra.mxu0 %v2478
    %3219 = vmatpush.bf16.msra.mxu0 %v2470
    %3220 = vmatpush.bf16.msra.mxu0 %v2462
    %3221 = vmatpush.bf16.msra.mxu0 %v2454
    %3222 = vmatpush.bf16.msra.mxu0 %v2446
    %3223 = vmatmul.bf16.gmra.mxu0 %v57
    %v3224 = vpop.f32.mrf.mxu0
    %v3225 = vadd.f32 %v3212, %v3224
    %v3226 = vpop.f32.mrf.mxu0
    %3227 = vdwg.mxu0
    %3228 = vmatpush.bf16.msra.mxu0 %v2566
    %3229 = vmatpush.bf16.msra.mxu0 %v2558
    %3230 = vmatpush.bf16.msra.mxu0 %v2550
    %3231 = vmatpush.bf16.msra.mxu0 %v2542
    %3232 = vmatpush.bf16.msra.mxu0 %v2534
    %3233 = vmatpush.bf16.msra.mxu0 %v2526
    %3234 = vmatpush.bf16.msra.mxu0 %v2518
    %3235 = vmatpush.bf16.msra.mxu0 %v2510
    %3236 = vmatmul.bf16.gmra.mxu0 %v58
    %v3237 = vpop.f32.mrf.mxu0
    %v3238 = vadd.f32 %v3225, %v3237
    %v3239 = vpop.f32.mrf.mxu0
    %3240 = vdwg.mxu0
    %3241 = vmatpush.bf16.msra.mxu0 %v2630
    %3242 = vmatpush.bf16.msra.mxu0 %v2622
    %3243 = vmatpush.bf16.msra.mxu0 %v2614
    %3244 = vmatpush.bf16.msra.mxu0 %v2606
    %3245 = vmatpush.bf16.msra.mxu0 %v2598
    %3246 = vmatpush.bf16.msra.mxu0 %v2590
    %3247 = vmatpush.bf16.msra.mxu0 %v2582
    %3248 = vmatpush.bf16.msra.mxu0 %v2574
    %3249 = vmatmul.bf16.gmra.mxu0 %v59
    %v3250 = vpop.f32.mrf.mxu0
    %v3251 = vadd.f32 %v3238, %v3250
    %v3252 = vpop.f32.mrf.mxu0
    %3253 = vdwg.mxu0
    %3254 = vmatpush.bf16.msra.mxu0 %v2183
    %3255 = vmatpush.bf16.msra.mxu0 %v2175
    %3256 = vmatpush.bf16.msra.mxu0 %v2167
    %3257 = vmatpush.bf16.msra.mxu0 %v2159
    %3258 = vmatpush.bf16.msra.mxu0 %v2151
    %3259 = vmatpush.bf16.msra.mxu0 %v2143
    %3260 = vmatpush.bf16.msra.mxu0 %v2135
    %3261 = vmatpush.bf16.msra.mxu0 %v2127
    %3262 = vmatmul.bf16.gmra.mxu0 %v52
    %v3263 = vpop.f32.mrf.mxu0
    %v3264 = vadd.f32 %v575, %v3263
    %v3265 = vpop.f32.mrf.mxu0
    %3266 = vdwg.mxu0
    %3267 = vmatpush.bf16.msra.mxu0 %v2247
    %3268 = vmatpush.bf16.msra.mxu0 %v2239
    %3269 = vmatpush.bf16.msra.mxu0 %v2231
    %3270 = vmatpush.bf16.msra.mxu0 %v2223
    %3271 = vmatpush.bf16.msra.mxu0 %v2215
    %3272 = vmatpush.bf16.msra.mxu0 %v2207
    %3273 = vmatpush.bf16.msra.mxu0 %v2199
    %3274 = vmatpush.bf16.msra.mxu0 %v2191
    %3275 = vmatmul.bf16.gmra.mxu0 %v53
    %v3276 = vpop.f32.mrf.mxu0
    %v3277 = vadd.f32 %v3264, %v3276
    %v3278 = vpop.f32.mrf.mxu0
    %3279 = vdwg.mxu0
    %3280 = vmatpush.bf16.msra.mxu0 %v2311
    %3281 = vmatpush.bf16.msra.mxu0 %v2303
    %3282 = vmatpush.bf16.msra.mxu0 %v2295
    %3283 = vmatpush.bf16.msra.mxu0 %v2287
    %3284 = vmatpush.bf16.msra.mxu0 %v2279
    %3285 = vmatpush.bf16.msra.mxu0 %v2271
    %3286 = vmatpush.bf16.msra.mxu0 %v2263
    %3287 = vmatpush.bf16.msra.mxu0 %v2255
    %3288 = vmatmul.bf16.gmra.mxu0 %v54
    %v3289 = vpop.f32.mrf.mxu0
    %v3290 = vadd.f32 %v3277, %v3289
    %v3291 = vpop.f32.mrf.mxu0
    %3292 = vdwg.mxu0
    %3293 = vmatpush.bf16.msra.mxu0 %v2375
    %3294 = vmatpush.bf16.msra.mxu0 %v2367
    %3295 = vmatpush.bf16.msra.mxu0 %v2359
    %3296 = vmatpush.bf16.msra.mxu0 %v2351
    %3297 = vmatpush.bf16.msra.mxu0 %v2343
    %3298 = vmatpush.bf16.msra.mxu0 %v2335
    %3299 = vmatpush.bf16.msra.mxu0 %v2327
    %3300 = vmatpush.bf16.msra.mxu0 %v2319
    %3301 = vmatmul.bf16.gmra.mxu0 %v55
    %v3302 = vpop.f32.mrf.mxu0
    %v3303 = vadd.f32 %v3290, %v3302
    %v3304 = vpop.f32.mrf.mxu0
    %3305 = vdwg.mxu0
    %3306 = vmatpush.bf16.msra.mxu0 %v2439
    %3307 = vmatpush.bf16.msra.mxu0 %v2431
    %3308 = vmatpush.bf16.msra.mxu0 %v2423
    %3309 = vmatpush.bf16.msra.mxu0 %v2415
    %3310 = vmatpush.bf16.msra.mxu0 %v2407
    %3311 = vmatpush.bf16.msra.mxu0 %v2399
    %3312 = vmatpush.bf16.msra.mxu0 %v2391
    %3313 = vmatpush.bf16.msra.mxu0 %v2383
    %3314 = vmatmul.bf16.gmra.mxu0 %v56
    %v3315 = vpop.f32.mrf.mxu0
    %v3316 = vadd.f32 %v3303, %v3315
    %v3317 = vpop.f32.mrf.mxu0
    %3318 = vdwg.mxu0
    %3319 = vmatpush.bf16.msra.mxu0 %v2503
    %3320 = vmatpush.bf16.msra.mxu0 %v2495
    %3321 = vmatpush.bf16.msra.mxu0 %v2487
    %3322 = vmatpush.bf16.msra.mxu0 %v2479
    %3323 = vmatpush.bf16.msra.mxu0 %v2471
    %3324 = vmatpush.bf16.msra.mxu0 %v2463
    %3325 = vmatpush.bf16.msra.mxu0 %v2455
    %3326 = vmatpush.bf16.msra.mxu0 %v2447
    %3327 = vmatmul.bf16.gmra.mxu0 %v57
    %v3328 = vpop.f32.mrf.mxu0
    %v3329 = vadd.f32 %v3316, %v3328
    %v3330 = vpop.f32.mrf.mxu0
    %3331 = vdwg.mxu0
    %3332 = vmatpush.bf16.msra.mxu0 %v2567
    %3333 = vmatpush.bf16.msra.mxu0 %v2559
    %3334 = vmatpush.bf16.msra.mxu0 %v2551
    %3335 = vmatpush.bf16.msra.mxu0 %v2543
    %3336 = vmatpush.bf16.msra.mxu0 %v2535
    %3337 = vmatpush.bf16.msra.mxu0 %v2527
    %3338 = vmatpush.bf16.msra.mxu0 %v2519
    %3339 = vmatpush.bf16.msra.mxu0 %v2511
    %3340 = vmatmul.bf16.gmra.mxu0 %v58
    %v3341 = vpop.f32.mrf.mxu0
    %v3342 = vadd.f32 %v3329, %v3341
    %v3343 = vpop.f32.mrf.mxu0
    %3344 = vdwg.mxu0
    %3345 = vmatpush.bf16.msra.mxu0 %v2631
    %3346 = vmatpush.bf16.msra.mxu0 %v2623
    %3347 = vmatpush.bf16.msra.mxu0 %v2615
    %3348 = vmatpush.bf16.msra.mxu0 %v2607
    %3349 = vmatpush.bf16.msra.mxu0 %v2599
    %3350 = vmatpush.bf16.msra.mxu0 %v2591
    %3351 = vmatpush.bf16.msra.mxu0 %v2583
    %3352 = vmatpush.bf16.msra.mxu0 %v2575
    %3353 = vmatmul.bf16.gmra.mxu0 %v59
    %v3354 = vpop.f32.mrf.mxu0
    %v3355 = vadd.f32 %v3342, %v3354
    %v3356 = vpop.f32.mrf.mxu0
    %3357 = vdwg.mxu0
    %3358 = vmatpush.bf16.msra.mxu0 %v2184
    %3359 = vmatpush.bf16.msra.mxu0 %v2176
    %3360 = vmatpush.bf16.msra.mxu0 %v2168
    %3361 = vmatpush.bf16.msra.mxu0 %v2160
    %3362 = vmatpush.bf16.msra.mxu0 %v2152
    %3363 = vmatpush.bf16.msra.mxu0 %v2144
    %3364 = vmatpush.bf16.msra.mxu0 %v2136
    %3365 = vmatpush.bf16.msra.mxu0 %v2128
    %3366 = vmatmul.bf16.gmra.mxu0 %v52
    %v3367 = vpop.f32.mrf.mxu0
    %v3368 = vadd.f32 %v576, %v3367
    %v3369 = vpop.f32.mrf.mxu0
    %3370 = vdwg.mxu0
    %3371 = vmatpush.bf16.msra.mxu0 %v2248
    %3372 = vmatpush.bf16.msra.mxu0 %v2240
    %3373 = vmatpush.bf16.msra.mxu0 %v2232
    %3374 = vmatpush.bf16.msra.mxu0 %v2224
    %3375 = vmatpush.bf16.msra.mxu0 %v2216
    %3376 = vmatpush.bf16.msra.mxu0 %v2208
    %3377 = vmatpush.bf16.msra.mxu0 %v2200
    %3378 = vmatpush.bf16.msra.mxu0 %v2192
    %3379 = vmatmul.bf16.gmra.mxu0 %v53
    %v3380 = vpop.f32.mrf.mxu0
    %v3381 = vadd.f32 %v3368, %v3380
    %v3382 = vpop.f32.mrf.mxu0
    %3383 = vdwg.mxu0
    %3384 = vmatpush.bf16.msra.mxu0 %v2312
    %3385 = vmatpush.bf16.msra.mxu0 %v2304
    %3386 = vmatpush.bf16.msra.mxu0 %v2296
    %3387 = vmatpush.bf16.msra.mxu0 %v2288
    %3388 = vmatpush.bf16.msra.mxu0 %v2280
    %3389 = vmatpush.bf16.msra.mxu0 %v2272
    %3390 = vmatpush.bf16.msra.mxu0 %v2264
    %3391 = vmatpush.bf16.msra.mxu0 %v2256
    %3392 = vmatmul.bf16.gmra.mxu0 %v54
    %v3393 = vpop.f32.mrf.mxu0
    %v3394 = vadd.f32 %v3381, %v3393
    %v3395 = vpop.f32.mrf.mxu0
    %3396 = vdwg.mxu0
    %3397 = vmatpush.bf16.msra.mxu0 %v2376
    %3398 = vmatpush.bf16.msra.mxu0 %v2368
    %3399 = vmatpush.bf16.msra.mxu0 %v2360
    %3400 = vmatpush.bf16.msra.mxu0 %v2352
    %3401 = vmatpush.bf16.msra.mxu0 %v2344
    %3402 = vmatpush.bf16.msra.mxu0 %v2336
    %3403 = vmatpush.bf16.msra.mxu0 %v2328
    %3404 = vmatpush.bf16.msra.mxu0 %v2320
    %3405 = vmatmul.bf16.gmra.mxu0 %v55
    %v3406 = vpop.f32.mrf.mxu0
    %v3407 = vadd.f32 %v3394, %v3406
    %v3408 = vpop.f32.mrf.mxu0
    %3409 = vdwg.mxu0
    %3410 = vmatpush.bf16.msra.mxu0 %v2440
    %3411 = vmatpush.bf16.msra.mxu0 %v2432
    %3412 = vmatpush.bf16.msra.mxu0 %v2424
    %3413 = vmatpush.bf16.msra.mxu0 %v2416
    %3414 = vmatpush.bf16.msra.mxu0 %v2408
    %3415 = vmatpush.bf16.msra.mxu0 %v2400
    %3416 = vmatpush.bf16.msra.mxu0 %v2392
    %3417 = vmatpush.bf16.msra.mxu0 %v2384
    %3418 = vmatmul.bf16.gmra.mxu0 %v56
    %v3419 = vpop.f32.mrf.mxu0
    %v3420 = vadd.f32 %v3407, %v3419
    %v3421 = vpop.f32.mrf.mxu0
    %3422 = vdwg.mxu0
    %3423 = vmatpush.bf16.msra.mxu0 %v2504
    %3424 = vmatpush.bf16.msra.mxu0 %v2496
    %3425 = vmatpush.bf16.msra.mxu0 %v2488
    %3426 = vmatpush.bf16.msra.mxu0 %v2480
    %3427 = vmatpush.bf16.msra.mxu0 %v2472
    %3428 = vmatpush.bf16.msra.mxu0 %v2464
    %3429 = vmatpush.bf16.msra.mxu0 %v2456
    %3430 = vmatpush.bf16.msra.mxu0 %v2448
    %3431 = vmatmul.bf16.gmra.mxu0 %v57
    %v3432 = vpop.f32.mrf.mxu0
    %v3433 = vadd.f32 %v3420, %v3432
    %v3434 = vpop.f32.mrf.mxu0
    %3435 = vdwg.mxu0
    %3436 = vmatpush.bf16.msra.mxu0 %v2568
    %3437 = vmatpush.bf16.msra.mxu0 %v2560
    %3438 = vmatpush.bf16.msra.mxu0 %v2552
    %3439 = vmatpush.bf16.msra.mxu0 %v2544
    %3440 = vmatpush.bf16.msra.mxu0 %v2536
    %3441 = vmatpush.bf16.msra.mxu0 %v2528
    %3442 = vmatpush.bf16.msra.mxu0 %v2520
    %3443 = vmatpush.bf16.msra.mxu0 %v2512
    %3444 = vmatmul.bf16.gmra.mxu0 %v58
    %v3445 = vpop.f32.mrf.mxu0
    %v3446 = vadd.f32 %v3433, %v3445
    %v3447 = vpop.f32.mrf.mxu0
    %3448 = vdwg.mxu0
    %3449 = vmatpush.bf16.msra.mxu0 %v2632
    %3450 = vmatpush.bf16.msra.mxu0 %v2624
    %3451 = vmatpush.bf16.msra.mxu0 %v2616
    %3452 = vmatpush.bf16.msra.mxu0 %v2608
    %3453 = vmatpush.bf16.msra.mxu0 %v2600
    %3454 = vmatpush.bf16.msra.mxu0 %v2592
    %3455 = vmatpush.bf16.msra.mxu0 %v2584
    %3456 = vmatpush.bf16.msra.mxu0 %v2576
    %3457 = vmatmul.bf16.gmra.mxu0 %v59
    %v3458 = vpop.f32.mrf.mxu0
    %v3459 = vadd.f32 %v3446, %v3458
    %v3460 = vpop.f32.mrf.mxu0
    %3461 = vdwg.mxu0
    %3462 = vmatpush.bf16.msra.mxu0 %v2185
    %3463 = vmatpush.bf16.msra.mxu0 %v2177
    %3464 = vmatpush.bf16.msra.mxu0 %v2169
    %3465 = vmatpush.bf16.msra.mxu0 %v2161
    %3466 = vmatpush.bf16.msra.mxu0 %v2153
    %3467 = vmatpush.bf16.msra.mxu0 %v2145
    %3468 = vmatpush.bf16.msra.mxu0 %v2137
    %3469 = vmatpush.bf16.msra.mxu0 %v2129
    %3470 = vmatmul.bf16.gmra.mxu0 %v52
    %v3471 = vpop.f32.mrf.mxu0
    %v3472 = vadd.f32 %v577, %v3471
    %v3473 = vpop.f32.mrf.mxu0
    %3474 = vdwg.mxu0
    %3475 = vmatpush.bf16.msra.mxu0 %v2249
    %3476 = vmatpush.bf16.msra.mxu0 %v2241
    %3477 = vmatpush.bf16.msra.mxu0 %v2233
    %3478 = vmatpush.bf16.msra.mxu0 %v2225
    %3479 = vmatpush.bf16.msra.mxu0 %v2217
    %3480 = vmatpush.bf16.msra.mxu0 %v2209
    %3481 = vmatpush.bf16.msra.mxu0 %v2201
    %3482 = vmatpush.bf16.msra.mxu0 %v2193
    %3483 = vmatmul.bf16.gmra.mxu0 %v53
    %v3484 = vpop.f32.mrf.mxu0
    %v3485 = vadd.f32 %v3472, %v3484
    %v3486 = vpop.f32.mrf.mxu0
    %3487 = vdwg.mxu0
    %3488 = vmatpush.bf16.msra.mxu0 %v2313
    %3489 = vmatpush.bf16.msra.mxu0 %v2305
    %3490 = vmatpush.bf16.msra.mxu0 %v2297
    %3491 = vmatpush.bf16.msra.mxu0 %v2289
    %3492 = vmatpush.bf16.msra.mxu0 %v2281
    %3493 = vmatpush.bf16.msra.mxu0 %v2273
    %3494 = vmatpush.bf16.msra.mxu0 %v2265
    %3495 = vmatpush.bf16.msra.mxu0 %v2257
    %3496 = vmatmul.bf16.gmra.mxu0 %v54
    %v3497 = vpop.f32.mrf.mxu0
    %v3498 = vadd.f32 %v3485, %v3497
    %v3499 = vpop.f32.mrf.mxu0
    %3500 = vdwg.mxu0
    %3501 = vmatpush.bf16.msra.mxu0 %v2377
    %3502 = vmatpush.bf16.msra.mxu0 %v2369
    %3503 = vmatpush.bf16.msra.mxu0 %v2361
    %3504 = vmatpush.bf16.msra.mxu0 %v2353
    %3505 = vmatpush.bf16.msra.mxu0 %v2345
    %3506 = vmatpush.bf16.msra.mxu0 %v2337
    %3507 = vmatpush.bf16.msra.mxu0 %v2329
    %3508 = vmatpush.bf16.msra.mxu0 %v2321
    %3509 = vmatmul.bf16.gmra.mxu0 %v55
    %v3510 = vpop.f32.mrf.mxu0
    %v3511 = vadd.f32 %v3498, %v3510
    %v3512 = vpop.f32.mrf.mxu0
    %3513 = vdwg.mxu0
    %3514 = vmatpush.bf16.msra.mxu0 %v2441
    %3515 = vmatpush.bf16.msra.mxu0 %v2433
    %3516 = vmatpush.bf16.msra.mxu0 %v2425
    %3517 = vmatpush.bf16.msra.mxu0 %v2417
    %3518 = vmatpush.bf16.msra.mxu0 %v2409
    %3519 = vmatpush.bf16.msra.mxu0 %v2401
    %3520 = vmatpush.bf16.msra.mxu0 %v2393
    %3521 = vmatpush.bf16.msra.mxu0 %v2385
    %3522 = vmatmul.bf16.gmra.mxu0 %v56
    %v3523 = vpop.f32.mrf.mxu0
    %v3524 = vadd.f32 %v3511, %v3523
    %v3525 = vpop.f32.mrf.mxu0
    %3526 = vdwg.mxu0
    %3527 = vmatpush.bf16.msra.mxu0 %v2505
    %3528 = vmatpush.bf16.msra.mxu0 %v2497
    %3529 = vmatpush.bf16.msra.mxu0 %v2489
    %3530 = vmatpush.bf16.msra.mxu0 %v2481
    %3531 = vmatpush.bf16.msra.mxu0 %v2473
    %3532 = vmatpush.bf16.msra.mxu0 %v2465
    %3533 = vmatpush.bf16.msra.mxu0 %v2457
    %3534 = vmatpush.bf16.msra.mxu0 %v2449
    %3535 = vmatmul.bf16.gmra.mxu0 %v57
    %v3536 = vpop.f32.mrf.mxu0
    %v3537 = vadd.f32 %v3524, %v3536
    %v3538 = vpop.f32.mrf.mxu0
    %3539 = vdwg.mxu0
    %3540 = vmatpush.bf16.msra.mxu0 %v2569
    %3541 = vmatpush.bf16.msra.mxu0 %v2561
    %3542 = vmatpush.bf16.msra.mxu0 %v2553
    %3543 = vmatpush.bf16.msra.mxu0 %v2545
    %3544 = vmatpush.bf16.msra.mxu0 %v2537
    %3545 = vmatpush.bf16.msra.mxu0 %v2529
    %3546 = vmatpush.bf16.msra.mxu0 %v2521
    %3547 = vmatpush.bf16.msra.mxu0 %v2513
    %3548 = vmatmul.bf16.gmra.mxu0 %v58
    %v3549 = vpop.f32.mrf.mxu0
    %v3550 = vadd.f32 %v3537, %v3549
    %v3551 = vpop.f32.mrf.mxu0
    %3552 = vdwg.mxu0
    %3553 = vmatpush.bf16.msra.mxu0 %v2633
    %3554 = vmatpush.bf16.msra.mxu0 %v2625
    %3555 = vmatpush.bf16.msra.mxu0 %v2617
    %3556 = vmatpush.bf16.msra.mxu0 %v2609
    %3557 = vmatpush.bf16.msra.mxu0 %v2601
    %3558 = vmatpush.bf16.msra.mxu0 %v2593
    %3559 = vmatpush.bf16.msra.mxu0 %v2585
    %3560 = vmatpush.bf16.msra.mxu0 %v2577
    %3561 = vmatmul.bf16.gmra.mxu0 %v59
    %v3562 = vpop.f32.mrf.mxu0
    %v3563 = vadd.f32 %v3550, %v3562
    %v3564 = vpop.f32.mrf.mxu0
    %3565 = vdwg.mxu0
    %3566 = vmatpush.bf16.msra.mxu0 %v2186
    %3567 = vmatpush.bf16.msra.mxu0 %v2178
    %3568 = vmatpush.bf16.msra.mxu0 %v2170
    %3569 = vmatpush.bf16.msra.mxu0 %v2162
    %3570 = vmatpush.bf16.msra.mxu0 %v2154
    %3571 = vmatpush.bf16.msra.mxu0 %v2146
    %3572 = vmatpush.bf16.msra.mxu0 %v2138
    %3573 = vmatpush.bf16.msra.mxu0 %v2130
    %3574 = vmatmul.bf16.gmra.mxu0 %v52
    %v3575 = vpop.f32.mrf.mxu0
    %v3576 = vadd.f32 %v578, %v3575
    %v3577 = vpop.f32.mrf.mxu0
    %3578 = vdwg.mxu0
    %3579 = vmatpush.bf16.msra.mxu0 %v2250
    %3580 = vmatpush.bf16.msra.mxu0 %v2242
    %3581 = vmatpush.bf16.msra.mxu0 %v2234
    %3582 = vmatpush.bf16.msra.mxu0 %v2226
    %3583 = vmatpush.bf16.msra.mxu0 %v2218
    %3584 = vmatpush.bf16.msra.mxu0 %v2210
    %3585 = vmatpush.bf16.msra.mxu0 %v2202
    %3586 = vmatpush.bf16.msra.mxu0 %v2194
    %3587 = vmatmul.bf16.gmra.mxu0 %v53
    %v3588 = vpop.f32.mrf.mxu0
    %v3589 = vadd.f32 %v3576, %v3588
    %v3590 = vpop.f32.mrf.mxu0
    %3591 = vdwg.mxu0
    %3592 = vmatpush.bf16.msra.mxu0 %v2314
    %3593 = vmatpush.bf16.msra.mxu0 %v2306
    %3594 = vmatpush.bf16.msra.mxu0 %v2298
    %3595 = vmatpush.bf16.msra.mxu0 %v2290
    %3596 = vmatpush.bf16.msra.mxu0 %v2282
    %3597 = vmatpush.bf16.msra.mxu0 %v2274
    %3598 = vmatpush.bf16.msra.mxu0 %v2266
    %3599 = vmatpush.bf16.msra.mxu0 %v2258
    %3600 = vmatmul.bf16.gmra.mxu0 %v54
    %v3601 = vpop.f32.mrf.mxu0
    %v3602 = vadd.f32 %v3589, %v3601
    %v3603 = vpop.f32.mrf.mxu0
    %3604 = vdwg.mxu0
    %3605 = vmatpush.bf16.msra.mxu0 %v2378
    %3606 = vmatpush.bf16.msra.mxu0 %v2370
    %3607 = vmatpush.bf16.msra.mxu0 %v2362
    %3608 = vmatpush.bf16.msra.mxu0 %v2354
    %3609 = vmatpush.bf16.msra.mxu0 %v2346
    %3610 = vmatpush.bf16.msra.mxu0 %v2338
    %3611 = vmatpush.bf16.msra.mxu0 %v2330
    %3612 = vmatpush.bf16.msra.mxu0 %v2322
    %3613 = vmatmul.bf16.gmra.mxu0 %v55
    %v3614 = vpop.f32.mrf.mxu0
    %v3615 = vadd.f32 %v3602, %v3614
    %v3616 = vpop.f32.mrf.mxu0
    %3617 = vdwg.mxu0
    %3618 = vmatpush.bf16.msra.mxu0 %v2442
    %3619 = vmatpush.bf16.msra.mxu0 %v2434
    %3620 = vmatpush.bf16.msra.mxu0 %v2426
    %3621 = vmatpush.bf16.msra.mxu0 %v2418
    %3622 = vmatpush.bf16.msra.mxu0 %v2410
    %3623 = vmatpush.bf16.msra.mxu0 %v2402
    %3624 = vmatpush.bf16.msra.mxu0 %v2394
    %3625 = vmatpush.bf16.msra.mxu0 %v2386
    %3626 = vmatmul.bf16.gmra.mxu0 %v56
    %v3627 = vpop.f32.mrf.mxu0
    %v3628 = vadd.f32 %v3615, %v3627
    %v3629 = vpop.f32.mrf.mxu0
    %3630 = vdwg.mxu0
    %3631 = vmatpush.bf16.msra.mxu0 %v2506
    %3632 = vmatpush.bf16.msra.mxu0 %v2498
    %3633 = vmatpush.bf16.msra.mxu0 %v2490
    %3634 = vmatpush.bf16.msra.mxu0 %v2482
    %3635 = vmatpush.bf16.msra.mxu0 %v2474
    %3636 = vmatpush.bf16.msra.mxu0 %v2466
    %3637 = vmatpush.bf16.msra.mxu0 %v2458
    %3638 = vmatpush.bf16.msra.mxu0 %v2450
    %3639 = vmatmul.bf16.gmra.mxu0 %v57
    %v3640 = vpop.f32.mrf.mxu0
    %v3641 = vadd.f32 %v3628, %v3640
    %v3642 = vpop.f32.mrf.mxu0
    %3643 = vdwg.mxu0
    %3644 = vmatpush.bf16.msra.mxu0 %v2570
    %3645 = vmatpush.bf16.msra.mxu0 %v2562
    %3646 = vmatpush.bf16.msra.mxu0 %v2554
    %3647 = vmatpush.bf16.msra.mxu0 %v2546
    %3648 = vmatpush.bf16.msra.mxu0 %v2538
    %3649 = vmatpush.bf16.msra.mxu0 %v2530
    %3650 = vmatpush.bf16.msra.mxu0 %v2522
    %3651 = vmatpush.bf16.msra.mxu0 %v2514
    %3652 = vmatmul.bf16.gmra.mxu0 %v58
    %v3653 = vpop.f32.mrf.mxu0
    %v3654 = vadd.f32 %v3641, %v3653
    %v3655 = vpop.f32.mrf.mxu0
    %3656 = vdwg.mxu0
    %3657 = vmatpush.bf16.msra.mxu0 %v2634
    %3658 = vmatpush.bf16.msra.mxu0 %v2626
    %3659 = vmatpush.bf16.msra.mxu0 %v2618
    %3660 = vmatpush.bf16.msra.mxu0 %v2610
    %3661 = vmatpush.bf16.msra.mxu0 %v2602
    %3662 = vmatpush.bf16.msra.mxu0 %v2594
    %3663 = vmatpush.bf16.msra.mxu0 %v2586
    %3664 = vmatpush.bf16.msra.mxu0 %v2578
    %3665 = vmatmul.bf16.gmra.mxu0 %v59
    %v3666 = vpop.f32.mrf.mxu0
    %v3667 = vadd.f32 %v3654, %v3666
    %v3668 = vpop.f32.mrf.mxu0
    %3669 = vdwg.mxu0
    %3670 = vmatpush.bf16.msra.mxu0 %v2187
    %3671 = vmatpush.bf16.msra.mxu0 %v2179
    %3672 = vmatpush.bf16.msra.mxu0 %v2171
    %3673 = vmatpush.bf16.msra.mxu0 %v2163
    %3674 = vmatpush.bf16.msra.mxu0 %v2155
    %3675 = vmatpush.bf16.msra.mxu0 %v2147
    %3676 = vmatpush.bf16.msra.mxu0 %v2139
    %3677 = vmatpush.bf16.msra.mxu0 %v2131
    %3678 = vmatmul.bf16.gmra.mxu0 %v52
    %v3679 = vpop.f32.mrf.mxu0
    %v3680 = vadd.f32 %v579, %v3679
    %v3681 = vpop.f32.mrf.mxu0
    %3682 = vdwg.mxu0
    %3683 = vmatpush.bf16.msra.mxu0 %v2251
    %3684 = vmatpush.bf16.msra.mxu0 %v2243
    %3685 = vmatpush.bf16.msra.mxu0 %v2235
    %3686 = vmatpush.bf16.msra.mxu0 %v2227
    %3687 = vmatpush.bf16.msra.mxu0 %v2219
    %3688 = vmatpush.bf16.msra.mxu0 %v2211
    %3689 = vmatpush.bf16.msra.mxu0 %v2203
    %3690 = vmatpush.bf16.msra.mxu0 %v2195
    %3691 = vmatmul.bf16.gmra.mxu0 %v53
    %v3692 = vpop.f32.mrf.mxu0
    %v3693 = vadd.f32 %v3680, %v3692
    %v3694 = vpop.f32.mrf.mxu0
    %3695 = vdwg.mxu0
    %3696 = vmatpush.bf16.msra.mxu0 %v2315
    %3697 = vmatpush.bf16.msra.mxu0 %v2307
    %3698 = vmatpush.bf16.msra.mxu0 %v2299
    %3699 = vmatpush.bf16.msra.mxu0 %v2291
    %3700 = vmatpush.bf16.msra.mxu0 %v2283
    %3701 = vmatpush.bf16.msra.mxu0 %v2275
    %3702 = vmatpush.bf16.msra.mxu0 %v2267
    %3703 = vmatpush.bf16.msra.mxu0 %v2259
    %3704 = vmatmul.bf16.gmra.mxu0 %v54
    %v3705 = vpop.f32.mrf.mxu0
    %v3706 = vadd.f32 %v3693, %v3705
    %v3707 = vpop.f32.mrf.mxu0
    %3708 = vdwg.mxu0
    %3709 = vmatpush.bf16.msra.mxu0 %v2379
    %3710 = vmatpush.bf16.msra.mxu0 %v2371
    %3711 = vmatpush.bf16.msra.mxu0 %v2363
    %3712 = vmatpush.bf16.msra.mxu0 %v2355
    %3713 = vmatpush.bf16.msra.mxu0 %v2347
    %3714 = vmatpush.bf16.msra.mxu0 %v2339
    %3715 = vmatpush.bf16.msra.mxu0 %v2331
    %3716 = vmatpush.bf16.msra.mxu0 %v2323
    %3717 = vmatmul.bf16.gmra.mxu0 %v55
    %v3718 = vpop.f32.mrf.mxu0
    %v3719 = vadd.f32 %v3706, %v3718
    %v3720 = vpop.f32.mrf.mxu0
    %3721 = vdwg.mxu0
    %3722 = vmatpush.bf16.msra.mxu0 %v2443
    %3723 = vmatpush.bf16.msra.mxu0 %v2435
    %3724 = vmatpush.bf16.msra.mxu0 %v2427
    %3725 = vmatpush.bf16.msra.mxu0 %v2419
    %3726 = vmatpush.bf16.msra.mxu0 %v2411
    %3727 = vmatpush.bf16.msra.mxu0 %v2403
    %3728 = vmatpush.bf16.msra.mxu0 %v2395
    %3729 = vmatpush.bf16.msra.mxu0 %v2387
    %3730 = vmatmul.bf16.gmra.mxu0 %v56
    %v3731 = vpop.f32.mrf.mxu0
    %v3732 = vadd.f32 %v3719, %v3731
    %v3733 = vpop.f32.mrf.mxu0
    %3734 = vdwg.mxu0
    %3735 = vmatpush.bf16.msra.mxu0 %v2507
    %3736 = vmatpush.bf16.msra.mxu0 %v2499
    %3737 = vmatpush.bf16.msra.mxu0 %v2491
    %3738 = vmatpush.bf16.msra.mxu0 %v2483
    %3739 = vmatpush.bf16.msra.mxu0 %v2475
    %3740 = vmatpush.bf16.msra.mxu0 %v2467
    %3741 = vmatpush.bf16.msra.mxu0 %v2459
    %3742 = vmatpush.bf16.msra.mxu0 %v2451
    %3743 = vmatmul.bf16.gmra.mxu0 %v57
    %v3744 = vpop.f32.mrf.mxu0
    %v3745 = vadd.f32 %v3732, %v3744
    %v3746 = vpop.f32.mrf.mxu0
    %3747 = vdwg.mxu0
    %3748 = vmatpush.bf16.msra.mxu0 %v2571
    %3749 = vmatpush.bf16.msra.mxu0 %v2563
    %3750 = vmatpush.bf16.msra.mxu0 %v2555
    %3751 = vmatpush.bf16.msra.mxu0 %v2547
    %3752 = vmatpush.bf16.msra.mxu0 %v2539
    %3753 = vmatpush.bf16.msra.mxu0 %v2531
    %3754 = vmatpush.bf16.msra.mxu0 %v2523
    %3755 = vmatpush.bf16.msra.mxu0 %v2515
    %3756 = vmatmul.bf16.gmra.mxu0 %v58
    %v3757 = vpop.f32.mrf.mxu0
    %v3758 = vadd.f32 %v3745, %v3757
    %v3759 = vpop.f32.mrf.mxu0
    %3760 = vdwg.mxu0
    %3761 = vmatpush.bf16.msra.mxu0 %v2635
    %3762 = vmatpush.bf16.msra.mxu0 %v2627
    %3763 = vmatpush.bf16.msra.mxu0 %v2619
    %3764 = vmatpush.bf16.msra.mxu0 %v2611
    %3765 = vmatpush.bf16.msra.mxu0 %v2603
    %3766 = vmatpush.bf16.msra.mxu0 %v2595
    %3767 = vmatpush.bf16.msra.mxu0 %v2587
    %3768 = vmatpush.bf16.msra.mxu0 %v2579
    %3769 = vmatmul.bf16.gmra.mxu0 %v59
    %v3770 = vpop.f32.mrf.mxu0
    %v3771 = vadd.f32 %v3758, %v3770
    %v3772 = vpop.f32.mrf.mxu0
    %3773 = vdwg.mxu0
    %3774 = vmatpush.bf16.msra.mxu0 %v2188
    %3775 = vmatpush.bf16.msra.mxu0 %v2180
    %3776 = vmatpush.bf16.msra.mxu0 %v2172
    %3777 = vmatpush.bf16.msra.mxu0 %v2164
    %3778 = vmatpush.bf16.msra.mxu0 %v2156
    %3779 = vmatpush.bf16.msra.mxu0 %v2148
    %3780 = vmatpush.bf16.msra.mxu0 %v2140
    %3781 = vmatpush.bf16.msra.mxu0 %v2132
    %3782 = vmatmul.bf16.gmra.mxu0 %v52
    %v3783 = vpop.f32.mrf.mxu0
    %v3784 = vadd.f32 %v580, %v3783
    %v3785 = vpop.f32.mrf.mxu0
    %3786 = vdwg.mxu0
    %3787 = vmatpush.bf16.msra.mxu0 %v2252
    %3788 = vmatpush.bf16.msra.mxu0 %v2244
    %3789 = vmatpush.bf16.msra.mxu0 %v2236
    %3790 = vmatpush.bf16.msra.mxu0 %v2228
    %3791 = vmatpush.bf16.msra.mxu0 %v2220
    %3792 = vmatpush.bf16.msra.mxu0 %v2212
    %3793 = vmatpush.bf16.msra.mxu0 %v2204
    %3794 = vmatpush.bf16.msra.mxu0 %v2196
    %3795 = vmatmul.bf16.gmra.mxu0 %v53
    %v3796 = vpop.f32.mrf.mxu0
    %v3797 = vadd.f32 %v3784, %v3796
    %v3798 = vpop.f32.mrf.mxu0
    %3799 = vdwg.mxu0
    %3800 = vmatpush.bf16.msra.mxu0 %v2316
    %3801 = vmatpush.bf16.msra.mxu0 %v2308
    %3802 = vmatpush.bf16.msra.mxu0 %v2300
    %3803 = vmatpush.bf16.msra.mxu0 %v2292
    %3804 = vmatpush.bf16.msra.mxu0 %v2284
    %3805 = vmatpush.bf16.msra.mxu0 %v2276
    %3806 = vmatpush.bf16.msra.mxu0 %v2268
    %3807 = vmatpush.bf16.msra.mxu0 %v2260
    %3808 = vmatmul.bf16.gmra.mxu0 %v54
    %v3809 = vpop.f32.mrf.mxu0
    %v3810 = vadd.f32 %v3797, %v3809
    %v3811 = vpop.f32.mrf.mxu0
    %3812 = vdwg.mxu0
    %3813 = vmatpush.bf16.msra.mxu0 %v2380
    %3814 = vmatpush.bf16.msra.mxu0 %v2372
    %3815 = vmatpush.bf16.msra.mxu0 %v2364
    %3816 = vmatpush.bf16.msra.mxu0 %v2356
    %3817 = vmatpush.bf16.msra.mxu0 %v2348
    %3818 = vmatpush.bf16.msra.mxu0 %v2340
    %3819 = vmatpush.bf16.msra.mxu0 %v2332
    %3820 = vmatpush.bf16.msra.mxu0 %v2324
    %3821 = vmatmul.bf16.gmra.mxu0 %v55
    %v3822 = vpop.f32.mrf.mxu0
    %v3823 = vadd.f32 %v3810, %v3822
    %v3824 = vpop.f32.mrf.mxu0
    %3825 = vdwg.mxu0
    %3826 = vmatpush.bf16.msra.mxu0 %v2444
    %3827 = vmatpush.bf16.msra.mxu0 %v2436
    %3828 = vmatpush.bf16.msra.mxu0 %v2428
    %3829 = vmatpush.bf16.msra.mxu0 %v2420
    %3830 = vmatpush.bf16.msra.mxu0 %v2412
    %3831 = vmatpush.bf16.msra.mxu0 %v2404
    %3832 = vmatpush.bf16.msra.mxu0 %v2396
    %3833 = vmatpush.bf16.msra.mxu0 %v2388
    %3834 = vmatmul.bf16.gmra.mxu0 %v56
    %v3835 = vpop.f32.mrf.mxu0
    %v3836 = vadd.f32 %v3823, %v3835
    %v3837 = vpop.f32.mrf.mxu0
    %3838 = vdwg.mxu0
    %3839 = vmatpush.bf16.msra.mxu0 %v2508
    %3840 = vmatpush.bf16.msra.mxu0 %v2500
    %3841 = vmatpush.bf16.msra.mxu0 %v2492
    %3842 = vmatpush.bf16.msra.mxu0 %v2484
    %3843 = vmatpush.bf16.msra.mxu0 %v2476
    %3844 = vmatpush.bf16.msra.mxu0 %v2468
    %3845 = vmatpush.bf16.msra.mxu0 %v2460
    %3846 = vmatpush.bf16.msra.mxu0 %v2452
    %3847 = vmatmul.bf16.gmra.mxu0 %v57
    %v3848 = vpop.f32.mrf.mxu0
    %v3849 = vadd.f32 %v3836, %v3848
    %v3850 = vpop.f32.mrf.mxu0
    %3851 = vdwg.mxu0
    %3852 = vmatpush.bf16.msra.mxu0 %v2572
    %3853 = vmatpush.bf16.msra.mxu0 %v2564
    %3854 = vmatpush.bf16.msra.mxu0 %v2556
    %3855 = vmatpush.bf16.msra.mxu0 %v2548
    %3856 = vmatpush.bf16.msra.mxu0 %v2540
    %3857 = vmatpush.bf16.msra.mxu0 %v2532
    %3858 = vmatpush.bf16.msra.mxu0 %v2524
    %3859 = vmatpush.bf16.msra.mxu0 %v2516
    %3860 = vmatmul.bf16.gmra.mxu0 %v58
    %v3861 = vpop.f32.mrf.mxu0
    %v3862 = vadd.f32 %v3849, %v3861
    %v3863 = vpop.f32.mrf.mxu0
    %3864 = vdwg.mxu0
    %3865 = vmatpush.bf16.msra.mxu0 %v2636
    %3866 = vmatpush.bf16.msra.mxu0 %v2628
    %3867 = vmatpush.bf16.msra.mxu0 %v2620
    %3868 = vmatpush.bf16.msra.mxu0 %v2612
    %3869 = vmatpush.bf16.msra.mxu0 %v2604
    %3870 = vmatpush.bf16.msra.mxu0 %v2596
    %3871 = vmatpush.bf16.msra.mxu0 %v2588
    %3872 = vmatpush.bf16.msra.mxu0 %v2580
    %3873 = vmatmul.bf16.gmra.mxu0 %v59
    %v3874 = vpop.f32.mrf.mxu0
    %v3875 = vadd.f32 %v3862, %v3874
    %v3876 = vpop.f32.mrf.mxu0
    %3877 = vdwg.mxu0
    %3878 = vmatpush.bf16.msra.mxu0 %v2189
    %3879 = vmatpush.bf16.msra.mxu0 %v2181
    %3880 = vmatpush.bf16.msra.mxu0 %v2173
    %3881 = vmatpush.bf16.msra.mxu0 %v2165
    %3882 = vmatpush.bf16.msra.mxu0 %v2157
    %3883 = vmatpush.bf16.msra.mxu0 %v2149
    %3884 = vmatpush.bf16.msra.mxu0 %v2141
    %3885 = vmatpush.bf16.msra.mxu0 %v2133
    %3886 = vmatmul.bf16.gmra.mxu0 %v52
    %v3887 = vpop.f32.mrf.mxu0
    %v3888 = vadd.f32 %v581, %v3887
    %v3889 = vpop.f32.mrf.mxu0
    %3890 = vdwg.mxu0
    %3891 = vmatpush.bf16.msra.mxu0 %v2253
    %3892 = vmatpush.bf16.msra.mxu0 %v2245
    %3893 = vmatpush.bf16.msra.mxu0 %v2237
    %3894 = vmatpush.bf16.msra.mxu0 %v2229
    %3895 = vmatpush.bf16.msra.mxu0 %v2221
    %3896 = vmatpush.bf16.msra.mxu0 %v2213
    %3897 = vmatpush.bf16.msra.mxu0 %v2205
    %3898 = vmatpush.bf16.msra.mxu0 %v2197
    %3899 = vmatmul.bf16.gmra.mxu0 %v53
    %v3900 = vpop.f32.mrf.mxu0
    %v3901 = vadd.f32 %v3888, %v3900
    %v3902 = vpop.f32.mrf.mxu0
    %3903 = vdwg.mxu0
    %3904 = vmatpush.bf16.msra.mxu0 %v2317
    %3905 = vmatpush.bf16.msra.mxu0 %v2309
    %3906 = vmatpush.bf16.msra.mxu0 %v2301
    %3907 = vmatpush.bf16.msra.mxu0 %v2293
    %3908 = vmatpush.bf16.msra.mxu0 %v2285
    %3909 = vmatpush.bf16.msra.mxu0 %v2277
    %3910 = vmatpush.bf16.msra.mxu0 %v2269
    %3911 = vmatpush.bf16.msra.mxu0 %v2261
    %3912 = vmatmul.bf16.gmra.mxu0 %v54
    %v3913 = vpop.f32.mrf.mxu0
    %v3914 = vadd.f32 %v3901, %v3913
    %v3915 = vpop.f32.mrf.mxu0
    %3916 = vdwg.mxu0
    %3917 = vmatpush.bf16.msra.mxu0 %v2381
    %3918 = vmatpush.bf16.msra.mxu0 %v2373
    %3919 = vmatpush.bf16.msra.mxu0 %v2365
    %3920 = vmatpush.bf16.msra.mxu0 %v2357
    %3921 = vmatpush.bf16.msra.mxu0 %v2349
    %3922 = vmatpush.bf16.msra.mxu0 %v2341
    %3923 = vmatpush.bf16.msra.mxu0 %v2333
    %3924 = vmatpush.bf16.msra.mxu0 %v2325
    %3925 = vmatmul.bf16.gmra.mxu0 %v55
    %v3926 = vpop.f32.mrf.mxu0
    %v3927 = vadd.f32 %v3914, %v3926
    %v3928 = vpop.f32.mrf.mxu0
    %3929 = vdwg.mxu0
    %3930 = vmatpush.bf16.msra.mxu0 %v2445
    %3931 = vmatpush.bf16.msra.mxu0 %v2437
    %3932 = vmatpush.bf16.msra.mxu0 %v2429
    %3933 = vmatpush.bf16.msra.mxu0 %v2421
    %3934 = vmatpush.bf16.msra.mxu0 %v2413
    %3935 = vmatpush.bf16.msra.mxu0 %v2405
    %3936 = vmatpush.bf16.msra.mxu0 %v2397
    %3937 = vmatpush.bf16.msra.mxu0 %v2389
    %3938 = vmatmul.bf16.gmra.mxu0 %v56
    %v3939 = vpop.f32.mrf.mxu0
    %v3940 = vadd.f32 %v3927, %v3939
    %v3941 = vpop.f32.mrf.mxu0
    %3942 = vdwg.mxu0
    %3943 = vmatpush.bf16.msra.mxu0 %v2509
    %3944 = vmatpush.bf16.msra.mxu0 %v2501
    %3945 = vmatpush.bf16.msra.mxu0 %v2493
    %3946 = vmatpush.bf16.msra.mxu0 %v2485
    %3947 = vmatpush.bf16.msra.mxu0 %v2477
    %3948 = vmatpush.bf16.msra.mxu0 %v2469
    %3949 = vmatpush.bf16.msra.mxu0 %v2461
    %3950 = vmatpush.bf16.msra.mxu0 %v2453
    %3951 = vmatmul.bf16.gmra.mxu0 %v57
    %v3952 = vpop.f32.mrf.mxu0
    %v3953 = vadd.f32 %v3940, %v3952
    %v3954 = vpop.f32.mrf.mxu0
    %3955 = vdwg.mxu0
    %3956 = vmatpush.bf16.msra.mxu0 %v2573
    %3957 = vmatpush.bf16.msra.mxu0 %v2565
    %3958 = vmatpush.bf16.msra.mxu0 %v2557
    %3959 = vmatpush.bf16.msra.mxu0 %v2549
    %3960 = vmatpush.bf16.msra.mxu0 %v2541
    %3961 = vmatpush.bf16.msra.mxu0 %v2533
    %3962 = vmatpush.bf16.msra.mxu0 %v2525
    %3963 = vmatpush.bf16.msra.mxu0 %v2517
    %3964 = vmatmul.bf16.gmra.mxu0 %v58
    %v3965 = vpop.f32.mrf.mxu0
    %v3966 = vadd.f32 %v3953, %v3965
    %v3967 = vpop.f32.mrf.mxu0
    %3968 = vdwg.mxu0
    %3969 = vmatpush.bf16.msra.mxu0 %v2637
    %3970 = vmatpush.bf16.msra.mxu0 %v2629
    %3971 = vmatpush.bf16.msra.mxu0 %v2621
    %3972 = vmatpush.bf16.msra.mxu0 %v2613
    %3973 = vmatpush.bf16.msra.mxu0 %v2605
    %3974 = vmatpush.bf16.msra.mxu0 %v2597
    %3975 = vmatpush.bf16.msra.mxu0 %v2589
    %3976 = vmatpush.bf16.msra.mxu0 %v2581
    %3977 = vmatmul.bf16.gmra.mxu0 %v59
    %v3978 = vpop.f32.mrf.mxu0
    %v3979 = vadd.f32 %v3966, %v3978
    %v3980 = vpop.f32.mrf.mxu0
    %3981 = vdwg.mxu0
    %v3982 = vmax.f32 %v3251, 0.0
    %v3983 = vmax.f32 %v3355, 0.0
    %v3984 = vmax.f32 %v3459, 0.0
    %v3985 = vmax.f32 %v3563, 0.0
    %v3986 = vmax.f32 %v3667, 0.0
    %v3987 = vmax.f32 %v3771, 0.0
    %v3988 = vmax.f32 %v3875, 0.0
    %v3989 = vmax.f32 %v3979, 0.0
    %3990 = vst [vmem:[%s3] sm:$0xff] %v3982
    %3991 = vst [vmem:[%s3 + $0x8] sm:$0xff] %v3983
    %3992 = vst [vmem:[%s3 + $0x10] sm:$0xff] %v3984
    %3993 = vst [vmem:[%s3 + $0x18] sm:$0xff] %v3985
    %3994 = vst [vmem:[%s3 + $0x20] sm:$0xff] %v3986
    %3995 = vst [vmem:[%s3 + $0x28] sm:$0xff] %v3987
    %3996 = vst [vmem:[%s3 + $0x30] sm:$0xff] %v3988
    %3997 = vst [vmem:[%s3 + $0x38] sm:$0xff] %v3989
    // Predicated region
    $region22: #{neural_network_forward.5} parent=1 // pred_check
      _
    $region23: #{neural_network_forward.5} parent=1 // pred_check_branch
      %3999 = sbr.rel (0) target = $region25
    $region24: #{neural_network_forward.5} parent=1 // pred_region
      _
    $region25: #{neural_network_forward.5} parent=1 // pred_fallthru
      _
    // Predicated region
    $region26: #{neural_network_forward.5} parent=1 // pred_check
      _
    $region27: #{neural_network_forward.5} parent=1 // pred_check_branch
      %4001 = sbr.rel (0) target = $region29
    $region28: #{neural_network_forward.5} parent=1 // pred_region
      _
    $region29: #{neural_network_forward.5} parent=1 // pred_fallthru
      _
    %4002 = vsyncpa [#allocation3], 1
    %4003 = vsyncpa [#allocation5], 1

</llo_original>
